<compile_context>
chip_gen: v7x
topology: tpu7x:2x2x1
jax: 0.10.0
libtpu: 0.0.40
codegen_flags: <defaults>
</compile_context>

<pallas_src>
import math

import jax
import jax.numpy as jnp
from jax import lax
from jax.experimental import pallas as pl
from jax.experimental.pallas import tpu as pltpu

# ----------------------------- model dims (small, synthetic) -----------------------------
B, S = 2, 16            # batch, sequence length
H = 128                 # hidden size (MiniLM uses 384; scaled down, lane-friendly)
NH, DH = 4, 32          # heads, head dim
FFN = 256               # intermediate size
VOCAB = 100             # vocab size
N_LAYERS = 2            # encoder layers (MiniLM has 6; scaled down)
CLS_HIDDEN = 512        # classifier hidden (as in the module)
OUT_DIM = 16            # output_dim
LN_EPS = 1e-12
_MXU_DT = jnp.bfloat16  # MXU input dtype; accumulation / elementwise math stays fp32


def _layer_norm(h, g, b):
    mu = jnp.mean(h, axis=-1, keepdims=True)
    var = jnp.mean(jnp.square(h - mu), axis=-1, keepdims=True)
    return (h - mu) * lax.rsqrt(var + LN_EPS) * g + b


# ----------------------------- per-layer fused kernel (grid over layers) -----------------------------
def _bert_layer_kernel(
    x_ref, bias_ref, emb_g_ref, emb_b_ref,
    wqkv_ref, bqkv_ref, wo_ref, bo_ref, ln1g_ref, ln1b_ref,
    w1_ref, b1_ref, w2_ref, b2_ref, ln2g_ref, ln2b_ref,
    pool_w_ref, pool_b_ref, c1w_ref, c1b_ref, c2w_ref, c2b_ref,
    o_ref, x_scr,
):
    l = pl.program_id(0)

    # Embedding LayerNorm feeds the carried activation once, at layer 0.
    @pl.when(l == 0)
    def _():
        x_scr[...] = _layer_norm(x_ref[...], emb_g_ref[...], emb_b_ref[...])

    x = x_scr[...]                                       # (B*S, H) fp32
    xb = x.astype(_MXU_DT)

    # ---- fused QKV projection: one lane-dense (32,128)x(128,384) bf16 GEMM ----
    qkv = (jnp.dot(xb, wqkv_ref[0], preferred_element_type=jnp.float32)
           + bqkv_ref[0]).astype(_MXU_DT)                # (B*S, 3H) bf16, cast early
    q, k, v = qkv[:, :H], qkv[:, H:2 * H], qkv[:, 2 * H:]

    # Re-stack heads onto sublanes: (B*S, NH*DH) -> (NH*B*S, DH); rows ordered (head, batch, seq).
    def stack_heads(t):
        return jnp.concatenate([t[:, h * DH:(h + 1) * DH] for h in range(NH)], axis=0)

    q_st, k_st, v_st = stack_heads(q), stack_heads(k), stack_heads(v)   # (128, 32) bf16

    # ---- batched attention: ONE score matmul, ONE (128,128) softmax, ONE P@V ----
    s = lax.dot_general(q_st, k_st, (((1,), (1,)), ((), ())),
                        preferred_element_type=jnp.float32)             # (128, 128)
    s = s + bias_ref[...]                  # block-diag (head,batch) + key-padding bias
    s = s - jnp.max(s, axis=-1, keepdims=True)
    p = jnp.exp(s)
    p = p * pl.reciprocal(jnp.sum(p, axis=-1, keepdims=True), approx=True)
    ctx = jnp.dot(p.astype(_MXU_DT), v_st, preferred_element_type=jnp.float32)   # (128, 32)

    # Lane-concat heads back to (B*S, H); single (32,128)x(128,128) output projection.
    ctx_cat = jnp.concatenate(
        [ctx[h * B * S:(h + 1) * B * S, :] for h in range(NH)], axis=1)
    attn = jnp.dot(ctx_cat.astype(_MXU_DT), wo_ref[0],
                   preferred_element_type=jnp.float32) + bo_ref[0]       # (B*S, H)

    # Residual + LayerNorm fused.
    x = _layer_norm(x + attn, ln1g_ref[0], ln1b_ref[0])

    # ---- FFN (GELU) + residual + LayerNorm ----
    # TODO(synk): PyTorch/HF BERT uses exact erf GELU; tanh approximation used here
    #             (guaranteed Mosaic lowering via EUP tanh).
    h1 = jax.nn.gelu(
        jnp.dot(x.astype(_MXU_DT), w1_ref[0], preferred_element_type=jnp.float32)
        + b1_ref[0],
        approximate=True)
    h2 = jnp.dot(h1.astype(_MXU_DT), w2_ref[0],
                 preferred_element_type=jnp.float32) + b2_ref[0]
    x = _layer_norm(x + h2, ln2g_ref[0], ln2b_ref[0])
    x_scr[...] = x

    # ---- epilogue on the last layer: CLS select + pooler + classifier, one HBM store ----
    @pl.when(l == pl.num_programs(0) - 1)
    def _():
        rows = lax.broadcasted_iota(jnp.int32, (B, B * S), 0)
        cols = lax.broadcasted_iota(jnp.int32, (B, B * S), 1)
        sel = (cols == rows * S).astype(_MXU_DT)                          # exact 0/1 selector
        cls = jnp.dot(sel, x.astype(_MXU_DT), preferred_element_type=jnp.float32)  # (B, H)
        pooled = jnp.tanh(
            jnp.dot(cls.astype(_MXU_DT), pool_w_ref[...],
                    preferred_element_type=jnp.float32) + pool_b_ref[...])
        hcls = jnp.maximum(
            jnp.dot(pooled.astype(_MXU_DT), c1w_ref[...],
                    preferred_element_type=jnp.float32) + c1b_ref[...], 0.0)
        o_ref[...] = jnp.dot(hcls.astype(_MXU_DT), c2w_ref[...],
                             preferred_element_type=jnp.float32) + c2b_ref[...]


# ----------------------------- parameter init (deterministic, synthetic) -----------------------------
def init_params(key):
    def nrm(k, shape):
        return (jax.random.normal(k, shape, jnp.float32) * 0.02).astype(jnp.float32)

    keys = iter(jax.random.split(key, 16 + N_LAYERS * 16))
    p = {
        "word_emb": nrm(next(keys), (VOCAB, H)),
        "pos_emb": nrm(next(keys), (S, H)),
        "type_emb": nrm(next(keys), (1, H)),
        "emb_ln_g": jnp.ones((H,), jnp.float32),
        "emb_ln_b": jnp.zeros((H,), jnp.float32),
        "layers": [],
        "pool_w": nrm(next(keys), (H, H)),
        "pool_b": jnp.zeros((H,), jnp.float32),
        "cls_w1": nrm(next(keys), (H, CLS_HIDDEN)),
        "cls_b1": jnp.zeros((CLS_HIDDEN,), jnp.float32),
        "cls_w2": nrm(next(keys), (CLS_HIDDEN, OUT_DIM)),
        "cls_b2": jnp.zeros((OUT_DIM,), jnp.float32),
    }
    for _ in range(N_LAYERS):
        layer = {
            "wq": nrm(next(keys), (H, H)), "bq": jnp.zeros((H,), jnp.float32),
            "wk": nrm(next(keys), (H, H)), "bk": jnp.zeros((H,), jnp.float32),
            "wv": nrm(next(keys), (H, H)), "bv": jnp.zeros((H,), jnp.float32),
            "wo": nrm(next(keys), (H, H)), "bo": jnp.zeros((H,), jnp.float32),
            "ln1_g": jnp.ones((H,), jnp.float32), "ln1_b": jnp.zeros((H,), jnp.float32),
            "w1": nrm(next(keys), (H, FFN)), "b1": jnp.zeros((FFN,), jnp.float32),
            "w2": nrm(next(keys), (FFN, H)), "b2": jnp.zeros((H,), jnp.float32),
            "ln2_g": jnp.ones((H,), jnp.float32), "ln2_b": jnp.zeros((H,), jnp.float32),
        }
        p["layers"].append(layer)
    return p


def _pack_params(p):
    """Re-layout weights: fused QKV (1/sqrt(DH) folded into Q), leading layer axis, bf16 MXU weights."""
    L = len(p["layers"])
    scale = 1.0 / math.sqrt(DH)

    def cat(name):
        return jnp.stack([layer[name] for layer in p["layers"]], axis=0)

    wqkv = jnp.concatenate([cat("wq") * scale, cat("wk"), cat("wv")],
                           axis=-1).astype(_MXU_DT)                     # (L, H, 3H)
    bqkv = jnp.concatenate([cat("bq") * scale, cat("bk"), cat("bv")],
                           axis=-1).reshape(L, 1, 3 * H)                # (L, 1, 3H) fp32
    wo = cat("wo").astype(_MXU_DT)                                      # (L, H, H)
    bo = cat("bo").reshape(L, 1, H)
    ln1g, ln1b = cat("ln1_g").reshape(L, 1, H), cat("ln1_b").reshape(L, 1, H)
    w1 = cat("w1").astype(_MXU_DT)                                      # (L, H, FFN)
    b1 = cat("b1").reshape(L, 1, FFN)
    w2 = cat("w2").astype(_MXU_DT)                                      # (L, FFN, H)
    b2 = cat("b2").reshape(L, 1, H)
    ln2g, ln2b = cat("ln2_g").reshape(L, 1, H), cat("ln2_b").reshape(L, 1, H)

    return (
        p["emb_ln_g"].reshape(1, H), p["emb_ln_b"].reshape(1, H),
        wqkv, bqkv, wo, bo, ln1g, ln1b,
        w1, b1, w2, b2, ln2g, ln2b,
        p["pool_w"].astype(_MXU_DT), p["pool_b"].reshape(1, H),
        p["cls_w1"].astype(_MXU_DT), p["cls_b1"].reshape(1, CLS_HIDDEN),
        p["cls_w2"].astype(_MXU_DT), p["cls_b2"].reshape(1, OUT_DIM),
    )


# ----------------------------- forward (matches BERTTagRecommender.forward) -----------------------------
@jax.jit
def bert_tag_recommender_forward(params, input_ids, attention_mask):
    Bi, Si = input_ids.shape
    assert (Bi, Si) == (B, S), "kernel is specialized to the module's (B, S)"

    # Embedding gathers stay in plain JAX (glue).
    x = (params["word_emb"][input_ids]
         + params["pos_emb"][None, :Si, :]
         + params["type_emb"][0][None, None, :]).reshape(Bi * Si, H)

    # Combined additive attention bias, built ONCE and reused by every layer.
    # Rows/cols follow the (head, batch, seq) stacking used in the kernel:
    # 0 inside the same (head, batch) block when the key position is un-padded, else -1e9.
    NR = NH * Bi * Si
    idx = jnp.arange(NR)
    blk = idx // Si                                  # block id = head * B + batch
    kb = blk % Bi                                    # key's batch index
    ks = idx % Si                                    # key's sequence position
    key_ok = attention_mask[kb, ks].astype(jnp.bool_)
    same_blk = blk[:, None] == blk[None, :]
    mask_bias = jnp.where(same_blk & key_ok[None, :], 0.0, -1e9).astype(jnp.float32)

    (emb_g, emb_b, wqkv, bqkv, wo, bo, ln1g, ln1b,
     w1, b1, w2, b2, ln2g, ln2b,
     pool_w, pool_b, c1w, c1b, c2w, c2b) = _pack_params(params)

    def full2(shape):
        return pl.BlockSpec(shape, lambda l: (0, 0))

    def per_layer3(shape):
        return pl.BlockSpec(shape, lambda l: (l, 0, 0))

    in_specs = [
        full2((Bi * Si, H)),                                    # x (embeddings, pre-LN)
        full2((NR, NR)),                                        # combined attention bias
        full2((1, H)), full2((1, H)),                           # embedding LN
        per_layer3((1, H, 3 * H)), per_layer3((1, 1, 3 * H)),   # wqkv, bqkv
        per_layer3((1, H, H)), per_layer3((1, 1, H)),           # wo, bo
        per_layer3((1, 1, H)), per_layer3((1, 1, H)),           # ln1 g/b
        per_layer3((1, H, FFN)), per_layer3((1, 1, FFN)),       # w1, b1
        per_layer3((1, FFN, H)), per_layer3((1, 1, H)),         # w2, b2
        per_layer3((1, 1, H)), per_layer3((1, 1, H)),           # ln2 g/b
        full2((H, H)), full2((1, H)),                           # pooler
        full2((H, CLS_HIDDEN)), full2((1, CLS_HIDDEN)),         # classifier layer 1
        full2((CLS_HIDDEN, OUT_DIM)), full2((1, OUT_DIM)),      # classifier layer 2
    ]

    return pl.pallas_call(
        _bert_layer_kernel,
        out_shape=jax.ShapeDtypeStruct((Bi, OUT_DIM), jnp.float32),
        grid=(N_LAYERS,),
        in_specs=in_specs,
        out_specs=pl.BlockSpec((Bi, OUT_DIM), lambda l: (0, 0)),
        scratch_shapes=[pltpu.VMEM((Bi * Si, H), jnp.float32)],
        compiler_params=pltpu.CompilerParams(dimension_semantics=("arbitrary",)),
    )(x, mask_bias, emb_g, emb_b, wqkv, bqkv, wo, bo, ln1g, ln1b,
      w1, b1, w2, b2, ln2g, ln2b, pool_w, pool_b, c1w, c1b, c2w, c2b)


# ----------------------------- main -----------------------------
if __name__ == "__main__":
    key = jax.random.PRNGKey(0)
    k_param, k_ids = jax.random.split(key)

    params = init_params(k_param)
    input_ids = jax.random.randint(k_ids, (B, S), 0, VOCAB, dtype=jnp.int32)
    # second example has padding in the last 6 positions
    attention_mask = jnp.concatenate(
        [jnp.ones((1, S), jnp.int32),
         jnp.concatenate([jnp.ones((1, S - 6), jnp.int32),
                          jnp.zeros((1, 6), jnp.int32)], axis=1)], axis=0)

    logits = bert_tag_recommender_forward(params, input_ids, attention_mask)
    logits = jax.block_until_ready(logits)
    assert logits.shape == (B, OUT_DIM) and logits.dtype == jnp.float32
    assert bool(jnp.all(jnp.isfinite(logits)))
    print("KERNEL_OK")
</pallas_src>

<mosaic_0001>
module attributes {stable_mosaic.version = 11 : i64} {
  func.func @_bert_layer_kernel(%arg0: i32, %arg1: memref<32x128xf32, #tpu.memory_space<vmem>>, %arg2: memref<128x128xf32, #tpu.memory_space<vmem>>, %arg3: memref<1x128xf32, #tpu.memory_space<vmem>>, %arg4: memref<1x128xf32, #tpu.memory_space<vmem>>, %arg5: memref<1x128x384xbf16, #tpu.memory_space<vmem>>, %arg6: memref<1x1x384xf32, #tpu.memory_space<vmem>>, %arg7: memref<1x128x128xbf16, #tpu.memory_space<vmem>>, %arg8: memref<1x1x128xf32, #tpu.memory_space<vmem>>, %arg9: memref<1x1x128xf32, #tpu.memory_space<vmem>>, %arg10: memref<1x1x128xf32, #tpu.memory_space<vmem>>, %arg11: memref<1x128x256xbf16, #tpu.memory_space<vmem>>, %arg12: memref<1x1x256xf32, #tpu.memory_space<vmem>>, %arg13: memref<1x256x128xbf16, #tpu.memory_space<vmem>>, %arg14: memref<1x1x128xf32, #tpu.memory_space<vmem>>, %arg15: memref<1x1x128xf32, #tpu.memory_space<vmem>>, %arg16: memref<1x1x128xf32, #tpu.memory_space<vmem>>, %arg17: memref<128x128xbf16, #tpu.memory_space<vmem>>, %arg18: memref<1x128xf32, #tpu.memory_space<vmem>>, %arg19: memref<128x512xbf16, #tpu.memory_space<vmem>>, %arg20: memref<1x512xf32, #tpu.memory_space<vmem>>, %arg21: memref<512x16xbf16, #tpu.memory_space<vmem>>, %arg22: memref<1x16xf32, #tpu.memory_space<vmem>>, %arg23: memref<2x16xf32, #tpu.memory_space<vmem>>, %arg24: memref<32x128xf32, #tpu.memory_space<vmem>>) attributes {dimension_semantics = [#tpu.dimension_semantics<arbitrary>], iteration_bounds = array<i64: 2>, scalar_prefetch = 0 : i64, scratch_operands = 1 : i64, tpu.core_type = #tpu.core_type<tc>, window_params = [{pipeline_mode = #tpu.pipeline_mode<synchronous>, transform_indices = @transform_0, window_bounds = array<i64: 32, 128>}, {pipeline_mode = #tpu.pipeline_mode<synchronous>, transform_indices = @transform_1, window_bounds = array<i64: 128, 128>}, {pipeline_mode = #tpu.pipeline_mode<synchronous>, transform_indices = @transform_2, window_bounds = array<i64: 1, 128>}, {pipeline_mode = #tpu.pipeline_mode<synchronous>, transform_indices = @transform_3, window_bounds = array<i64: 1, 128>}, {transform_indices = @transform_4, window_bounds = array<i64: 1, 128, 384>}, {transform_indices = @transform_5, window_bounds = array<i64: 1, 1, 384>}, {transform_indices = @transform_6, window_bounds = array<i64: 1, 128, 128>}, {transform_indices = @transform_7, window_bounds = array<i64: 1, 1, 128>}, {transform_indices = @transform_8, window_bounds = array<i64: 1, 1, 128>}, {transform_indices = @transform_9, window_bounds = array<i64: 1, 1, 128>}, {transform_indices = @transform_10, window_bounds = array<i64: 1, 128, 256>}, {transform_indices = @transform_11, window_bounds = array<i64: 1, 1, 256>}, {transform_indices = @transform_12, window_bounds = array<i64: 1, 256, 128>}, {transform_indices = @transform_13, window_bounds = array<i64: 1, 1, 128>}, {transform_indices = @transform_14, window_bounds = array<i64: 1, 1, 128>}, {transform_indices = @transform_15, window_bounds = array<i64: 1, 1, 128>}, {pipeline_mode = #tpu.pipeline_mode<synchronous>, transform_indices = @transform_16, window_bounds = array<i64: 128, 128>}, {pipeline_mode = #tpu.pipeline_mode<synchronous>, transform_indices = @transform_17, window_bounds = array<i64: 1, 128>}, {pipeline_mode = #tpu.pipeline_mode<synchronous>, transform_indices = @transform_18, window_bounds = array<i64: 128, 512>}, {pipeline_mode = #tpu.pipeline_mode<synchronous>, transform_indices = @transform_19, window_bounds = array<i64: 1, 512>}, {pipeline_mode = #tpu.pipeline_mode<synchronous>, transform_indices = @transform_20, window_bounds = array<i64: 512, 16>}, {pipeline_mode = #tpu.pipeline_mode<synchronous>, transform_indices = @transform_21, window_bounds = array<i64: 1, 16>}, {pipeline_mode = #tpu.pipeline_mode<synchronous>, transform_indices = @transform_22, window_bounds = array<i64: 2, 16>}]} {
    %c0_i32 = arith.constant 0 : i32
    %0 = arith.cmpi eq, %arg0, %c0_i32 : i32
    %1 = arith.extui %0 : i1 to i32
    %c0_i32_0 = arith.constant 0 : i32
    %2 = arith.cmpi ne, %1, %c0_i32_0 : i32
    scf.if %2 {
      %c0_64 = arith.constant 0 : index
      %c0_65 = arith.constant 0 : index
      %146 = vector.load %arg1[%c0_64, %c0_65] : memref<32x128xf32, #tpu.memory_space<vmem>>, vector<32x128xf32>
      %c0_66 = arith.constant 0 : index
      %c0_67 = arith.constant 0 : index
      %147 = vector.load %arg3[%c0_66, %c0_67] : memref<1x128xf32, #tpu.memory_space<vmem>>, vector<1x128xf32>
      %c0_68 = arith.constant 0 : index
      %c0_69 = arith.constant 0 : index
      %148 = vector.load %arg4[%c0_68, %c0_69] : memref<1x128xf32, #tpu.memory_space<vmem>>, vector<1x128xf32>
      %cst_70 = arith.constant dense<0.000000e+00> : vector<32xf32>
      %149 = vector.multi_reduction <add>, %146, %cst_70 [1] : vector<32x128xf32> to vector<32xf32>
      %150 = vector.shape_cast %149 : vector<32xf32> to vector<32x1xf32>
      %cst_71 = arith.constant 1.280000e+02 : f32
      %151 = vector.broadcast %cst_71 : f32 to vector<32x1xf32>
      %152 = arith.divf %150, %151 : vector<32x1xf32>
      %153 = vector.broadcast %152 : vector<32x1xf32> to vector<32x128xf32>
      %154 = arith.subf %146, %153 : vector<32x128xf32>
      %155 = arith.mulf %154, %154 : vector<32x128xf32>
      %cst_72 = arith.constant dense<0.000000e+00> : vector<32xf32>
      %156 = vector.multi_reduction <add>, %155, %cst_72 [1] : vector<32x128xf32> to vector<32xf32>
      %157 = vector.shape_cast %156 : vector<32xf32> to vector<32x1xf32>
      %cst_73 = arith.constant 1.280000e+02 : f32
      %158 = vector.broadcast %cst_73 : f32 to vector<32x1xf32>
      %159 = arith.divf %157, %158 : vector<32x1xf32>
      %160 = vector.broadcast %152 : vector<32x1xf32> to vector<32x128xf32>
      %161 = arith.subf %146, %160 : vector<32x128xf32>
      %cst_74 = arith.constant 9.99999996E-13 : f32
      %162 = vector.broadcast %cst_74 : f32 to vector<32x1xf32>
      %163 = arith.addf %159, %162 : vector<32x1xf32>
      %164 = math.rsqrt %163 : vector<32x1xf32>
      %165 = vector.broadcast %164 : vector<32x1xf32> to vector<32x128xf32>
      %166 = arith.mulf %161, %165 : vector<32x128xf32>
      %167 = vector.broadcast %147 : vector<1x128xf32> to vector<32x128xf32>
      %168 = arith.mulf %166, %167 : vector<32x128xf32>
      %169 = vector.broadcast %148 : vector<1x128xf32> to vector<32x128xf32>
      %170 = arith.addf %168, %169 : vector<32x128xf32>
      %c0_75 = arith.constant 0 : index
      %c0_76 = arith.constant 0 : index
      %171 = vector.load %arg24[%c0_75, %c0_76] : memref<32x128xf32, #tpu.memory_space<vmem>>, vector<32x128xf32>
      tpu.vector_store %arg24[%c0_75, %c0_76], %170 {strides = array<i32>} : memref<32x128xf32, #tpu.memory_space<vmem>>, vector<32x128xf32>,
    } else {
    }
    %c0 = arith.constant 0 : index
    %c0_1 = arith.constant 0 : index
    %3 = vector.load %arg24[%c0, %c0_1] : memref<32x128xf32, #tpu.memory_space<vmem>>, vector<32x128xf32>
    %4 = arith.truncf %3 : vector<32x128xf32> to vector<32x128xbf16>
    %c0_2 = arith.constant 0 : index
    %c0_3 = arith.constant 0 : index
    %c0_4 = arith.constant 0 : index
    %5 = vector.load %arg5[%c0_2, %c0_3, %c0_4] : memref<1x128x384xbf16, #tpu.memory_space<vmem>>, vector<1x128x384xbf16>
    %6 = vector.shape_cast %5 : vector<1x128x384xbf16> to vector<128x384xbf16>
    %cst = arith.constant dense<0.000000e+00> : vector<32x384xf32>
    %7 = tpu.matmul %4, %6, %cst {dimension_numbers = #tpu.dot_dimension_numbers<[1], [0], [0], [1], [0, 0, 1, 1], [], []>} : vector<32x128xbf16>, vector<128x384xbf16>, vector<32x384xf32> -> vector<32x384xf32>
    %c0_5 = arith.constant 0 : index
    %c0_6 = arith.constant 0 : index
    %c0_7 = arith.constant 0 : index
    %8 = vector.load %arg6[%c0_5, %c0_6, %c0_7] : memref<1x1x384xf32, #tpu.memory_space<vmem>>, vector<1x1x384xf32>
    %9 = vector.shape_cast %8 : vector<1x1x384xf32> to vector<1x384xf32>
    %10 = vector.broadcast %9 : vector<1x384xf32> to vector<32x384xf32>
    %11 = arith.addf %7, %10 : vector<32x384xf32>
    %12 = arith.truncf %11 : vector<32x384xf32> to vector<32x384xbf16>
    %13 = vector.extract_strided_slice %12 {offsets = [0, 0], sizes = [32, 128], strides = [1, 1]} : vector<32x384xbf16> to vector<32x128xbf16>
    %14 = vector.extract_strided_slice %12 {offsets = [0, 128], sizes = [32, 128], strides = [1, 1]} : vector<32x384xbf16> to vector<32x128xbf16>
    %15 = vector.extract_strided_slice %12 {offsets = [0, 256], sizes = [32, 128], strides = [1, 1]} : vector<32x384xbf16> to vector<32x128xbf16>
    %16 = vector.extract_strided_slice %13 {offsets = [0, 0], sizes = [32, 32], strides = [1, 1]} : vector<32x128xbf16> to vector<32x32xbf16>
    %17 = vector.extract_strided_slice %13 {offsets = [0, 32], sizes = [32, 32], strides = [1, 1]} : vector<32x128xbf16> to vector<32x32xbf16>
    %18 = vector.extract_strided_slice %13 {offsets = [0, 64], sizes = [32, 32], strides = [1, 1]} : vector<32x128xbf16> to vector<32x32xbf16>
    %19 = vector.extract_strided_slice %13 {offsets = [0, 96], sizes = [32, 32], strides = [1, 1]} : vector<32x128xbf16> to vector<32x32xbf16>
    %20 = tpu.concatenate %16, %17, %18, %19 in 0 : vector<32x32xbf16>, vector<32x32xbf16>, vector<32x32xbf16>, vector<32x32xbf16> -> vector<128x32xbf16>
    %21 = vector.extract_strided_slice %14 {offsets = [0, 0], sizes = [32, 32], strides = [1, 1]} : vector<32x128xbf16> to vector<32x32xbf16>
    %22 = vector.extract_strided_slice %14 {offsets = [0, 32], sizes = [32, 32], strides = [1, 1]} : vector<32x128xbf16> to vector<32x32xbf16>
    %23 = vector.extract_strided_slice %14 {offsets = [0, 64], sizes = [32, 32], strides = [1, 1]} : vector<32x128xbf16> to vector<32x32xbf16>
    %24 = vector.extract_strided_slice %14 {offsets = [0, 96], sizes = [32, 32], strides = [1, 1]} : vector<32x128xbf16> to vector<32x32xbf16>
    %25 = tpu.concatenate %21, %22, %23, %24 in 0 : vector<32x32xbf16>, vector<32x32xbf16>, vector<32x32xbf16>, vector<32x32xbf16> -> vector<128x32xbf16>
    %26 = vector.extract_strided_slice %15 {offsets = [0, 0], sizes = [32, 32], strides = [1, 1]} : vector<32x128xbf16> to vector<32x32xbf16>
    %27 = vector.extract_strided_slice %15 {offsets = [0, 32], sizes = [32, 32], strides = [1, 1]} : vector<32x128xbf16> to vector<32x32xbf16>
    %28 = vector.extract_strided_slice %15 {offsets = [0, 64], sizes = [32, 32], strides = [1, 1]} : vector<32x128xbf16> to vector<32x32xbf16>
    %29 = vector.extract_strided_slice %15 {offsets = [0, 96], sizes = [32, 32], strides = [1, 1]} : vector<32x128xbf16> to vector<32x32xbf16>
    %30 = tpu.concatenate %26, %27, %28, %29 in 0 : vector<32x32xbf16>, vector<32x32xbf16>, vector<32x32xbf16>, vector<32x32xbf16> -> vector<128x32xbf16>
    %cst_8 = arith.constant dense<0.000000e+00> : vector<128x128xf32>
    %31 = tpu.matmul %20, %25, %cst_8 {dimension_numbers = #tpu.dot_dimension_numbers<[1], [1], [0], [0], [0, 0, 1, 0], [], []>} : vector<128x32xbf16>, vector<128x32xbf16>, vector<128x128xf32> -> vector<128x128xf32>
    %c0_9 = arith.constant 0 : index
    %c0_10 = arith.constant 0 : index
    %32 = vector.load %arg2[%c0_9, %c0_10] : memref<128x128xf32, #tpu.memory_space<vmem>>, vector<128x128xf32>
    %33 = arith.addf %31, %32 : vector<128x128xf32>
    %cst_11 = arith.constant dense<0xFF800000> : vector<128xf32>
    %34 = vector.multi_reduction <maximumf>, %33, %cst_11 [1] : vector<128x128xf32> to vector<128xf32>
    %35 = vector.shape_cast %34 : vector<128xf32> to vector<128x1xf32>
    %36 = vector.broadcast %35 : vector<128x1xf32> to vector<128x128xf32>
    %37 = arith.subf %33, %36 : vector<128x128xf32>
    %38 = math.exp %37 : vector<128x128xf32>
    %cst_12 = arith.constant dense<0.000000e+00> : vector<128xf32>
    %39 = vector.multi_reduction <add>, %38, %cst_12 [1] : vector<128x128xf32> to vector<128xf32>
    %40 = vector.shape_cast %39 : vector<128xf32> to vector<128x1xf32>
    %41 = tpu.reciprocal %40 {approx = true} : vector<128x1xf32> -> vector<128x1xf32>
    %42 = vector.broadcast %41 : vector<128x1xf32> to vector<128x128xf32>
    %43 = arith.mulf %38, %42 : vector<128x128xf32>
    %44 = arith.truncf %43 : vector<128x128xf32> to vector<128x128xbf16>
    %cst_13 = arith.constant dense<0.000000e+00> : vector<128x32xf32>
    %45 = tpu.matmul %44, %30, %cst_13 {dimension_numbers = #tpu.dot_dimension_numbers<[1], [0], [0], [1], [0, 0, 1, 1], [], []>} : vector<128x128xbf16>, vector<128x32xbf16>, vector<128x32xf32> -> vector<128x32xf32>
    %46 = vector.extract_strided_slice %45 {offsets = [0, 0], sizes = [32, 32], strides = [1, 1]} : vector<128x32xf32> to vector<32x32xf32>
    %47 = vector.extract_strided_slice %45 {offsets = [32, 0], sizes = [32, 32], strides = [1, 1]} : vector<128x32xf32> to vector<32x32xf32>
    %48 = vector.extract_strided_slice %45 {offsets = [64, 0], sizes = [32, 32], strides = [1, 1]} : vector<128x32xf32> to vector<32x32xf32>
    %49 = vector.extract_strided_slice %45 {offsets = [96, 0], sizes = [32, 32], strides = [1, 1]} : vector<128x32xf32> to vector<32x32xf32>
    %50 = tpu.concatenate %46, %47, %48, %49 in 1 : vector<32x32xf32>, vector<32x32xf32>, vector<32x32xf32>, vector<32x32xf32> -> vector<32x128xf32>
    %51 = arith.truncf %50 : vector<32x128xf32> to vector<32x128xbf16>
    %c0_14 = arith.constant 0 : index
    %c0_15 = arith.constant 0 : index
    %c0_16 = arith.constant 0 : index
    %52 = vector.load %arg7[%c0_14, %c0_15, %c0_16] : memref<1x128x128xbf16, #tpu.memory_space<vmem>>, vector<1x128x128xbf16>
    %53 = vector.shape_cast %52 : vector<1x128x128xbf16> to vector<128x128xbf16>
    %cst_17 = arith.constant dense<0.000000e+00> : vector<32x128xf32>
    %54 = tpu.matmul %51, %53, %cst_17 {dimension_numbers = #tpu.dot_dimension_numbers<[1], [0], [0], [1], [0, 0, 1, 1], [], []>} : vector<32x128xbf16>, vector<128x128xbf16>, vector<32x128xf32> -> vector<32x128xf32>
    %c0_18 = arith.constant 0 : index
    %c0_19 = arith.constant 0 : index
    %c0_20 = arith.constant 0 : index
    %55 = vector.load %arg8[%c0_18, %c0_19, %c0_20] : memref<1x1x128xf32, #tpu.memory_space<vmem>>, vector<1x1x128xf32>
    %56 = vector.shape_cast %55 : vector<1x1x128xf32> to vector<1x128xf32>
    %57 = vector.broadcast %56 : vector<1x128xf32> to vector<32x128xf32>
    %58 = arith.addf %54, %57 : vector<32x128xf32>
    %59 = arith.addf %3, %58 : vector<32x128xf32>
    %c0_21 = arith.constant 0 : index
    %c0_22 = arith.constant 0 : index
    %c0_23 = arith.constant 0 : index
    %60 = vector.load %arg9[%c0_21, %c0_22, %c0_23] : memref<1x1x128xf32, #tpu.memory_space<vmem>>, vector<1x1x128xf32>
    %61 = vector.shape_cast %60 : vector<1x1x128xf32> to vector<1x128xf32>
    %c0_24 = arith.constant 0 : index
    %c0_25 = arith.constant 0 : index
    %c0_26 = arith.constant 0 : index
    %62 = vector.load %arg10[%c0_24, %c0_25, %c0_26] : memref<1x1x128xf32, #tpu.memory_space<vmem>>, vector<1x1x128xf32>
    %63 = vector.shape_cast %62 : vector<1x1x128xf32> to vector<1x128xf32>
    %cst_27 = arith.constant dense<0.000000e+00> : vector<32xf32>
    %64 = vector.multi_reduction <add>, %59, %cst_27 [1] : vector<32x128xf32> to vector<32xf32>
    %65 = vector.shape_cast %64 : vector<32xf32> to vector<32x1xf32>
    %cst_28 = arith.constant 1.280000e+02 : f32
    %66 = vector.broadcast %cst_28 : f32 to vector<32x1xf32>
    %67 = arith.divf %65, %66 : vector<32x1xf32>
    %68 = vector.broadcast %67 : vector<32x1xf32> to vector<32x128xf32>
    %69 = arith.subf %59, %68 : vector<32x128xf32>
    %70 = arith.mulf %69, %69 : vector<32x128xf32>
    %cst_29 = arith.constant dense<0.000000e+00> : vector<32xf32>
    %71 = vector.multi_reduction <add>, %70, %cst_29 [1] : vector<32x128xf32> to vector<32xf32>
    %72 = vector.shape_cast %71 : vector<32xf32> to vector<32x1xf32>
    %cst_30 = arith.constant 1.280000e+02 : f32
    %73 = vector.broadcast %cst_30 : f32 to vector<32x1xf32>
    %74 = arith.divf %72, %73 : vector<32x1xf32>
    %75 = vector.broadcast %67 : vector<32x1xf32> to vector<32x128xf32>
    %76 = arith.subf %59, %75 : vector<32x128xf32>
    %cst_31 = arith.constant 9.99999996E-13 : f32
    %77 = vector.broadcast %cst_31 : f32 to vector<32x1xf32>
    %78 = arith.addf %74, %77 : vector<32x1xf32>
    %79 = math.rsqrt %78 : vector<32x1xf32>
    %80 = vector.broadcast %79 : vector<32x1xf32> to vector<32x128xf32>
    %81 = arith.mulf %76, %80 : vector<32x128xf32>
    %82 = vector.broadcast %61 : vector<1x128xf32> to vector<32x128xf32>
    %83 = arith.mulf %81, %82 : vector<32x128xf32>
    %84 = vector.broadcast %63 : vector<1x128xf32> to vector<32x128xf32>
    %85 = arith.addf %83, %84 : vector<32x128xf32>
    %86 = arith.truncf %85 : vector<32x128xf32> to vector<32x128xbf16>
    %c0_32 = arith.constant 0 : index
    %c0_33 = arith.constant 0 : index
    %c0_34 = arith.constant 0 : index
    %87 = vector.load %arg11[%c0_32, %c0_33, %c0_34] : memref<1x128x256xbf16, #tpu.memory_space<vmem>>, vector<1x128x256xbf16>
    %88 = vector.shape_cast %87 : vector<1x128x256xbf16> to vector<128x256xbf16>
    %cst_35 = arith.constant dense<0.000000e+00> : vector<32x256xf32>
    %89 = tpu.matmul %86, %88, %cst_35 {dimension_numbers = #tpu.dot_dimension_numbers<[1], [0], [0], [1], [0, 0, 1, 1], [], []>} : vector<32x128xbf16>, vector<128x256xbf16>, vector<32x256xf32> -> vector<32x256xf32>
    %c0_36 = arith.constant 0 : index
    %c0_37 = arith.constant 0 : index
    %c0_38 = arith.constant 0 : index
    %90 = vector.load %arg12[%c0_36, %c0_37, %c0_38] : memref<1x1x256xf32, #tpu.memory_space<vmem>>, vector<1x1x256xf32>
    %91 = vector.shape_cast %90 : vector<1x1x256xf32> to vector<1x256xf32>
    %92 = vector.broadcast %91 : vector<1x256xf32> to vector<32x256xf32>
    %93 = arith.addf %89, %92 : vector<32x256xf32>
    %94 = arith.mulf %93, %93 : vector<32x256xf32>
    %95 = arith.mulf %93, %94 : vector<32x256xf32>
    %cst_39 = arith.constant 4.471500e-02 : f32
    %96 = vector.broadcast %cst_39 : f32 to vector<32x256xf32>
    %97 = arith.mulf %96, %95 : vector<32x256xf32>
    %98 = arith.addf %93, %97 : vector<32x256xf32>
    %cst_40 = arith.constant 0.797884583 : f32
    %99 = vector.broadcast %cst_40 : f32 to vector<32x256xf32>
    %100 = arith.mulf %99, %98 : vector<32x256xf32>
    %101 = math.tanh %100 : vector<32x256xf32>
    %cst_41 = arith.constant 1.000000e+00 : f32
    %102 = vector.broadcast %cst_41 : f32 to vector<32x256xf32>
    %103 = arith.addf %102, %101 : vector<32x256xf32>
    %cst_42 = arith.constant 5.000000e-01 : f32
    %104 = vector.broadcast %cst_42 : f32 to vector<32x256xf32>
    %105 = arith.mulf %104, %103 : vector<32x256xf32>
    %106 = arith.mulf %93, %105 : vector<32x256xf32>
    %107 = arith.truncf %106 : vector<32x256xf32> to vector<32x256xbf16>
    %c0_43 = arith.constant 0 : index
    %c0_44 = arith.constant 0 : index
    %c0_45 = arith.constant 0 : index
    %108 = vector.load %arg13[%c0_43, %c0_44, %c0_45] : memref<1x256x128xbf16, #tpu.memory_space<vmem>>, vector<1x256x128xbf16>
    %109 = vector.shape_cast %108 : vector<1x256x128xbf16> to vector<256x128xbf16>
    %cst_46 = arith.constant dense<0.000000e+00> : vector<32x128xf32>
    %110 = tpu.matmul %107, %109, %cst_46 {dimension_numbers = #tpu.dot_dimension_numbers<[1], [0], [0], [1], [0, 0, 1, 1], [], []>} : vector<32x256xbf16>, vector<256x128xbf16>, vector<32x128xf32> -> vector<32x128xf32>
    %c0_47 = arith.constant 0 : index
    %c0_48 = arith.constant 0 : index
    %c0_49 = arith.constant 0 : index
    %111 = vector.load %arg14[%c0_47, %c0_48, %c0_49] : memref<1x1x128xf32, #tpu.memory_space<vmem>>, vector<1x1x128xf32>
    %112 = vector.shape_cast %111 : vector<1x1x128xf32> to vector<1x128xf32>
    %113 = vector.broadcast %112 : vector<1x128xf32> to vector<32x128xf32>
    %114 = arith.addf %110, %113 : vector<32x128xf32>
    %115 = arith.addf %85, %114 : vector<32x128xf32>
    %c0_50 = arith.constant 0 : index
    %c0_51 = arith.constant 0 : index
    %c0_52 = arith.constant 0 : index
    %116 = vector.load %arg15[%c0_50, %c0_51, %c0_52] : memref<1x1x128xf32, #tpu.memory_space<vmem>>, vector<1x1x128xf32>
    %117 = vector.shape_cast %116 : vector<1x1x128xf32> to vector<1x128xf32>
    %c0_53 = arith.constant 0 : index
    %c0_54 = arith.constant 0 : index
    %c0_55 = arith.constant 0 : index
    %118 = vector.load %arg16[%c0_53, %c0_54, %c0_55] : memref<1x1x128xf32, #tpu.memory_space<vmem>>, vector<1x1x128xf32>
    %119 = vector.shape_cast %118 : vector<1x1x128xf32> to vector<1x128xf32>
    %cst_56 = arith.constant dense<0.000000e+00> : vector<32xf32>
    %120 = vector.multi_reduction <add>, %115, %cst_56 [1] : vector<32x128xf32> to vector<32xf32>
    %121 = vector.shape_cast %120 : vector<32xf32> to vector<32x1xf32>
    %cst_57 = arith.constant 1.280000e+02 : f32
    %122 = vector.broadcast %cst_57 : f32 to vector<32x1xf32>
    %123 = arith.divf %121, %122 : vector<32x1xf32>
    %124 = vector.broadcast %123 : vector<32x1xf32> to vector<32x128xf32>
    %125 = arith.subf %115, %124 : vector<32x128xf32>
    %126 = arith.mulf %125, %125 : vector<32x128xf32>
    %cst_58 = arith.constant dense<0.000000e+00> : vector<32xf32>
    %127 = vector.multi_reduction <add>, %126, %cst_58 [1] : vector<32x128xf32> to vector<32xf32>
    %128 = vector.shape_cast %127 : vector<32xf32> to vector<32x1xf32>
    %cst_59 = arith.constant 1.280000e+02 : f32
    %129 = vector.broadcast %cst_59 : f32 to vector<32x1xf32>
    %130 = arith.divf %128, %129 : vector<32x1xf32>
    %131 = vector.broadcast %123 : vector<32x1xf32> to vector<32x128xf32>
    %132 = arith.subf %115, %131 : vector<32x128xf32>
    %cst_60 = arith.constant 9.99999996E-13 : f32
    %133 = vector.broadcast %cst_60 : f32 to vector<32x1xf32>
    %134 = arith.addf %130, %133 : vector<32x1xf32>
    %135 = math.rsqrt %134 : vector<32x1xf32>
    %136 = vector.broadcast %135 : vector<32x1xf32> to vector<32x128xf32>
    %137 = arith.mulf %132, %136 : vector<32x128xf32>
    %138 = vector.broadcast %117 : vector<1x128xf32> to vector<32x128xf32>
    %139 = arith.mulf %137, %138 : vector<32x128xf32>
    %140 = vector.broadcast %119 : vector<1x128xf32> to vector<32x128xf32>
    %141 = arith.addf %139, %140 : vector<32x128xf32>
    %c0_61 = arith.constant 0 : index
    %c0_62 = arith.constant 0 : index
    %142 = vector.load %arg24[%c0_61, %c0_62] : memref<32x128xf32, #tpu.memory_space<vmem>>, vector<32x128xf32>
    tpu.vector_store %arg24[%c0_61, %c0_62], %141 {strides = array<i32>} : memref<32x128xf32, #tpu.memory_space<vmem>>, vector<32x128xf32>,
    %c1_i32 = arith.constant 1 : i32
    %143 = arith.cmpi eq, %arg0, %c1_i32 : i32
    %144 = arith.extui %143 : i1 to i32
    %c0_i32_63 = arith.constant 0 : i32
    %145 = arith.cmpi ne, %144, %c0_i32_63 : i32
    scf.if %145 {
      %146 = tpu.iota {dimensions = array<i32: 0>} : vector<2x32xi32>
      %147 = tpu.iota {dimensions = array<i32: 1>} : vector<2x32xi32>
      %c16_i32 = arith.constant 16 : i32
      %148 = vector.broadcast %c16_i32 : i32 to vector<2x32xi32>
      %149 = arith.muli %146, %148 : vector<2x32xi32>
      %150 = arith.cmpi eq, %147, %149 : vector<2x32xi32>
      %151 = arith.extui %150 : vector<2x32xi1> to vector<2x32xi32>
      %152 = arith.sitofp %151 : vector<2x32xi32> to vector<2x32xf32>
      %153 = arith.truncf %152 : vector<2x32xf32> to vector<2x32xbf16>
      %154 = arith.truncf %141 : vector<32x128xf32> to vector<32x128xbf16>
      %cst_64 = arith.constant dense<0.000000e+00> : vector<2x128xf32>
      %155 = tpu.matmul %153, %154, %cst_64 {dimension_numbers = #tpu.dot_dimension_numbers<[1], [0], [0], [1], [0, 0, 1, 1], [], []>} : vector<2x32xbf16>, vector<32x128xbf16>, vector<2x128xf32> -> vector<2x128xf32>
      %156 = arith.truncf %155 : vector<2x128xf32> to vector<2x128xbf16>
      %c0_65 = arith.constant 0 : index
      %c0_66 = arith.constant 0 : index
      %157 = vector.load %arg17[%c0_65, %c0_66] : memref<128x128xbf16, #tpu.memory_space<vmem>>, vector<128x128xbf16>
      %cst_67 = arith.constant dense<0.000000e+00> : vector<2x128xf32>
      %158 = tpu.matmul %156, %157, %cst_67 {dimension_numbers = #tpu.dot_dimension_numbers<[1], [0], [0], [1], [0, 0, 1, 1], [], []>} : vector<2x128xbf16>, vector<128x128xbf16>, vector<2x128xf32> -> vector<2x128xf32>
      %c0_68 = arith.constant 0 : index
      %c0_69 = arith.constant 0 : index
      %159 = vector.load %arg18[%c0_68, %c0_69] : memref<1x128xf32, #tpu.memory_space<vmem>>, vector<1x128xf32>
      %160 = vector.broadcast %159 : vector<1x128xf32> to vector<2x128xf32>
      %161 = arith.addf %158, %160 : vector<2x128xf32>
      %162 = math.tanh %161 : vector<2x128xf32>
      %163 = arith.truncf %162 : vector<2x128xf32> to vector<2x128xbf16>
      %c0_70 = arith.constant 0 : index
      %c0_71 = arith.constant 0 : index
      %164 = vector.load %arg19[%c0_70, %c0_71] : memref<128x512xbf16, #tpu.memory_space<vmem>>, vector<128x512xbf16>
      %cst_72 = arith.constant dense<0.000000e+00> : vector<2x512xf32>
      %165 = tpu.matmul %163, %164, %cst_72 {dimension_numbers = #tpu.dot_dimension_numbers<[1], [0], [0], [1], [0, 0, 1, 1], [], []>} : vector<2x128xbf16>, vector<128x512xbf16>, vector<2x512xf32> -> vector<2x512xf32>
      %c0_73 = arith.constant 0 : index
      %c0_74 = arith.constant 0 : index
      %166 = vector.load %arg20[%c0_73, %c0_74] : memref<1x512xf32, #tpu.memory_space<vmem>>, vector<1x512xf32>
      %167 = vector.broadcast %166 : vector<1x512xf32> to vector<2x512xf32>
      %168 = arith.addf %165, %167 : vector<2x512xf32>
      %cst_75 = arith.constant 0.000000e+00 : f32
      %169 = vector.broadcast %cst_75 : f32 to vector<2x512xf32>
      %170 = arith.maximumf %168, %169 : vector<2x512xf32>
      %171 = arith.truncf %170 : vector<2x512xf32> to vector<2x512xbf16>
      %c0_76 = arith.constant 0 : index
      %c0_77 = arith.constant 0 : index
      %172 = vector.load %arg21[%c0_76, %c0_77] : memref<512x16xbf16, #tpu.memory_space<vmem>>, vector<512x16xbf16>
      %cst_78 = arith.constant dense<0.000000e+00> : vector<2x16xf32>
      %173 = tpu.matmul %171, %172, %cst_78 {dimension_numbers = #tpu.dot_dimension_numbers<[1], [0], [0], [1], [0, 0, 1, 1], [], []>} : vector<2x512xbf16>, vector<512x16xbf16>, vector<2x16xf32> -> vector<2x16xf32>
      %c0_79 = arith.constant 0 : index
      %c0_80 = arith.constant 0 : index
      %174 = vector.load %arg22[%c0_79, %c0_80] : memref<1x16xf32, #tpu.memory_space<vmem>>, vector<1x16xf32>
      %175 = vector.broadcast %174 : vector<1x16xf32> to vector<2x16xf32>
      %176 = arith.addf %173, %175 : vector<2x16xf32>
      %c0_81 = arith.constant 0 : index
      %c0_82 = arith.constant 0 : index
      %177 = vector.load %arg23[%c0_81, %c0_82] : memref<2x16xf32, #tpu.memory_space<vmem>>, vector<2x16xf32>
      tpu.vector_store %arg23[%c0_81, %c0_82], %176 {strides = array<i32>} : memref<2x16xf32, #tpu.memory_space<vmem>>, vector<2x16xf32>,
    } else {
    }
    return
  }
  func.func @transform_0(%arg0: i32) -> (i32, i32) {
    %c0_i32 = arith.constant 0 : i32
    %c0_i32_0 = arith.constant 0 : i32
    %c0_i32_1 = arith.constant 0 : i32
    return %c0_i32, %c0_i32_0 : i32, i32
  }
  func.func @transform_1(%arg0: i32) -> (i32, i32) {
    %c0_i32 = arith.constant 0 : i32
    %c0_i32_0 = arith.constant 0 : i32
    %c0_i32_1 = arith.constant 0 : i32
    return %c0_i32, %c0_i32_0 : i32, i32
  }
  func.func @transform_2(%arg0: i32) -> (i32, i32) {
    %c0_i32 = arith.constant 0 : i32
    %c0_i32_0 = arith.constant 0 : i32
    %c0_i32_1 = arith.constant 0 : i32
    return %c0_i32, %c0_i32_0 : i32, i32
  }
  func.func @transform_3(%arg0: i32) -> (i32, i32) {
    %c0_i32 = arith.constant 0 : i32
    %c0_i32_0 = arith.constant 0 : i32
    %c0_i32_1 = arith.constant 0 : i32
    return %c0_i32, %c0_i32_0 : i32, i32
  }
  func.func @transform_4(%arg0: i32) -> (i32, i32, i32) {
    %c0_i32 = arith.constant 0 : i32
    %c0_i32_0 = arith.constant 0 : i32
    %c0_i32_1 = arith.constant 0 : i32
    return %arg0, %c0_i32, %c0_i32_0 : i32, i32, i32
  }
  func.func @transform_5(%arg0: i32) -> (i32, i32, i32) {
    %c0_i32 = arith.constant 0 : i32
    %c0_i32_0 = arith.constant 0 : i32
    %c0_i32_1 = arith.constant 0 : i32
    return %arg0, %c0_i32, %c0_i32_0 : i32, i32, i32
  }
  func.func @transform_6(%arg0: i32) -> (i32, i32, i32) {
    %c0_i32 = arith.constant 0 : i32
    %c0_i32_0 = arith.constant 0 : i32
    %c0_i32_1 = arith.constant 0 : i32
    return %arg0, %c0_i32, %c0_i32_0 : i32, i32, i32
  }
  func.func @transform_7(%arg0: i32) -> (i32, i32, i32) {
    %c0_i32 = arith.constant 0 : i32
    %c0_i32_0 = arith.constant 0 : i32
    %c0_i32_1 = arith.constant 0 : i32
    return %arg0, %c0_i32, %c0_i32_0 : i32, i32, i32
  }
  func.func @transform_8(%arg0: i32) -> (i32, i32, i32) {
    %c0_i32 = arith.constant 0 : i32
    %c0_i32_0 = arith.constant 0 : i32
    %c0_i32_1 = arith.constant 0 : i32
    return %arg0, %c0_i32, %c0_i32_0 : i32, i32, i32
  }
  func.func @transform_9(%arg0: i32) -> (i32, i32, i32) {
    %c0_i32 = arith.constant 0 : i32
    %c0_i32_0 = arith.constant 0 : i32
    %c0_i32_1 = arith.constant 0 : i32
    return %arg0, %c0_i32, %c0_i32_0 : i32, i32, i32
  }
  func.func @transform_10(%arg0: i32) -> (i32, i32, i32) {
    %c0_i32 = arith.constant 0 : i32
    %c0_i32_0 = arith.constant 0 : i32
    %c0_i32_1 = arith.constant 0 : i32
    return %arg0, %c0_i32, %c0_i32_0 : i32, i32, i32
  }
  func.func @transform_11(%arg0: i32) -> (i32, i32, i32) {
    %c0_i32 = arith.constant 0 : i32
    %c0_i32_0 = arith.constant 0 : i32
    %c0_i32_1 = arith.constant 0 : i32
    return %arg0, %c0_i32, %c0_i32_0 : i32, i32, i32
  }
  func.func @transform_12(%arg0: i32) -> (i32, i32, i32) {
    %c0_i32 = arith.constant 0 : i32
    %c0_i32_0 = arith.constant 0 : i32
    %c0_i32_1 = arith.constant 0 : i32
    return %arg0, %c0_i32, %c0_i32_0 : i32, i32, i32
  }
  func.func @transform_13(%arg0: i32) -> (i32, i32, i32) {
    %c0_i32 = arith.constant 0 : i32
    %c0_i32_0 = arith.constant 0 : i32
    %c0_i32_1 = arith.constant 0 : i32
    return %arg0, %c0_i32, %c0_i32_0 : i32, i32, i32
  }
  func.func @transform_14(%arg0: i32) -> (i32, i32, i32) {
    %c0_i32 = arith.constant 0 : i32
    %c0_i32_0 = arith.constant 0 : i32
    %c0_i32_1 = arith.constant 0 : i32
    return %arg0, %c0_i32, %c0_i32_0 : i32, i32, i32
  }
  func.func @transform_15(%arg0: i32) -> (i32, i32, i32) {
    %c0_i32 = arith.constant 0 : i32
    %c0_i32_0 = arith.constant 0 : i32
    %c0_i32_1 = arith.constant 0 : i32
    return %arg0, %c0_i32, %c0_i32_0 : i32, i32, i32
  }
  func.func @transform_16(%arg0: i32) -> (i32, i32) {
    %c0_i32 = arith.constant 0 : i32
    %c0_i32_0 = arith.constant 0 : i32
    %c0_i32_1 = arith.constant 0 : i32
    return %c0_i32, %c0_i32_0 : i32, i32
  }
  func.func @transform_17(%arg0: i32) -> (i32, i32) {
    %c0_i32 = arith.constant 0 : i32
    %c0_i32_0 = arith.constant 0 : i32
    %c0_i32_1 = arith.constant 0 : i32
    return %c0_i32, %c0_i32_0 : i32, i32
  }
  func.func @transform_18(%arg0: i32) -> (i32, i32) {
    %c0_i32 = arith.constant 0 : i32
    %c0_i32_0 = arith.constant 0 : i32
    %c0_i32_1 = arith.constant 0 : i32
    return %c0_i32, %c0_i32_0 : i32, i32
  }
  func.func @transform_19(%arg0: i32) -> (i32, i32) {
    %c0_i32 = arith.constant 0 : i32
    %c0_i32_0 = arith.constant 0 : i32
    %c0_i32_1 = arith.constant 0 : i32
    return %c0_i32, %c0_i32_0 : i32, i32
  }
  func.func @transform_20(%arg0: i32) -> (i32, i32) {
    %c0_i32 = arith.constant 0 : i32
    %c0_i32_0 = arith.constant 0 : i32
    %c0_i32_1 = arith.constant 0 : i32
    return %c0_i32, %c0_i32_0 : i32, i32
  }
  func.func @transform_21(%arg0: i32) -> (i32, i32) {
    %c0_i32 = arith.constant 0 : i32
    %c0_i32_0 = arith.constant 0 : i32
    %c0_i32_1 = arith.constant 0 : i32
    return %c0_i32, %c0_i32_0 : i32, i32
  }
  func.func @transform_22(%arg0: i32) -> (i32, i32) {
    %c0_i32 = arith.constant 0 : i32
    %c0_i32_0 = arith.constant 0 : i32
    %c0_i32_1 = arith.constant 0 : i32
    return %c0_i32, %c0_i32_0 : i32, i32
  }
}

</mosaic_0001>

<llo_original>
// kernel: bert_tag_recommender_forward.1
$region0: #{bert_tag_recommender_forward.1}
  #allocation0 [shape = 'u32[]', space=smem, size = 0x4, offset = 0x4, fixed_abs, tag = 'smem constant byte address 0x4 - core index']
  #allocation1 [shape = 'u32[144,128]{1,0:T(1,128)}', space=vmem, size = 0x12000, scoped, tag = 'internal scratch']
  #allocation2 [shape = 'f32[32,128]{1,0:T(8,128)}', space=vmem, size = 0x4000, scoped, tag = 'scratch operand']
  %s0 = inlined_call_operand.vmem [shape: f32[32,128], index: 0, kind: input, shape index: {}]
  %s1 = inlined_call_operand.vmem [shape: f32[128,128], index: 1, kind: input, shape index: {}]
  %s2 = inlined_call_operand.vmem [shape: f32[1,128], index: 2, kind: input, shape index: {}]
  %s3 = inlined_call_operand.vmem [shape: f32[1,128], index: 3, kind: input, shape index: {}]
  %s4 = inlined_call_operand.vmem [shape: bf16[2,128,384], index: 4, kind: input, shape index: {}]
  %s5 = inlined_call_operand.vmem [shape: f32[2,1,384], index: 5, kind: input, shape index: {}]
  %s6 = inlined_call_operand.vmem [shape: bf16[2,128,128], index: 6, kind: input, shape index: {}]
  %s7 = inlined_call_operand.vmem [shape: f32[2,1,128], index: 7, kind: input, shape index: {}]
  %s8 = inlined_call_operand.vmem [shape: f32[2,1,128], index: 8, kind: input, shape index: {}]
  %s9 = inlined_call_operand.vmem [shape: f32[2,1,128], index: 9, kind: input, shape index: {}]
  %s10 = inlined_call_operand.vmem [shape: bf16[2,128,256], index: 10, kind: input, shape index: {}]
  %s11 = inlined_call_operand.vmem [shape: f32[2,1,256], index: 11, kind: input, shape index: {}]
  %s12 = inlined_call_operand.vmem [shape: bf16[2,256,128], index: 12, kind: input, shape index: {}]
  %s13 = inlined_call_operand.vmem [shape: f32[2,1,128], index: 13, kind: input, shape index: {}]
  %s14 = inlined_call_operand.vmem [shape: f32[2,1,128], index: 14, kind: input, shape index: {}]
  %s15 = inlined_call_operand.vmem [shape: f32[2,1,128], index: 15, kind: input, shape index: {}]
  %s16 = inlined_call_operand.vmem [shape: bf16[128,128], index: 16, kind: input, shape index: {}]
  %s17 = inlined_call_operand.vmem [shape: f32[1,128], index: 17, kind: input, shape index: {}]
  %s18 = inlined_call_operand.vmem [shape: bf16[128,512], index: 18, kind: input, shape index: {}]
  %s19 = inlined_call_operand.vmem [shape: f32[1,512], index: 19, kind: input, shape index: {}]
  %s20 = inlined_call_operand.vmem [shape: bf16[512,16], index: 20, kind: input, shape index: {}]
  %s21 = inlined_call_operand.vmem [shape: f32[1,16], index: 21, kind: input, shape index: {}]
  %s22 = inlined_call_operand.hbm [shape: f32[2,16], index: 22, kind: output, shape index: {}]
  %s23 = sld [smem:[#allocation0]]
  $region129: #{bert_tag_recommender_forward.1} parent=0
    _
  %s25 = ssub.s32 1, %s23
  %s26 = scalar_select 0, %s25, %s23
  $region1: #{bert_tag_recommender_forward.1} parent=0
    #allocation3 [shape = 'u8[1024]{0}', space=vmem, size = 0x400, scoped, tag = 'output window, operand 0, single buffered']
    #allocation4 [shape = 's32[2]{0}', space=sflag, size = 0x8, scoped, tag = 'scoped memory for bert_tag_recommender_forward.1']
    %27 = vsyncpa [#allocation4], 0
    loop: start=0, step=1, limit=4
    $region2: #{bert_tag_recommender_forward.1} parent=1 // loop_pre_header
      _
    $region3: #{bert_tag_recommender_forward.1} parent=1 // loop_header
      %s29 = sphi 0, %s33
      %p30 = scmp.ge.s32.totalorder %s29, 4
      %s37 = sphi 0, %s37
      %s39 = sphi 0, %s37
      %s40 = sphi 0, %s39
      %s54 = sphi 0, %s40
      %s58 = sphi 0, %s58
      %s60 = sphi 0, %s58
      %s61 = sphi 0, %s60
      %s75 = sphi 0, %s61
      %s79 = sphi 0, %s79
      %s81 = sphi 0, %s79
      %s82 = sphi 0, %s81
      %s96 = sphi 0, %s82
      %s100 = sphi 0, %s100
      %s102 = sphi 0, %s100
      %s103 = sphi 0, %s102
      %s117 = sphi 0, %s103
      %s123 = sphi 0, %s125
      %s126 = sphi 0, %s123
      %s127 = sphi 0, %s126
      %s143 = sphi 0, %s127
      %s149 = sphi 0, %s151
      %s152 = sphi 0, %s149
      %s153 = sphi 0, %s152
      %s169 = sphi 0, %s153
      %s175 = sphi 0, %s177
      %s178 = sphi 0, %s175
      %s179 = sphi 0, %s178
      %s195 = sphi 0, %s179
      %s201 = sphi 0, %s203
      %s204 = sphi 0, %s201
      %s205 = sphi 0, %s204
      %s221 = sphi 0, %s205
      %s227 = sphi 0, %s229
      %s230 = sphi 0, %s227
      %s231 = sphi 0, %s230
      %s247 = sphi 0, %s231
      %s253 = sphi 0, %s255
      %s256 = sphi 0, %s253
      %s257 = sphi 0, %s256
      %s273 = sphi 0, %s257
      %s279 = sphi 0, %s281
      %s282 = sphi 0, %s279
      %s283 = sphi 0, %s282
      %s299 = sphi 0, %s283
      %s305 = sphi 0, %s307
      %s308 = sphi 0, %s305
      %s309 = sphi 0, %s308
      %s325 = sphi 0, %s309
      %s331 = sphi 0, %s333
      %s334 = sphi 0, %s331
      %s335 = sphi 0, %s334
      %s351 = sphi 0, %s335
      %s357 = sphi 0, %s359
      %s360 = sphi 0, %s357
      %s361 = sphi 0, %s360
      %s377 = sphi 0, %s361
      %s383 = sphi 0, %s385
      %s386 = sphi 0, %s383
      %s387 = sphi 0, %s386
      %s403 = sphi 0, %s387
      %s409 = sphi 0, %s411
      %s412 = sphi 0, %s409
      %s413 = sphi 0, %s412
      %s429 = sphi 0, %s413
      %s433 = sphi 0, %s433
      %s435 = sphi 0, %s433
      %s436 = sphi 0, %s435
      %s450 = sphi 0, %s436
      %s454 = sphi 0, %s454
      %s456 = sphi 0, %s454
      %s457 = sphi 0, %s456
      %s471 = sphi 0, %s457
      %s475 = sphi 0, %s475
      %s477 = sphi 0, %s475
      %s478 = sphi 0, %s477
      %s492 = sphi 0, %s478
      %s496 = sphi 0, %s496
      %s498 = sphi 0, %s496
      %s499 = sphi 0, %s498
      %s513 = sphi 0, %s499
      %s517 = sphi 0, %s517
      %s519 = sphi 0, %s517
      %s520 = sphi 0, %s519
      %s534 = sphi 0, %s520
      %s538 = sphi 0, %s538
      %s540 = sphi 0, %s538
      %s541 = sphi 0, %s540
      %s555 = sphi 0, %s541
      %s559 = sphi 0, %s559
      %s561 = sphi 0, %s559
      %s562 = sphi 0, %s561
      %s576 = sphi 0, %s562
    $region4: #{bert_tag_recommender_forward.1} parent=1 // loop_header_branch
      %32 = sbr.rel (%p30) target = $region8
    $region5: #{bert_tag_recommender_forward.1} parent=1 // loop_body
      %s34 = ssub.s32 %s29, 1
      %s35 = ssub.s32 %s29, 2
      %s36 = sadd.s32 %s29, 1
      %s38 = sadd.s32 %s37, 1
      %p41 = scmp.eq.s32.totalorder %s29, 1
      %p42 = scmp.ne.s32.totalorder %s37, %s39
      %p43 = scmp.eq.s32.totalorder %s29, 0
      %p44 = por %p42, %p43
      %p45 = scmp.ne.s32.totalorder %s37, %s39
      %p46 = scmp.eq.s32.totalorder %s34, 1
      %p47 = por %p45, %p46
      %p48 = scmp.ne.s32.totalorder %s39, %s40
      %p49 = scmp.eq.s32.totalorder %s34, 0
      %p50 = por %p48, %p49
      %p51 = scmp.ne.s32.totalorder %s39, %s40
      %p52 = scmp.eq.s32.totalorder %s35, 1
      %p53 = por %p51, %p52
      %p55 = scmp.ne.s32.totalorder %s40, %s54
      %p56 = scmp.eq.s32.totalorder %s35, 0
      %p57 = por %p55, %p56
      %s59 = sadd.s32 %s58, 1
      %p62 = scmp.eq.s32.totalorder %s29, 1
      %p63 = scmp.ne.s32.totalorder %s58, %s60
      %p64 = scmp.eq.s32.totalorder %s29, 0
      %p65 = por %p63, %p64
      %p66 = scmp.ne.s32.totalorder %s58, %s60
      %p67 = scmp.eq.s32.totalorder %s34, 1
      %p68 = por %p66, %p67
      %p69 = scmp.ne.s32.totalorder %s60, %s61
      %p70 = scmp.eq.s32.totalorder %s34, 0
      %p71 = por %p69, %p70
      %p72 = scmp.ne.s32.totalorder %s60, %s61
      %p73 = scmp.eq.s32.totalorder %s35, 1
      %p74 = por %p72, %p73
      %p76 = scmp.ne.s32.totalorder %s61, %s75
      %p77 = scmp.eq.s32.totalorder %s35, 0
      %p78 = por %p76, %p77
      %s80 = sadd.s32 %s79, 1
      %p83 = scmp.eq.s32.totalorder %s29, 1
      %p84 = scmp.ne.s32.totalorder %s79, %s81
      %p85 = scmp.eq.s32.totalorder %s29, 0
      %p86 = por %p84, %p85
      %p87 = scmp.ne.s32.totalorder %s79, %s81
      %p88 = scmp.eq.s32.totalorder %s34, 1
      %p89 = por %p87, %p88
      %p90 = scmp.ne.s32.totalorder %s81, %s82
      %p91 = scmp.eq.s32.totalorder %s34, 0
      %p92 = por %p90, %p91
      %p93 = scmp.ne.s32.totalorder %s81, %s82
      %p94 = scmp.eq.s32.totalorder %s35, 1
      %p95 = por %p93, %p94
      %p97 = scmp.ne.s32.totalorder %s82, %s96
      %p98 = scmp.eq.s32.totalorder %s35, 0
      %p99 = por %p97, %p98
      %s101 = sadd.s32 %s100, 1
      %p104 = scmp.eq.s32.totalorder %s29, 1
      %p105 = scmp.ne.s32.totalorder %s100, %s102
      %p106 = scmp.eq.s32.totalorder %s29, 0
      %p107 = por %p105, %p106
      %p108 = scmp.ne.s32.totalorder %s100, %s102
      %p109 = scmp.eq.s32.totalorder %s34, 1
      %p110 = por %p108, %p109
      %p111 = scmp.ne.s32.totalorder %s102, %s103
      %p112 = scmp.eq.s32.totalorder %s34, 0
      %p113 = por %p111, %p112
      %p114 = scmp.ne.s32.totalorder %s102, %s103
      %p115 = scmp.eq.s32.totalorder %s35, 1
      %p116 = por %p114, %p115
      %p118 = scmp.ne.s32.totalorder %s103, %s117
      %p119 = scmp.eq.s32.totalorder %s35, 0
      %p120 = por %p118, %p119
      %s121 = ssub.s32 %s29, %s36
      %p122 = scmp.eq.s32.totalorder %s121, 0
      %s124 = sadd.s32 %s123, 1
      %s125 = scalar_select %p122, %s123, %s124
      %p128 = pneg %p122
      %p129 = scmp.eq.s32.totalorder %s29, 1
      %p130 = por %p128, %p129
      %p131 = scmp.ne.s32.totalorder %s123, %s126
      %p132 = scmp.eq.s32.totalorder %s29, 0
      %p133 = por %p131, %p132
      %p134 = scmp.ne.s32.totalorder %s123, %s126
      %p135 = scmp.eq.s32.totalorder %s34, 1
      %p136 = por %p134, %p135
      %p137 = scmp.ne.s32.totalorder %s126, %s127
      %p138 = scmp.eq.s32.totalorder %s34, 0
      %p139 = por %p137, %p138
      %p140 = scmp.ne.s32.totalorder %s126, %s127
      %p141 = scmp.eq.s32.totalorder %s35, 1
      %p142 = por %p140, %p141
      %p144 = scmp.ne.s32.totalorder %s127, %s143
      %p145 = scmp.eq.s32.totalorder %s35, 0
      %p146 = por %p144, %p145
      %s147 = ssub.s32 %s29, %s36
      %p148 = scmp.eq.s32.totalorder %s147, 0
      %s150 = sadd.s32 %s149, 1
      %s151 = scalar_select %p148, %s149, %s150
      %p154 = pneg %p148
      %p155 = scmp.eq.s32.totalorder %s29, 1
      %p156 = por %p154, %p155
      %p157 = scmp.ne.s32.totalorder %s149, %s152
      %p158 = scmp.eq.s32.totalorder %s29, 0
      %p159 = por %p157, %p158
      %p160 = scmp.ne.s32.totalorder %s149, %s152
      %p161 = scmp.eq.s32.totalorder %s34, 1
      %p162 = por %p160, %p161
      %p163 = scmp.ne.s32.totalorder %s152, %s153
      %p164 = scmp.eq.s32.totalorder %s34, 0
      %p165 = por %p163, %p164
      %p166 = scmp.ne.s32.totalorder %s152, %s153
      %p167 = scmp.eq.s32.totalorder %s35, 1
      %p168 = por %p166, %p167
      %p170 = scmp.ne.s32.totalorder %s153, %s169
      %p171 = scmp.eq.s32.totalorder %s35, 0
      %p172 = por %p170, %p171
      %s173 = ssub.s32 %s29, %s36
      %p174 = scmp.eq.s32.totalorder %s173, 0
      %s176 = sadd.s32 %s175, 1
      %s177 = scalar_select %p174, %s175, %s176
      %p180 = pneg %p174
      %p181 = scmp.eq.s32.totalorder %s29, 1
      %p182 = por %p180, %p181
      %p183 = scmp.ne.s32.totalorder %s175, %s178
      %p184 = scmp.eq.s32.totalorder %s29, 0
      %p185 = por %p183, %p184
      %p186 = scmp.ne.s32.totalorder %s175, %s178
      %p187 = scmp.eq.s32.totalorder %s34, 1
      %p188 = por %p186, %p187
      %p189 = scmp.ne.s32.totalorder %s178, %s179
      %p190 = scmp.eq.s32.totalorder %s34, 0
      %p191 = por %p189, %p190
      %p192 = scmp.ne.s32.totalorder %s178, %s179
      %p193 = scmp.eq.s32.totalorder %s35, 1
      %p194 = por %p192, %p193
      %p196 = scmp.ne.s32.totalorder %s179, %s195
      %p197 = scmp.eq.s32.totalorder %s35, 0
      %p198 = por %p196, %p197
      %s199 = ssub.s32 %s29, %s36
      %p200 = scmp.eq.s32.totalorder %s199, 0
      %s202 = sadd.s32 %s201, 1
      %s203 = scalar_select %p200, %s201, %s202
      %p206 = pneg %p200
      %p207 = scmp.eq.s32.totalorder %s29, 1
      %p208 = por %p206, %p207
      %p209 = scmp.ne.s32.totalorder %s201, %s204
      %p210 = scmp.eq.s32.totalorder %s29, 0
      %p211 = por %p209, %p210
      %p212 = scmp.ne.s32.totalorder %s201, %s204
      %p213 = scmp.eq.s32.totalorder %s34, 1
      %p214 = por %p212, %p213
      %p215 = scmp.ne.s32.totalorder %s204, %s205
      %p216 = scmp.eq.s32.totalorder %s34, 0
      %p217 = por %p215, %p216
      %p218 = scmp.ne.s32.totalorder %s204, %s205
      %p219 = scmp.eq.s32.totalorder %s35, 1
      %p220 = por %p218, %p219
      %p222 = scmp.ne.s32.totalorder %s205, %s221
      %p223 = scmp.eq.s32.totalorder %s35, 0
      %p224 = por %p222, %p223
      %s225 = ssub.s32 %s29, %s36
      %p226 = scmp.eq.s32.totalorder %s225, 0
      %s228 = sadd.s32 %s227, 1
      %s229 = scalar_select %p226, %s227, %s228
      %p232 = pneg %p226
      %p233 = scmp.eq.s32.totalorder %s29, 1
      %p234 = por %p232, %p233
      %p235 = scmp.ne.s32.totalorder %s227, %s230
      %p236 = scmp.eq.s32.totalorder %s29, 0
      %p237 = por %p235, %p236
      %p238 = scmp.ne.s32.totalorder %s227, %s230
      %p239 = scmp.eq.s32.totalorder %s34, 1
      %p240 = por %p238, %p239
      %p241 = scmp.ne.s32.totalorder %s230, %s231
      %p242 = scmp.eq.s32.totalorder %s34, 0
      %p243 = por %p241, %p242
      %p244 = scmp.ne.s32.totalorder %s230, %s231
      %p245 = scmp.eq.s32.totalorder %s35, 1
      %p246 = por %p244, %p245
      %p248 = scmp.ne.s32.totalorder %s231, %s247
      %p249 = scmp.eq.s32.totalorder %s35, 0
      %p250 = por %p248, %p249
      %s251 = ssub.s32 %s29, %s36
      %p252 = scmp.eq.s32.totalorder %s251, 0
      %s254 = sadd.s32 %s253, 1
      %s255 = scalar_select %p252, %s253, %s254
      %p258 = pneg %p252
      %p259 = scmp.eq.s32.totalorder %s29, 1
      %p260 = por %p258, %p259
      %p261 = scmp.ne.s32.totalorder %s253, %s256
      %p262 = scmp.eq.s32.totalorder %s29, 0
      %p263 = por %p261, %p262
      %p264 = scmp.ne.s32.totalorder %s253, %s256
      %p265 = scmp.eq.s32.totalorder %s34, 1
      %p266 = por %p264, %p265
      %p267 = scmp.ne.s32.totalorder %s256, %s257
      %p268 = scmp.eq.s32.totalorder %s34, 0
      %p269 = por %p267, %p268
      %p270 = scmp.ne.s32.totalorder %s256, %s257
      %p271 = scmp.eq.s32.totalorder %s35, 1
      %p272 = por %p270, %p271
      %p274 = scmp.ne.s32.totalorder %s257, %s273
      %p275 = scmp.eq.s32.totalorder %s35, 0
      %p276 = por %p274, %p275
      %s277 = ssub.s32 %s29, %s36
      %p278 = scmp.eq.s32.totalorder %s277, 0
      %s280 = sadd.s32 %s279, 1
      %s281 = scalar_select %p278, %s279, %s280
      %p284 = pneg %p278
      %p285 = scmp.eq.s32.totalorder %s29, 1
      %p286 = por %p284, %p285
      %p287 = scmp.ne.s32.totalorder %s279, %s282
      %p288 = scmp.eq.s32.totalorder %s29, 0
      %p289 = por %p287, %p288
      %p290 = scmp.ne.s32.totalorder %s279, %s282
      %p291 = scmp.eq.s32.totalorder %s34, 1
      %p292 = por %p290, %p291
      %p293 = scmp.ne.s32.totalorder %s282, %s283
      %p294 = scmp.eq.s32.totalorder %s34, 0
      %p295 = por %p293, %p294
      %p296 = scmp.ne.s32.totalorder %s282, %s283
      %p297 = scmp.eq.s32.totalorder %s35, 1
      %p298 = por %p296, %p297
      %p300 = scmp.ne.s32.totalorder %s283, %s299
      %p301 = scmp.eq.s32.totalorder %s35, 0
      %p302 = por %p300, %p301
      %s303 = ssub.s32 %s29, %s36
      %p304 = scmp.eq.s32.totalorder %s303, 0
      %s306 = sadd.s32 %s305, 1
      %s307 = scalar_select %p304, %s305, %s306
      %p310 = pneg %p304
      %p311 = scmp.eq.s32.totalorder %s29, 1
      %p312 = por %p310, %p311
      %p313 = scmp.ne.s32.totalorder %s305, %s308
      %p314 = scmp.eq.s32.totalorder %s29, 0
      %p315 = por %p313, %p314
      %p316 = scmp.ne.s32.totalorder %s305, %s308
      %p317 = scmp.eq.s32.totalorder %s34, 1
      %p318 = por %p316, %p317
      %p319 = scmp.ne.s32.totalorder %s308, %s309
      %p320 = scmp.eq.s32.totalorder %s34, 0
      %p321 = por %p319, %p320
      %p322 = scmp.ne.s32.totalorder %s308, %s309
      %p323 = scmp.eq.s32.totalorder %s35, 1
      %p324 = por %p322, %p323
      %p326 = scmp.ne.s32.totalorder %s309, %s325
      %p327 = scmp.eq.s32.totalorder %s35, 0
      %p328 = por %p326, %p327
      %s329 = ssub.s32 %s29, %s36
      %p330 = scmp.eq.s32.totalorder %s329, 0
      %s332 = sadd.s32 %s331, 1
      %s333 = scalar_select %p330, %s331, %s332
      %p336 = pneg %p330
      %p337 = scmp.eq.s32.totalorder %s29, 1
      %p338 = por %p336, %p337
      %p339 = scmp.ne.s32.totalorder %s331, %s334
      %p340 = scmp.eq.s32.totalorder %s29, 0
      %p341 = por %p339, %p340
      %p342 = scmp.ne.s32.totalorder %s331, %s334
      %p343 = scmp.eq.s32.totalorder %s34, 1
      %p344 = por %p342, %p343
      %p345 = scmp.ne.s32.totalorder %s334, %s335
      %p346 = scmp.eq.s32.totalorder %s34, 0
      %p347 = por %p345, %p346
      %p348 = scmp.ne.s32.totalorder %s334, %s335
      %p349 = scmp.eq.s32.totalorder %s35, 1
      %p350 = por %p348, %p349
      %p352 = scmp.ne.s32.totalorder %s335, %s351
      %p353 = scmp.eq.s32.totalorder %s35, 0
      %p354 = por %p352, %p353
      %s355 = ssub.s32 %s29, %s36
      %p356 = scmp.eq.s32.totalorder %s355, 0
      %s358 = sadd.s32 %s357, 1
      %s359 = scalar_select %p356, %s357, %s358
      %p362 = pneg %p356
      %p363 = scmp.eq.s32.totalorder %s29, 1
      %p364 = por %p362, %p363
      %p365 = scmp.ne.s32.totalorder %s357, %s360
      %p366 = scmp.eq.s32.totalorder %s29, 0
      %p367 = por %p365, %p366
      %p368 = scmp.ne.s32.totalorder %s357, %s360
      %p369 = scmp.eq.s32.totalorder %s34, 1
      %p370 = por %p368, %p369
      %p371 = scmp.ne.s32.totalorder %s360, %s361
      %p372 = scmp.eq.s32.totalorder %s34, 0
      %p373 = por %p371, %p372
      %p374 = scmp.ne.s32.totalorder %s360, %s361
      %p375 = scmp.eq.s32.totalorder %s35, 1
      %p376 = por %p374, %p375
      %p378 = scmp.ne.s32.totalorder %s361, %s377
      %p379 = scmp.eq.s32.totalorder %s35, 0
      %p380 = por %p378, %p379
      %s381 = ssub.s32 %s29, %s36
      %p382 = scmp.eq.s32.totalorder %s381, 0
      %s384 = sadd.s32 %s383, 1
      %s385 = scalar_select %p382, %s383, %s384
      %p388 = pneg %p382
      %p389 = scmp.eq.s32.totalorder %s29, 1
      %p390 = por %p388, %p389
      %p391 = scmp.ne.s32.totalorder %s383, %s386
      %p392 = scmp.eq.s32.totalorder %s29, 0
      %p393 = por %p391, %p392
      %p394 = scmp.ne.s32.totalorder %s383, %s386
      %p395 = scmp.eq.s32.totalorder %s34, 1
      %p396 = por %p394, %p395
      %p397 = scmp.ne.s32.totalorder %s386, %s387
      %p398 = scmp.eq.s32.totalorder %s34, 0
      %p399 = por %p397, %p398
      %p400 = scmp.ne.s32.totalorder %s386, %s387
      %p401 = scmp.eq.s32.totalorder %s35, 1
      %p402 = por %p400, %p401
      %p404 = scmp.ne.s32.totalorder %s387, %s403
      %p405 = scmp.eq.s32.totalorder %s35, 0
      %p406 = por %p404, %p405
      %s407 = ssub.s32 %s29, %s36
      %p408 = scmp.eq.s32.totalorder %s407, 0
      %s410 = sadd.s32 %s409, 1
      %s411 = scalar_select %p408, %s409, %s410
      %p414 = pneg %p408
      %p415 = scmp.eq.s32.totalorder %s29, 1
      %p416 = por %p414, %p415
      %p417 = scmp.ne.s32.totalorder %s409, %s412
      %p418 = scmp.eq.s32.totalorder %s29, 0
      %p419 = por %p417, %p418
      %p420 = scmp.ne.s32.totalorder %s409, %s412
      %p421 = scmp.eq.s32.totalorder %s34, 1
      %p422 = por %p420, %p421
      %p423 = scmp.ne.s32.totalorder %s412, %s413
      %p424 = scmp.eq.s32.totalorder %s34, 0
      %p425 = por %p423, %p424
      %p426 = scmp.ne.s32.totalorder %s412, %s413
      %p427 = scmp.eq.s32.totalorder %s35, 1
      %p428 = por %p426, %p427
      %p430 = scmp.ne.s32.totalorder %s413, %s429
      %p431 = scmp.eq.s32.totalorder %s35, 0
      %p432 = por %p430, %p431
      %s434 = sadd.s32 %s433, 1
      %p437 = scmp.eq.s32.totalorder %s29, 1
      %p438 = scmp.ne.s32.totalorder %s433, %s435
      %p439 = scmp.eq.s32.totalorder %s29, 0
      %p440 = por %p438, %p439
      %p441 = scmp.ne.s32.totalorder %s433, %s435
      %p442 = scmp.eq.s32.totalorder %s34, 1
      %p443 = por %p441, %p442
      %p444 = scmp.ne.s32.totalorder %s435, %s436
      %p445 = scmp.eq.s32.totalorder %s34, 0
      %p446 = por %p444, %p445
      %p447 = scmp.ne.s32.totalorder %s435, %s436
      %p448 = scmp.eq.s32.totalorder %s35, 1
      %p449 = por %p447, %p448
      %p451 = scmp.ne.s32.totalorder %s436, %s450
      %p452 = scmp.eq.s32.totalorder %s35, 0
      %p453 = por %p451, %p452
      %s455 = sadd.s32 %s454, 1
      %p458 = scmp.eq.s32.totalorder %s29, 1
      %p459 = scmp.ne.s32.totalorder %s454, %s456
      %p460 = scmp.eq.s32.totalorder %s29, 0
      %p461 = por %p459, %p460
      %p462 = scmp.ne.s32.totalorder %s454, %s456
      %p463 = scmp.eq.s32.totalorder %s34, 1
      %p464 = por %p462, %p463
      %p465 = scmp.ne.s32.totalorder %s456, %s457
      %p466 = scmp.eq.s32.totalorder %s34, 0
      %p467 = por %p465, %p466
      %p468 = scmp.ne.s32.totalorder %s456, %s457
      %p469 = scmp.eq.s32.totalorder %s35, 1
      %p470 = por %p468, %p469
      %p472 = scmp.ne.s32.totalorder %s457, %s471
      %p473 = scmp.eq.s32.totalorder %s35, 0
      %p474 = por %p472, %p473
      %s476 = sadd.s32 %s475, 1
      %p479 = scmp.eq.s32.totalorder %s29, 1
      %p480 = scmp.ne.s32.totalorder %s475, %s477
      %p481 = scmp.eq.s32.totalorder %s29, 0
      %p482 = por %p480, %p481
      %p483 = scmp.ne.s32.totalorder %s475, %s477
      %p484 = scmp.eq.s32.totalorder %s34, 1
      %p485 = por %p483, %p484
      %p486 = scmp.ne.s32.totalorder %s477, %s478
      %p487 = scmp.eq.s32.totalorder %s34, 0
      %p488 = por %p486, %p487
      %p489 = scmp.ne.s32.totalorder %s477, %s478
      %p490 = scmp.eq.s32.totalorder %s35, 1
      %p491 = por %p489, %p490
      %p493 = scmp.ne.s32.totalorder %s478, %s492
      %p494 = scmp.eq.s32.totalorder %s35, 0
      %p495 = por %p493, %p494
      %s497 = sadd.s32 %s496, 1
      %p500 = scmp.eq.s32.totalorder %s29, 1
      %p501 = scmp.ne.s32.totalorder %s496, %s498
      %p502 = scmp.eq.s32.totalorder %s29, 0
      %p503 = por %p501, %p502
      %p504 = scmp.ne.s32.totalorder %s496, %s498
      %p505 = scmp.eq.s32.totalorder %s34, 1
      %p506 = por %p504, %p505
      %p507 = scmp.ne.s32.totalorder %s498, %s499
      %p508 = scmp.eq.s32.totalorder %s34, 0
      %p509 = por %p507, %p508
      %p510 = scmp.ne.s32.totalorder %s498, %s499
      %p511 = scmp.eq.s32.totalorder %s35, 1
      %p512 = por %p510, %p511
      %p514 = scmp.ne.s32.totalorder %s499, %s513
      %p515 = scmp.eq.s32.totalorder %s35, 0
      %p516 = por %p514, %p515
      %s518 = sadd.s32 %s517, 1
      %p521 = scmp.eq.s32.totalorder %s29, 1
      %p522 = scmp.ne.s32.totalorder %s517, %s519
      %p523 = scmp.eq.s32.totalorder %s29, 0
      %p524 = por %p522, %p523
      %p525 = scmp.ne.s32.totalorder %s517, %s519
      %p526 = scmp.eq.s32.totalorder %s34, 1
      %p527 = por %p525, %p526
      %p528 = scmp.ne.s32.totalorder %s519, %s520
      %p529 = scmp.eq.s32.totalorder %s34, 0
      %p530 = por %p528, %p529
      %p531 = scmp.ne.s32.totalorder %s519, %s520
      %p532 = scmp.eq.s32.totalorder %s35, 1
      %p533 = por %p531, %p532
      %p535 = scmp.ne.s32.totalorder %s520, %s534
      %p536 = scmp.eq.s32.totalorder %s35, 0
      %p537 = por %p535, %p536
      %s539 = sadd.s32 %s538, 1
      %p542 = scmp.eq.s32.totalorder %s29, 1
      %p543 = scmp.ne.s32.totalorder %s538, %s540
      %p544 = scmp.eq.s32.totalorder %s29, 0
      %p545 = por %p543, %p544
      %p546 = scmp.ne.s32.totalorder %s538, %s540
      %p547 = scmp.eq.s32.totalorder %s34, 1
      %p548 = por %p546, %p547
      %p549 = scmp.ne.s32.totalorder %s540, %s541
      %p550 = scmp.eq.s32.totalorder %s34, 0
      %p551 = por %p549, %p550
      %p552 = scmp.ne.s32.totalorder %s540, %s541
      %p553 = scmp.eq.s32.totalorder %s35, 1
      %p554 = por %p552, %p553
      %p556 = scmp.ne.s32.totalorder %s541, %s555
      %p557 = scmp.eq.s32.totalorder %s35, 0
      %p558 = por %p556, %p557
      %s560 = sadd.s32 %s559, 1
      %p563 = scmp.eq.s32.totalorder %s29, 1
      %p564 = scmp.ne.s32.totalorder %s559, %s561
      %p565 = scmp.eq.s32.totalorder %s29, 0
      %p566 = por %p564, %p565
      %p567 = scmp.ne.s32.totalorder %s559, %s561
      %p568 = scmp.eq.s32.totalorder %s34, 1
      %p569 = por %p567, %p568
      %p570 = scmp.ne.s32.totalorder %s561, %s562
      %p571 = scmp.eq.s32.totalorder %s34, 0
      %p572 = por %p570, %p571
      %p573 = scmp.ne.s32.totalorder %s561, %s562
      %p574 = scmp.eq.s32.totalorder %s35, 1
      %p575 = por %p573, %p574
      %p577 = scmp.ne.s32.totalorder %s562, %s576
      %p578 = scmp.eq.s32.totalorder %s35, 0
      %p579 = por %p577, %p578
      %p580 = scmp.le.s32.totalorder 1, %s29
      %p581 = scmp.lt.s32.totalorder %s29, 3
      %p582 = pnand %p580, %p581
      %p583 = pneg %p582
      // Predicated region
      $region9: #{bert_tag_recommender_forward.1} parent=5 // pred_check
        _
      $region10: #{bert_tag_recommender_forward.1} parent=5 // pred_check_branch
        %585 = sbr.rel (%p582) target = $region12
      $region11: #{bert_tag_recommender_forward.1} parent=5 // pred_region
        %s586 = ssub.s32 %s29, 1
        // Predicated region
        $region13: #{bert_tag_recommender_forward.1} parent=11 // pred_check
          %p587 = pneg %p50
        $region14: #{bert_tag_recommender_forward.1} parent=11 // pred_check_branch
          %589 = sbr.rel (%p587) target = $region16
        $region15: #{bert_tag_recommender_forward.1} parent=11 // pred_region
          _
        $region16: #{bert_tag_recommender_forward.1} parent=11 // pred_fallthru
          _
        // Predicated region
        $region17: #{bert_tag_recommender_forward.1} parent=11 // pred_check
          %p590 = pneg %p71
        $region18: #{bert_tag_recommender_forward.1} parent=11 // pred_check_branch
          %592 = sbr.rel (%p590) target = $region20
        $region19: #{bert_tag_recommender_forward.1} parent=11 // pred_region
          _
        $region20: #{bert_tag_recommender_forward.1} parent=11 // pred_fallthru
          _
        // Predicated region
        $region21: #{bert_tag_recommender_forward.1} parent=11 // pred_check
          %p593 = pneg %p92
        $region22: #{bert_tag_recommender_forward.1} parent=11 // pred_check_branch
          %595 = sbr.rel (%p593) target = $region24
        $region23: #{bert_tag_recommender_forward.1} parent=11 // pred_region
          _
        $region24: #{bert_tag_recommender_forward.1} parent=11 // pred_fallthru
          _
        // Predicated region
        $region25: #{bert_tag_recommender_forward.1} parent=11 // pred_check
          %p596 = pneg %p113
        $region26: #{bert_tag_recommender_forward.1} parent=11 // pred_check_branch
          %598 = sbr.rel (%p596) target = $region28
        $region27: #{bert_tag_recommender_forward.1} parent=11 // pred_region
          _
        $region28: #{bert_tag_recommender_forward.1} parent=11 // pred_fallthru
          _
        // Predicated region
        $region29: #{bert_tag_recommender_forward.1} parent=11 // pred_check
          %p599 = pneg %p446
        $region30: #{bert_tag_recommender_forward.1} parent=11 // pred_check_branch
          %601 = sbr.rel (%p599) target = $region32
        $region31: #{bert_tag_recommender_forward.1} parent=11 // pred_region
          _
        $region32: #{bert_tag_recommender_forward.1} parent=11 // pred_fallthru
          _
        // Predicated region
        $region33: #{bert_tag_recommender_forward.1} parent=11 // pred_check
          %p602 = pneg %p467
        $region34: #{bert_tag_recommender_forward.1} parent=11 // pred_check_branch
          %604 = sbr.rel (%p602) target = $region36
        $region35: #{bert_tag_recommender_forward.1} parent=11 // pred_region
          _
        $region36: #{bert_tag_recommender_forward.1} parent=11 // pred_fallthru
          _
        // Predicated region
        $region37: #{bert_tag_recommender_forward.1} parent=11 // pred_check
          %p605 = pneg %p488
        $region38: #{bert_tag_recommender_forward.1} parent=11 // pred_check_branch
          %607 = sbr.rel (%p605) target = $region40
        $region39: #{bert_tag_recommender_forward.1} parent=11 // pred_region
          _
        $region40: #{bert_tag_recommender_forward.1} parent=11 // pred_fallthru
          _
        // Predicated region
        $region41: #{bert_tag_recommender_forward.1} parent=11 // pred_check
          %p608 = pneg %p509
        $region42: #{bert_tag_recommender_forward.1} parent=11 // pred_check_branch
          %610 = sbr.rel (%p608) target = $region44
        $region43: #{bert_tag_recommender_forward.1} parent=11 // pred_region
          _
        $region44: #{bert_tag_recommender_forward.1} parent=11 // pred_fallthru
          _
        // Predicated region
        $region45: #{bert_tag_recommender_forward.1} parent=11 // pred_check
          %p611 = pneg %p530
        $region46: #{bert_tag_recommender_forward.1} parent=11 // pred_check_branch
          %613 = sbr.rel (%p611) target = $region48
        $region47: #{bert_tag_recommender_forward.1} parent=11 // pred_region
          _
        $region48: #{bert_tag_recommender_forward.1} parent=11 // pred_fallthru
          _
        // Predicated region
        $region49: #{bert_tag_recommender_forward.1} parent=11 // pred_check
          %p614 = pneg %p551
        $region50: #{bert_tag_recommender_forward.1} parent=11 // pred_check_branch
          %616 = sbr.rel (%p614) target = $region52
        $region51: #{bert_tag_recommender_forward.1} parent=11 // pred_region
          _
        $region52: #{bert_tag_recommender_forward.1} parent=11 // pred_fallthru
          _
      $region12: #{bert_tag_recommender_forward.1} parent=5 // pred_fallthru
        _
      %p617 = scmp.lt.s32.totalorder %s29, 2
      // Predicated region
      $region53: #{bert_tag_recommender_forward.1} parent=5 // pred_check
        %p618 = pneg %p617
      $region54: #{bert_tag_recommender_forward.1} parent=5 // pred_check_branch
        %620 = sbr.rel (%p618) target = $region56
      $region55: #{bert_tag_recommender_forward.1} parent=5 // pred_region
        // Predicated region
        $region57: #{bert_tag_recommender_forward.1} parent=55 // pred_check
          %p621 = pneg %p133
        $region58: #{bert_tag_recommender_forward.1} parent=55 // pred_check_branch
          %623 = sbr.rel (%p621) target = $region60
        $region59: #{bert_tag_recommender_forward.1} parent=55 // pred_region
          %p624 = scmp.lt.s32.totalorder %s29, 1
          %s625 = scalar_select %p624, %s29, 1
          %s626 = smul.addr %s625, 48
          %s627 = smul.addr %s626, 4
          %s628 = scalar_lea.vmem %s4, %s627
        $region60: #{bert_tag_recommender_forward.1} parent=55 // pred_fallthru
          _
        // Predicated region
        $region61: #{bert_tag_recommender_forward.1} parent=55 // pred_check
          %p629 = pneg %p159
        $region62: #{bert_tag_recommender_forward.1} parent=55 // pred_check_branch
          %631 = sbr.rel (%p629) target = $region64
        $region63: #{bert_tag_recommender_forward.1} parent=55 // pred_region
          %p632 = scmp.lt.s32.totalorder %s29, 1
          %s633 = scalar_select %p632, %s29, 1
          %s634 = smul.addr %s633, 3
          %s635 = scalar_lea.vmem %s5, %s634
        $region64: #{bert_tag_recommender_forward.1} parent=55 // pred_fallthru
          _
        // Predicated region
        $region65: #{bert_tag_recommender_forward.1} parent=55 // pred_check
          %p636 = pneg %p185
        $region66: #{bert_tag_recommender_forward.1} parent=55 // pred_check_branch
          %638 = sbr.rel (%p636) target = $region68
        $region67: #{bert_tag_recommender_forward.1} parent=55 // pred_region
          %p639 = scmp.lt.s32.totalorder %s29, 1
          %s640 = scalar_select %p639, %s29, 1
          %s641 = smul.addr %s640, 16
          %s642 = smul.addr %s641, 4
          %s643 = scalar_lea.vmem %s6, %s642
        $region68: #{bert_tag_recommender_forward.1} parent=55 // pred_fallthru
          _
        // Predicated region
        $region69: #{bert_tag_recommender_forward.1} parent=55 // pred_check
          %p644 = pneg %p211
        $region70: #{bert_tag_recommender_forward.1} parent=55 // pred_check_branch
          %646 = sbr.rel (%p644) target = $region72
        $region71: #{bert_tag_recommender_forward.1} parent=55 // pred_region
          %p647 = scmp.lt.s32.totalorder %s29, 1
          %s648 = scalar_select %p647, %s29, 1
          %s649 = scalar_lea.vmem %s7, %s648
        $region72: #{bert_tag_recommender_forward.1} parent=55 // pred_fallthru
          _
        // Predicated region
        $region73: #{bert_tag_recommender_forward.1} parent=55 // pred_check
          %p650 = pneg %p237
        $region74: #{bert_tag_recommender_forward.1} parent=55 // pred_check_branch
          %652 = sbr.rel (%p650) target = $region76
        $region75: #{bert_tag_recommender_forward.1} parent=55 // pred_region
          %p653 = scmp.lt.s32.totalorder %s29, 1
          %s654 = scalar_select %p653, %s29, 1
          %s655 = scalar_lea.vmem %s8, %s654
        $region76: #{bert_tag_recommender_forward.1} parent=55 // pred_fallthru
          _
        // Predicated region
        $region77: #{bert_tag_recommender_forward.1} parent=55 // pred_check
          %p656 = pneg %p263
        $region78: #{bert_tag_recommender_forward.1} parent=55 // pred_check_branch
          %658 = sbr.rel (%p656) target = $region80
        $region79: #{bert_tag_recommender_forward.1} parent=55 // pred_region
          %p659 = scmp.lt.s32.totalorder %s29, 1
          %s660 = scalar_select %p659, %s29, 1
          %s661 = scalar_lea.vmem %s9, %s660
        $region80: #{bert_tag_recommender_forward.1} parent=55 // pred_fallthru
          _
        // Predicated region
        $region81: #{bert_tag_recommender_forward.1} parent=55 // pred_check
          %p662 = pneg %p289
        $region82: #{bert_tag_recommender_forward.1} parent=55 // pred_check_branch
          %664 = sbr.rel (%p662) target = $region84
        $region83: #{bert_tag_recommender_forward.1} parent=55 // pred_region
          %p665 = scmp.lt.s32.totalorder %s29, 1
          %s666 = scalar_select %p665, %s29, 1
          %s667 = smul.addr %s666, 32
          %s668 = smul.addr %s667, 4
          %s669 = scalar_lea.vmem %s10, %s668
        $region84: #{bert_tag_recommender_forward.1} parent=55 // pred_fallthru
          _
        // Predicated region
        $region85: #{bert_tag_recommender_forward.1} parent=55 // pred_check
          %p670 = pneg %p315
        $region86: #{bert_tag_recommender_forward.1} parent=55 // pred_check_branch
          %672 = sbr.rel (%p670) target = $region88
        $region87: #{bert_tag_recommender_forward.1} parent=55 // pred_region
          %p673 = scmp.lt.s32.totalorder %s29, 1
          %s674 = scalar_select %p673, %s29, 1
          %s675 = smul.addr %s674, 2
          %s676 = scalar_lea.vmem %s11, %s675
        $region88: #{bert_tag_recommender_forward.1} parent=55 // pred_fallthru
          _
        // Predicated region
        $region89: #{bert_tag_recommender_forward.1} parent=55 // pred_check
          %p677 = pneg %p341
        $region90: #{bert_tag_recommender_forward.1} parent=55 // pred_check_branch
          %679 = sbr.rel (%p677) target = $region92
        $region91: #{bert_tag_recommender_forward.1} parent=55 // pred_region
          %p680 = scmp.lt.s32.totalorder %s29, 1
          %s681 = scalar_select %p680, %s29, 1
          %s682 = smul.addr %s681, 32
          %s683 = smul.addr %s682, 4
          %s684 = scalar_lea.vmem %s12, %s683
        $region92: #{bert_tag_recommender_forward.1} parent=55 // pred_fallthru
          _
        // Predicated region
        $region93: #{bert_tag_recommender_forward.1} parent=55 // pred_check
          %p685 = pneg %p367
        $region94: #{bert_tag_recommender_forward.1} parent=55 // pred_check_branch
          %687 = sbr.rel (%p685) target = $region96
        $region95: #{bert_tag_recommender_forward.1} parent=55 // pred_region
          %p688 = scmp.lt.s32.totalorder %s29, 1
          %s689 = scalar_select %p688, %s29, 1
          %s690 = scalar_lea.vmem %s13, %s689
        $region96: #{bert_tag_recommender_forward.1} parent=55 // pred_fallthru
          _
        // Predicated region
        $region97: #{bert_tag_recommender_forward.1} parent=55 // pred_check
          %p691 = pneg %p393
        $region98: #{bert_tag_recommender_forward.1} parent=55 // pred_check_branch
          %693 = sbr.rel (%p691) target = $region100
        $region99: #{bert_tag_recommender_forward.1} parent=55 // pred_region
          %p694 = scmp.lt.s32.totalorder %s29, 1
          %s695 = scalar_select %p694, %s29, 1
          %s696 = scalar_lea.vmem %s14, %s695
        $region100: #{bert_tag_recommender_forward.1} parent=55 // pred_fallthru
          _
        // Predicated region
        $region101: #{bert_tag_recommender_forward.1} parent=55 // pred_check
          %p697 = pneg %p419
        $region102: #{bert_tag_recommender_forward.1} parent=55 // pred_check_branch
          %699 = sbr.rel (%p697) target = $region104
        $region103: #{bert_tag_recommender_forward.1} parent=55 // pred_region
          %p700 = scmp.lt.s32.totalorder %s29, 1
          %s701 = scalar_select %p700, %s29, 1
          %s702 = scalar_lea.vmem %s15, %s701
        $region104: #{bert_tag_recommender_forward.1} parent=55 // pred_fallthru
          _
      $region56: #{bert_tag_recommender_forward.1} parent=5 // pred_fallthru
        _
      %p703 = scmp.le.s32.totalorder 1, %s29
      %p704 = scmp.lt.s32.totalorder %s29, 3
      %p705 = pnand %p703, %p704
      %p706 = pneg %p705
      // Predicated region
      $region105: #{bert_tag_recommender_forward.1} parent=5 // pred_check
        _
      $region106: #{bert_tag_recommender_forward.1} parent=5 // pred_check_branch
        %708 = sbr.rel (%p705) target = $region108
      $region107: #{bert_tag_recommender_forward.1} parent=5 // pred_region
        %s709 = ssub.s32 %s29, 1
        %p710 = pneg %p50
        %p711 = pneg %p47
        %p712 = pneg %p71
        %p713 = pneg %p68
        %p714 = pneg %p92
        %p715 = pneg %p89
        %p716 = pneg %p113
        %p717 = pneg %p110
        %p718 = scmp.lt.s32.totalorder %s34, 1
        %s719 = scalar_select %p718, %s34, 1
        %s720 = smul.addr %s719, 48
        %s721 = smul.addr %s720, 4
        %s722 = scalar_lea.vmem %s4, %s721
        %p723 = pneg %p139
        %p724 = pneg %p136
        %p725 = scmp.lt.s32.totalorder %s34, 1
        %s726 = scalar_select %p725, %s34, 1
        %s727 = smul.addr %s726, 3
        %s728 = scalar_lea.vmem %s5, %s727
        %p729 = pneg %p165
        %p730 = pneg %p162
        %p731 = scmp.lt.s32.totalorder %s34, 1
        %s732 = scalar_select %p731, %s34, 1
        %s733 = smul.addr %s732, 16
        %s734 = smul.addr %s733, 4
        %s735 = scalar_lea.vmem %s6, %s734
        %p736 = pneg %p191
        %p737 = pneg %p188
        %p738 = scmp.lt.s32.totalorder %s34, 1
        %s739 = scalar_select %p738, %s34, 1
        %s740 = scalar_lea.vmem %s7, %s739
        %p741 = pneg %p217
        %p742 = pneg %p214
        %p743 = scmp.lt.s32.totalorder %s34, 1
        %s744 = scalar_select %p743, %s34, 1
        %s745 = scalar_lea.vmem %s8, %s744
        %p746 = pneg %p243
        %p747 = pneg %p240
        %p748 = scmp.lt.s32.totalorder %s34, 1
        %s749 = scalar_select %p748, %s34, 1
        %s750 = scalar_lea.vmem %s9, %s749
        %p751 = pneg %p269
        %p752 = pneg %p266
        %p753 = scmp.lt.s32.totalorder %s34, 1
        %s754 = scalar_select %p753, %s34, 1
        %s755 = smul.addr %s754, 32
        %s756 = smul.addr %s755, 4
        %s757 = scalar_lea.vmem %s10, %s756
        %p758 = pneg %p295
        %p759 = pneg %p292
        %p760 = scmp.lt.s32.totalorder %s34, 1
        %s761 = scalar_select %p760, %s34, 1
        %s762 = smul.addr %s761, 2
        %s763 = scalar_lea.vmem %s11, %s762
        %p764 = pneg %p321
        %p765 = pneg %p318
        %p766 = scmp.lt.s32.totalorder %s34, 1
        %s767 = scalar_select %p766, %s34, 1
        %s768 = smul.addr %s767, 32
        %s769 = smul.addr %s768, 4
        %s770 = scalar_lea.vmem %s12, %s769
        %p771 = pneg %p347
        %p772 = pneg %p344
        %p773 = scmp.lt.s32.totalorder %s34, 1
        %s774 = scalar_select %p773, %s34, 1
        %s775 = scalar_lea.vmem %s13, %s774
        %p776 = pneg %p373
        %p777 = pneg %p370
        %p778 = scmp.lt.s32.totalorder %s34, 1
        %s779 = scalar_select %p778, %s34, 1
        %s780 = scalar_lea.vmem %s14, %s779
        %p781 = pneg %p399
        %p782 = pneg %p396
        %p783 = scmp.lt.s32.totalorder %s34, 1
        %s784 = scalar_select %p783, %s34, 1
        %s785 = scalar_lea.vmem %s15, %s784
        %p786 = pneg %p425
        %p787 = pneg %p422
        %p788 = pneg %p446
        %p789 = pneg %p443
        %p790 = pneg %p467
        %p791 = pneg %p464
        %p792 = pneg %p488
        %p793 = pneg %p485
        %p794 = pneg %p509
        %p795 = pneg %p506
        %p796 = pneg %p530
        %p797 = pneg %p527
        %p798 = pneg %p551
        %p799 = pneg %p548
        %p800 = pneg %p572
        %p801 = pneg %p569
        %p802 = scmp.lt.s32.totalorder %s34, 1
        %s803 = scalar_select %p802, %s34, 1
        %s804 = smul.addr %s803, 48
        %s805 = smul.addr %s804, 4
        %s806 = scalar_lea.vmem %s4, %s805
        %p807 = scmp.lt.s32.totalorder %s34, 1
        %s808 = scalar_select %p807, %s34, 1
        %s809 = smul.addr %s808, 3
        %s810 = scalar_lea.vmem %s5, %s809
        %p811 = scmp.lt.s32.totalorder %s34, 1
        %s812 = scalar_select %p811, %s34, 1
        %s813 = smul.addr %s812, 16
        %s814 = smul.addr %s813, 4
        %s815 = scalar_lea.vmem %s6, %s814
        %p816 = scmp.lt.s32.totalorder %s34, 1
        %s817 = scalar_select %p816, %s34, 1
        %s818 = scalar_lea.vmem %s7, %s817
        %p819 = scmp.lt.s32.totalorder %s34, 1
        %s820 = scalar_select %p819, %s34, 1
        %s821 = scalar_lea.vmem %s8, %s820
        %p822 = scmp.lt.s32.totalorder %s34, 1
        %s823 = scalar_select %p822, %s34, 1
        %s824 = scalar_lea.vmem %s9, %s823
        %p825 = scmp.lt.s32.totalorder %s34, 1
        %s826 = scalar_select %p825, %s34, 1
        %s827 = smul.addr %s826, 32
        %s828 = smul.addr %s827, 4
        %s829 = scalar_lea.vmem %s10, %s828
        %p830 = scmp.lt.s32.totalorder %s34, 1
        %s831 = scalar_select %p830, %s34, 1
        %s832 = smul.addr %s831, 2
        %s833 = scalar_lea.vmem %s11, %s832
        %p834 = scmp.lt.s32.totalorder %s34, 1
        %s835 = scalar_select %p834, %s34, 1
        %s836 = smul.addr %s835, 32
        %s837 = smul.addr %s836, 4
        %s838 = scalar_lea.vmem %s12, %s837
        %p839 = scmp.lt.s32.totalorder %s34, 1
        %s840 = scalar_select %p839, %s34, 1
        %s841 = scalar_lea.vmem %s13, %s840
        %p842 = scmp.lt.s32.totalorder %s34, 1
        %s843 = scalar_select %p842, %s34, 1
        %s844 = scalar_lea.vmem %s14, %s843
        %p845 = scmp.lt.s32.totalorder %s34, 1
        %s846 = scalar_select %p845, %s34, 1
        %s847 = scalar_lea.vmem %s15, %s846
        %p849 = scmp.eq.s32.totalorder %s34, 0
        // Predicated region
        $region109: #{bert_tag_recommender_forward.1} parent=107 // pred_check
          %p850 = pneg %p849
        $region110: #{bert_tag_recommender_forward.1} parent=107 // pred_check_branch
          %852 = sbr.rel (%p850) target = $region112
        $region111: #{bert_tag_recommender_forward.1} parent=107 // pred_region
          %v853 = vld [vmem:[%s0] sm:$0xff]
          %v854 = vld [vmem:[%s0 + $0x8] sm:$0xff]
          %v855 = vld [vmem:[%s0 + $0x10] sm:$0xff]
          %v856 = vld [vmem:[%s0 + $0x18] sm:$0xff]
          %v857 = vld [vmem:[%s2] sm:$0x1]
          %v858 = vld [vmem:[%s3] sm:$0x1]
          %859 = vadd.xlane.f32.xlu0 %v853
          %v860 = vpop.xlane.xlu0 %859
          %861 = vadd.xlane.f32.xlu0 %v854
          %v862 = vpop.xlane.xlu0 %861
          %863 = vadd.xlane.f32.xlu0 %v855
          %v864 = vpop.xlane.xlu0 %863
          %865 = vadd.xlane.f32.xlu0 %v856
          %v866 = vpop.xlane.xlu0 %865
          %v867 = vrcp.pop 128.0
          %v868 = vmul.f32 %v860, %v867
          %v869 = vmul.f32 %v862, %v867
          %v870 = vmul.f32 %v864, %v867
          %v871 = vmul.f32 %v866, %v867
          %v872 = vsub.f32 %v853, %v868
          %v873 = vsub.f32 %v854, %v869
          %v874 = vsub.f32 %v855, %v870
          %v875 = vsub.f32 %v856, %v871
          %v876 = vmul.f32 %v872, %v872
          %v877 = vmul.f32 %v873, %v873
          %v878 = vmul.f32 %v874, %v874
          %v879 = vmul.f32 %v875, %v875
          %880 = vadd.xlane.f32.xlu0 %v876
          %v881 = vpop.xlane.xlu0 %880
          %882 = vadd.xlane.f32.xlu0 %v877
          %v883 = vpop.xlane.xlu0 %882
          %884 = vadd.xlane.f32.xlu0 %v878
          %v885 = vpop.xlane.xlu0 %884
          %886 = vadd.xlane.f32.xlu0 %v879
          %v887 = vpop.xlane.xlu0 %886
          %v888 = vmul.f32 %v881, %v867
          %v889 = vmul.f32 %v883, %v867
          %v890 = vmul.f32 %v885, %v867
          %v891 = vmul.f32 %v887, %v867
          %v892 = vadd.f32 %v888, 1e-12
          %v893 = vadd.f32 %v889, 1e-12
          %v894 = vadd.f32 %v890, 1e-12
          %v895 = vadd.f32 %v891, 1e-12
          %v896 = vrsqrt.pop %v892
          %v897 = vrsqrt.pop %v893
          %v898 = vrsqrt.pop %v894
          %v899 = vrsqrt.pop %v895
          %v900 = vmul.f32 %v872, %v896
          %v901 = vmul.f32 %v873, %v897
          %v902 = vmul.f32 %v874, %v898
          %v903 = vmul.f32 %v875, %v899
          %v905 = vlaneseq
          %v906 = vshrl.u32 %v905, 7
          %v907 = vsub.s32 0, %v906
          %v908 = vrot.slane %v857, %v907
          %v910 = vmul.f32 %v900, %v908
          %v911 = vmul.f32 %v901, %v908
          %v912 = vmul.f32 %v902, %v908
          %v913 = vmul.f32 %v903, %v908
          %v915 = vlaneseq
          %v916 = vshrl.u32 %v915, 7
          %v917 = vsub.s32 0, %v916
          %v918 = vrot.slane %v858, %v917
          %v920 = vadd.f32 %v910, %v918
          %v921 = vadd.f32 %v911, %v918
          %v922 = vadd.f32 %v912, %v918
          %v923 = vadd.f32 %v913, %v918
          %924 = vst [vmem:[#allocation2] sm:$0xff] %v920
          %925 = vst [vmem:[#allocation2 + $0x8] sm:$0xff] %v921
          %926 = vst [vmem:[#allocation2 + $0x10] sm:$0xff] %v922
          %927 = vst [vmem:[#allocation2 + $0x18] sm:$0xff] %v923
        $region112: #{bert_tag_recommender_forward.1} parent=107 // pred_fallthru
          _
        %v928 = vld [vmem:[#allocation2] sm:$0xff]
        %v929 = vld [vmem:[#allocation2 + $0x8] sm:$0xff]
        %v930 = vld [vmem:[#allocation2 + $0x10] sm:$0xff]
        %v931 = vld [vmem:[#allocation2 + $0x18] sm:$0xff]
        %v932 = vpack.c.bf16 %v929, %v928
        %v933 = vpack.c.bf16 %v931, %v930
        %v934 = vld [vmem:[%s806] sm:$0xff]
        %v935 = vld [vmem:[%s806 + $0x8] sm:$0xf]
        %v936 = vld [vmem:[%s806 + $0xc] sm:$0xff]
        %v937 = vld [vmem:[%s806 + $0x14] sm:$0xf]
        %v938 = vld [vmem:[%s806 + $0x18] sm:$0xff]
        %v939 = vld [vmem:[%s806 + $0x20] sm:$0xf]
        %v940 = vld [vmem:[%s806 + $0x24] sm:$0xff]
        %v941 = vld [vmem:[%s806 + $0x2c] sm:$0xf]
        %v942 = vld [vmem:[%s806 + $0x30] sm:$0xff]
        %v943 = vld [vmem:[%s806 + $0x38] sm:$0xf]
        %v944 = vld [vmem:[%s806 + $0x3c] sm:$0xff]
        %v945 = vld [vmem:[%s806 + $0x44] sm:$0xf]
        %v946 = vld [vmem:[%s806 + $0x48] sm:$0xff]
        %v947 = vld [vmem:[%s806 + $0x50] sm:$0xf]
        %v948 = vld [vmem:[%s806 + $0x54] sm:$0xff]
        %v949 = vld [vmem:[%s806 + $0x5c] sm:$0xf]
        %v950 = vld [vmem:[%s806 + $0x60] sm:$0xff]
        %v951 = vld [vmem:[%s806 + $0x68] sm:$0xf]
        %v952 = vld [vmem:[%s806 + $0x6c] sm:$0xff]
        %v953 = vld [vmem:[%s806 + $0x74] sm:$0xf]
        %v954 = vld [vmem:[%s806 + $0x78] sm:$0xff]
        %v955 = vld [vmem:[%s806 + $0x80] sm:$0xf]
        %v956 = vld [vmem:[%s806 + $0x84] sm:$0xff]
        %v957 = vld [vmem:[%s806 + $0x8c] sm:$0xf]
        %v958 = vld [vmem:[%s806 + $0x90] sm:$0xff]
        %v959 = vld [vmem:[%s806 + $0x98] sm:$0xf]
        %v960 = vld [vmem:[%s806 + $0x9c] sm:$0xff]
        %v961 = vld [vmem:[%s806 + $0xa4] sm:$0xf]
        %v962 = vld [vmem:[%s806 + $0xa8] sm:$0xff]
        %v963 = vld [vmem:[%s806 + $0xb0] sm:$0xf]
        %v964 = vld [vmem:[%s806 + $0xb4] sm:$0xff]
        %v965 = vld [vmem:[%s806 + $0xbc] sm:$0xf]
        %v966 = vld [vmem:[%s810] sm:$0x7]
        %v968 = vlaneseq
        %v969 = vshrl.u32 %v968, 7
        %v970 = vsub.s32 0, %v969
        %v971 = vrot.slane %v966, %v970
        %v972 = vlaneseq
        %v973 = vshrl.u32 %v972, 7
        %v974 = vsub.s32 1, %v973
        %v975 = vrot.slane %v966, %v974
        %v976 = vlaneseq
        %v977 = vshrl.u32 %v976, 7
        %v978 = vsub.s32 2, %v977
        %v979 = vrot.slane %v966, %v978
        %v1015 = vunpack.c.l.b16 %v934
        %v1016 = vunpack.c.h.b16 %v934
        %v1017 = vunpack.c.l.b16 %v935
        %v1018 = vunpack.c.l.b16 %v936
        %v1019 = vunpack.c.h.b16 %v936
        %v1020 = vunpack.c.l.b16 %v937
        %v1021 = vunpack.c.l.b16 %v938
        %v1022 = vunpack.c.h.b16 %v938
        %v1023 = vunpack.c.l.b16 %v939
        %v1024 = vunpack.c.l.b16 %v940
        %v1025 = vunpack.c.h.b16 %v940
        %v1026 = vunpack.c.l.b16 %v941
        %v1027 = vunpack.c.l.b16 %v942
        %v1028 = vunpack.c.h.b16 %v942
        %v1029 = vunpack.c.l.b16 %v943
        %v1030 = vunpack.c.l.b16 %v944
        %v1031 = vunpack.c.h.b16 %v944
        %v1032 = vunpack.c.l.b16 %v945
        %v1033 = vunpack.c.l.b16 %v946
        %v1034 = vunpack.c.h.b16 %v946
        %v1035 = vunpack.c.l.b16 %v947
        %v1036 = vunpack.c.l.b16 %v948
        %v1037 = vunpack.c.h.b16 %v948
        %v1038 = vunpack.c.l.b16 %v949
        %v1039 = vunpack.c.l.b16 %v950
        %v1040 = vunpack.c.h.b16 %v950
        %v1041 = vunpack.c.l.b16 %v951
        %v1042 = vunpack.c.l.b16 %v952
        %v1043 = vunpack.c.h.b16 %v952
        %v1044 = vunpack.c.l.b16 %v953
        %v1045 = vunpack.c.l.b16 %v954
        %v1046 = vunpack.c.h.b16 %v954
        %v1047 = vunpack.c.l.b16 %v955
        %v1048 = vunpack.c.l.b16 %v956
        %v1049 = vunpack.c.h.b16 %v956
        %v1050 = vunpack.c.l.b16 %v957
        %v1051 = vunpack.c.l.b16 %v958
        %v1052 = vunpack.c.h.b16 %v958
        %v1053 = vunpack.c.l.b16 %v959
        %v1054 = vunpack.c.l.b16 %v960
        %v1055 = vunpack.c.h.b16 %v960
        %v1056 = vunpack.c.l.b16 %v961
        %v1057 = vunpack.c.l.b16 %v962
        %v1058 = vunpack.c.h.b16 %v962
        %v1059 = vunpack.c.l.b16 %v963
        %v1060 = vunpack.c.l.b16 %v964
        %v1061 = vunpack.c.h.b16 %v964
        %v1062 = vunpack.c.l.b16 %v965
        %v1063 = vpack.c.b16 %v1018, %v1015
        %v1064 = vpack.c.b16 %v1019, %v1016
        %v1065 = vpack.c.b16 %v1020, %v1017
        %v1066 = vpack.c.b16 %v1024, %v1021
        %v1067 = vpack.c.b16 %v1025, %v1022
        %v1068 = vpack.c.b16 %v1026, %v1023
        %v1069 = vpack.c.b16 %v1030, %v1027
        %v1070 = vpack.c.b16 %v1031, %v1028
        %v1071 = vpack.c.b16 %v1032, %v1029
        %v1072 = vpack.c.b16 %v1036, %v1033
        %v1073 = vpack.c.b16 %v1037, %v1034
        %v1074 = vpack.c.b16 %v1038, %v1035
        %v1075 = vpack.c.b16 %v1042, %v1039
        %v1076 = vpack.c.b16 %v1043, %v1040
        %v1077 = vpack.c.b16 %v1044, %v1041
        %v1078 = vpack.c.b16 %v1048, %v1045
        %v1079 = vpack.c.b16 %v1049, %v1046
        %v1080 = vpack.c.b16 %v1050, %v1047
        %v1081 = vpack.c.b16 %v1054, %v1051
        %v1082 = vpack.c.b16 %v1055, %v1052
        %v1083 = vpack.c.b16 %v1056, %v1053
        %v1084 = vpack.c.b16 %v1060, %v1057
        %v1085 = vpack.c.b16 %v1061, %v1058
        %v1086 = vpack.c.b16 %v1062, %v1059
        %1111 = vmatprep.subr.bf16.mxu0 %v1064
        %1112 = vmatpush1.bf16.msra.mxu0 %v1063
        %1113 = vmatprep.subr.bf16.mxu0 %v1067
        %1114 = vmatpush1.bf16.msra.mxu0 %v1066
        %1115 = vmatprep.subr.bf16.mxu0 %v1070
        %1116 = vmatpush1.bf16.msra.mxu0 %v1069
        %1117 = vmatprep.subr.bf16.mxu0 %v1073
        %1118 = vmatpush1.bf16.msra.mxu0 %v1072
        %1119 = vmatprep.subr.bf16.mxu0 %v1076
        %1120 = vmatpush1.bf16.msra.mxu0 %v1075
        %1121 = vmatprep.subr.bf16.mxu0 %v1079
        %1122 = vmatpush1.bf16.msra.mxu0 %v1078
        %1123 = vmatprep.subr.bf16.mxu0 %v1082
        %1124 = vmatpush1.bf16.msra.mxu0 %v1081
        %1125 = vmatprep.subr.bf16.mxu0 %v1085
        %1126 = vmatpush1.bf16.msra.mxu0 %v1084
        %1127 = vmatprep.subr.bf16.mxu0 0
        %1128 = vmatpush1.bf16.msra.mxu0 0
        %1129 = vmatprep.subr.bf16.mxu0 0
        %1130 = vmatpush1.bf16.msra.mxu0 0
        %1131 = vmatprep.subr.bf16.mxu0 0
        %1132 = vmatpush1.bf16.msra.mxu0 0
        %1133 = vmatprep.subr.bf16.mxu0 0
        %1134 = vmatpush1.bf16.msra.mxu0 0
        %1135 = vmatprep.subr.bf16.mxu0 0
        %1136 = vmatpush1.bf16.msra.mxu0 0
        %1137 = vmatprep.subr.bf16.mxu0 0
        %1138 = vmatpush1.bf16.msra.mxu0 0
        %1139 = vmatprep.subr.bf16.mxu0 0
        %1140 = vmatpush1.bf16.msra.mxu0 0
        %1141 = vmatprep.subr.bf16.mxu0 0
        %1142 = vmatpush1.bf16.msra.mxu0 0
        %1143 = vmatprep.mubr.bf16.mxu0 0
        %1144 = vmatmul.mubr.bf16.gmra.mrb[0].mxu0 %v932
        %v1145 = vpop.f32.mrb[0].mxu0
        %v1146 = vadd.f32 %v971, %v1145
        %v1147 = vpop.f32.mrb[0].mxu0
        %v1148 = vadd.f32 %v975, %v1147
        %v1149 = vpop.f32.mrb[0].mxu0
        %v1150 = vadd.f32 %v971, %v1149
        %v1151 = vpop.f32.mrb[0].mxu0
        %v1152 = vadd.f32 %v975, %v1151
        %1153 = vmatprep.mubr.bf16.mxu0 0
        %1154 = vmatmul.mubr.bf16.gmra.mrb[0].mxu0 %v933
        %v1155 = vpop.f32.mrb[0].mxu0
        %v1156 = vadd.f32 %v971, %v1155
        %v1157 = vpop.f32.mrb[0].mxu0
        %v1158 = vadd.f32 %v975, %v1157
        %v1159 = vpop.f32.mrb[0].mxu0
        %v1160 = vadd.f32 %v971, %v1159
        %v1161 = vpop.f32.mrb[0].mxu0
        %v1162 = vadd.f32 %v975, %v1161
        %1163 = vdwg.mxu0
        %1164 = vmatprep.subr.bf16.mxu0 0
        %1165 = vmatpush1.bf16.msra.mxu0 %v1065
        %1166 = vmatprep.subr.bf16.mxu0 0
        %1167 = vmatpush1.bf16.msra.mxu0 %v1068
        %1168 = vmatprep.subr.bf16.mxu0 0
        %1169 = vmatpush1.bf16.msra.mxu0 %v1071
        %1170 = vmatprep.subr.bf16.mxu0 0
        %1171 = vmatpush1.bf16.msra.mxu0 %v1074
        %1172 = vmatprep.subr.bf16.mxu0 0
        %1173 = vmatpush1.bf16.msra.mxu0 %v1077
        %1174 = vmatprep.subr.bf16.mxu0 0
        %1175 = vmatpush1.bf16.msra.mxu0 %v1080
        %1176 = vmatprep.subr.bf16.mxu0 0
        %1177 = vmatpush1.bf16.msra.mxu0 %v1083
        %1178 = vmatprep.subr.bf16.mxu0 0
        %1179 = vmatpush1.bf16.msra.mxu0 %v1086
        %1180 = vmatprep.subr.bf16.mxu0 0
        %1181 = vmatpush1.bf16.msra.mxu0 0
        %1182 = vmatprep.subr.bf16.mxu0 0
        %1183 = vmatpush1.bf16.msra.mxu0 0
        %1184 = vmatprep.subr.bf16.mxu0 0
        %1185 = vmatpush1.bf16.msra.mxu0 0
        %1186 = vmatprep.subr.bf16.mxu0 0
        %1187 = vmatpush1.bf16.msra.mxu0 0
        %1188 = vmatprep.subr.bf16.mxu0 0
        %1189 = vmatpush1.bf16.msra.mxu0 0
        %1190 = vmatprep.subr.bf16.mxu0 0
        %1191 = vmatpush1.bf16.msra.mxu0 0
        %1192 = vmatprep.subr.bf16.mxu0 0
        %1193 = vmatpush1.bf16.msra.mxu0 0
        %1194 = vmatprep.subr.bf16.mxu0 0
        %1195 = vmatpush1.bf16.msra.mxu0 0
        %1196 = vmatprep.mubr.bf16.mxu0 0
        %1197 = vmatmul.mubr.bf16.gmra.mrb[0].mxu0 %v932
        %v1198 = vpop.f32.mrb[0].mxu0
        %v1199 = vadd.f32 %v979, %v1198
        %v1200 = vpop.f32.mrb[0].mxu0
        %v1201 = vpop.f32.mrb[0].mxu0
        %v1202 = vadd.f32 %v979, %v1201
        %v1203 = vpop.f32.mrb[0].mxu0
        %1204 = vmatprep.mubr.bf16.mxu0 0
        %1205 = vmatmul.mubr.bf16.gmra.mrb[0].mxu0 %v933
        %v1206 = vpop.f32.mrb[0].mxu0
        %v1207 = vadd.f32 %v979, %v1206
        %v1208 = vpop.f32.mrb[0].mxu0
        %v1209 = vpop.f32.mrb[0].mxu0
        %v1210 = vadd.f32 %v979, %v1209
        %v1211 = vpop.f32.mrb[0].mxu0
        %1212 = vdwg.mxu0
        %v1213 = vpack.c.bf16 %v1150, %v1146
        %v1214 = vpack.c.bf16 %v1152, %v1148
        %v1215 = vpack.c.bf16 %v1202, %v1199
        %v1216 = vpack.c.bf16 %v1160, %v1156
        %v1217 = vpack.c.bf16 %v1162, %v1158
        %v1218 = vpack.c.bf16 %v1210, %v1207
        %1221 = vrot.lane.b32.xlu0 %v1213, 96
        %v1222 = vpop.permute.xlu0 %1221
        %1223 = vrot.lane.b32.xlu0 %v1216, 96
        %v1224 = vpop.permute.xlu0 %1223
        %1225 = vrot.lane.b32.xlu0 %v1213, 64
        %v1226 = vpop.permute.xlu0 %1225
        %1227 = vrot.lane.b32.xlu0 %v1216, 64
        %v1228 = vpop.permute.xlu0 %1227
        %1229 = vrot.lane.b32.xlu0 %v1213, 32
        %v1230 = vpop.permute.xlu0 %1229
        %1231 = vrot.lane.b32.xlu0 %v1216, 32
        %v1232 = vpop.permute.xlu0 %1231
        %1235 = vrot.lane.b32.xlu0 %v1214, 96
        %v1236 = vpop.permute.xlu0 %1235
        %1237 = vrot.lane.b32.xlu0 %v1217, 96
        %v1238 = vpop.permute.xlu0 %1237
        %1239 = vrot.lane.b32.xlu0 %v1214, 64
        %v1240 = vpop.permute.xlu0 %1239
        %1241 = vrot.lane.b32.xlu0 %v1217, 64
        %v1242 = vpop.permute.xlu0 %1241
        %1243 = vrot.lane.b32.xlu0 %v1214, 32
        %v1244 = vpop.permute.xlu0 %1243
        %1245 = vrot.lane.b32.xlu0 %v1217, 32
        %v1246 = vpop.permute.xlu0 %1245
        %1249 = vrot.lane.b32.xlu0 %v1215, 96
        %v1250 = vpop.permute.xlu0 %1249
        %1251 = vrot.lane.b32.xlu0 %v1218, 96
        %v1252 = vpop.permute.xlu0 %1251
        %1255 = vrot.lane.b32.xlu0 %v1215, 64
        %v1256 = vpop.permute.xlu0 %1255
        %1257 = vrot.lane.b32.xlu0 %v1218, 64
        %v1258 = vpop.permute.xlu0 %1257
        %1261 = vrot.lane.b32.xlu0 %v1215, 32
        %v1262 = vpop.permute.xlu0 %1261
        %1263 = vrot.lane.b32.xlu0 %v1218, 32
        %v1264 = vpop.permute.xlu0 %1263
        %v1267 = vld [vmem:[%s1] sm:$0xff]
        %v1268 = vld [vmem:[%s1 + $0x8] sm:$0xff]
        %v1269 = vld [vmem:[%s1 + $0x10] sm:$0xff]
        %v1270 = vld [vmem:[%s1 + $0x18] sm:$0xff]
        %v1271 = vld [vmem:[%s1 + $0x20] sm:$0xff]
        %v1272 = vld [vmem:[%s1 + $0x28] sm:$0xff]
        %v1273 = vld [vmem:[%s1 + $0x30] sm:$0xff]
        %v1274 = vld [vmem:[%s1 + $0x38] sm:$0xff]
        %v1275 = vld [vmem:[%s1 + $0x40] sm:$0xff]
        %v1276 = vld [vmem:[%s1 + $0x48] sm:$0xff]
        %v1277 = vld [vmem:[%s1 + $0x50] sm:$0xff]
        %v1278 = vld [vmem:[%s1 + $0x58] sm:$0xff]
        %v1279 = vld [vmem:[%s1 + $0x60] sm:$0xff]
        %v1280 = vld [vmem:[%s1 + $0x68] sm:$0xff]
        %v1281 = vld [vmem:[%s1 + $0x70] sm:$0xff]
        %v1282 = vld [vmem:[%s1 + $0x78] sm:$0xff]
        %vm1283 = vcmask 261120
        %v1285 = vsel %vm1283, %v1213, 0
        %v1288 = vsel %vm1283, %v1216, 0
        %v1291 = vsel %vm1283, %v1222, 0
        %v1294 = vsel %vm1283, %v1224, 0
        %v1297 = vsel %vm1283, %v1226, 0
        %v1300 = vsel %vm1283, %v1228, 0
        %v1303 = vsel %vm1283, %v1230, 0
        %v1306 = vsel %vm1283, %v1232, 0
        %v1309 = vsel %vm1283, %v1214, 0
        %v1312 = vsel %vm1283, %v1217, 0
        %v1315 = vsel %vm1283, %v1236, 0
        %v1318 = vsel %vm1283, %v1238, 0
        %v1321 = vsel %vm1283, %v1240, 0
        %v1324 = vsel %vm1283, %v1242, 0
        %v1327 = vsel %vm1283, %v1244, 0
        %v1330 = vsel %vm1283, %v1246, 0
        %1332 = vmatprep.subr.bf16.mxu0 0
        %1333 = vmatpush1.bf16.xpose.msra.mxu0 %v1309
        %1334 = vmatprep.subr.bf16.mxu0 0
        %1335 = vmatpush1.bf16.xpose.msra.mxu0 %v1312
        %1336 = vmatprep.subr.bf16.mxu0 0
        %1337 = vmatpush1.bf16.xpose.msra.mxu0 %v1315
        %1338 = vmatprep.subr.bf16.mxu0 0
        %1339 = vmatpush1.bf16.xpose.msra.mxu0 %v1318
        %1340 = vmatprep.subr.bf16.mxu0 0
        %1341 = vmatpush1.bf16.xpose.msra.mxu0 %v1321
        %1342 = vmatprep.subr.bf16.mxu0 0
        %1343 = vmatpush1.bf16.xpose.msra.mxu0 %v1324
        %1344 = vmatprep.subr.bf16.mxu0 0
        %1345 = vmatpush1.bf16.xpose.msra.mxu0 %v1327
        %1346 = vmatprep.subr.bf16.mxu0 0
        %1347 = vmatpush1.bf16.xpose.msra.mxu0 %v1330
        %1348 = vmatprep.subr.bf16.mxu0 0
        %1349 = vmatpush1.bf16.xpose.msra.mxu0 0
        %1350 = vmatprep.subr.bf16.mxu0 0
        %1351 = vmatpush1.bf16.xpose.msra.mxu0 0
        %1352 = vmatprep.subr.bf16.mxu0 0
        %1353 = vmatpush1.bf16.xpose.msra.mxu0 0
        %1354 = vmatprep.subr.bf16.mxu0 0
        %1355 = vmatpush1.bf16.xpose.msra.mxu0 0
        %1356 = vmatprep.subr.bf16.mxu0 0
        %1357 = vmatpush1.bf16.xpose.msra.mxu0 0
        %1358 = vmatprep.subr.bf16.mxu0 0
        %1359 = vmatpush1.bf16.xpose.msra.mxu0 0
        %1360 = vmatprep.subr.bf16.mxu0 0
        %1361 = vmatpush1.bf16.xpose.msra.mxu0 0
        %1362 = vmatprep.subr.bf16.mxu0 0
        %1363 = vmatpush1.bf16.xpose.msra.mxu0 0
        %1364 = vmatprep.mubr.bf16.mxu0 0
        %1365 = vmatmul.mubr.bf16.gmra.mrb[0].mxu0 %v1285
        %v1366 = vpop.f32.mrb[0].mxu0
        %v1367 = vadd.f32 %v1267, %v1366
        %v1368 = vpop.f32.mrb[0].mxu0
        %v1369 = vpop.f32.mrb[0].mxu0
        %v1370 = vadd.f32 %v1268, %v1369
        %v1371 = vpop.f32.mrb[0].mxu0
        %1372 = vmatprep.mubr.bf16.mxu0 0
        %1373 = vmatmul.mubr.bf16.gmra.mrb[0].mxu0 %v1288
        %v1374 = vpop.f32.mrb[0].mxu0
        %v1375 = vadd.f32 %v1269, %v1374
        %v1376 = vpop.f32.mrb[0].mxu0
        %v1377 = vpop.f32.mrb[0].mxu0
        %v1378 = vadd.f32 %v1270, %v1377
        %v1379 = vpop.f32.mrb[0].mxu0
        %1380 = vmatprep.mubr.bf16.mxu0 0
        %1381 = vmatmul.mubr.bf16.gmra.mrb[0].mxu0 %v1291
        %v1382 = vpop.f32.mrb[0].mxu0
        %v1383 = vadd.f32 %v1271, %v1382
        %v1384 = vpop.f32.mrb[0].mxu0
        %v1385 = vpop.f32.mrb[0].mxu0
        %v1386 = vadd.f32 %v1272, %v1385
        %v1387 = vpop.f32.mrb[0].mxu0
        %1388 = vmatprep.mubr.bf16.mxu0 0
        %1389 = vmatmul.mubr.bf16.gmra.mrb[0].mxu0 %v1294
        %v1390 = vpop.f32.mrb[0].mxu0
        %v1391 = vadd.f32 %v1273, %v1390
        %v1392 = vpop.f32.mrb[0].mxu0
        %v1393 = vpop.f32.mrb[0].mxu0
        %v1394 = vadd.f32 %v1274, %v1393
        %v1395 = vpop.f32.mrb[0].mxu0
        %1396 = vmatprep.mubr.bf16.mxu0 0
        %1397 = vmatmul.mubr.bf16.gmra.mrb[0].mxu0 %v1297
        %v1398 = vpop.f32.mrb[0].mxu0
        %v1399 = vadd.f32 %v1275, %v1398
        %v1400 = vpop.f32.mrb[0].mxu0
        %v1401 = vpop.f32.mrb[0].mxu0
        %v1402 = vadd.f32 %v1276, %v1401
        %v1403 = vpop.f32.mrb[0].mxu0
        %1404 = vmatprep.mubr.bf16.mxu0 0
        %1405 = vmatmul.mubr.bf16.gmra.mrb[0].mxu0 %v1300
        %v1406 = vpop.f32.mrb[0].mxu0
        %v1407 = vadd.f32 %v1277, %v1406
        %v1408 = vpop.f32.mrb[0].mxu0
        %v1409 = vpop.f32.mrb[0].mxu0
        %v1410 = vadd.f32 %v1278, %v1409
        %v1411 = vpop.f32.mrb[0].mxu0
        %1412 = vmatprep.mubr.bf16.mxu0 0
        %1413 = vmatmul.mubr.bf16.gmra.mrb[0].mxu0 %v1303
        %v1414 = vpop.f32.mrb[0].mxu0
        %v1415 = vadd.f32 %v1279, %v1414
        %v1416 = vpop.f32.mrb[0].mxu0
        %v1417 = vpop.f32.mrb[0].mxu0
        %v1418 = vadd.f32 %v1280, %v1417
        %v1419 = vpop.f32.mrb[0].mxu0
        %1420 = vmatprep.mubr.bf16.mxu0 0
        %1421 = vmatmul.mubr.bf16.gmra.mrb[0].mxu0 %v1306
        %v1422 = vpop.f32.mrb[0].mxu0
        %v1423 = vadd.f32 %v1281, %v1422
        %v1424 = vpop.f32.mrb[0].mxu0
        %v1425 = vpop.f32.mrb[0].mxu0
        %v1426 = vadd.f32 %v1282, %v1425
        %v1427 = vpop.f32.mrb[0].mxu0
        %1428 = vdwg.mxu0
        %1429 = vmax.xlane.f32.xlu0 %v1367
        %v1430 = vpop.xlane.xlu0 %1429
        %1431 = vmax.xlane.f32.xlu0 %v1370
        %v1432 = vpop.xlane.xlu0 %1431
        %1433 = vmax.xlane.f32.xlu0 %v1375
        %v1434 = vpop.xlane.xlu0 %1433
        %1435 = vmax.xlane.f32.xlu0 %v1378
        %v1436 = vpop.xlane.xlu0 %1435
        %1437 = vmax.xlane.f32.xlu0 %v1383
        %v1438 = vpop.xlane.xlu0 %1437
        %1439 = vmax.xlane.f32.xlu0 %v1386
        %v1440 = vpop.xlane.xlu0 %1439
        %1441 = vmax.xlane.f32.xlu0 %v1391
        %v1442 = vpop.xlane.xlu0 %1441
        %1443 = vmax.xlane.f32.xlu0 %v1394
        %v1444 = vpop.xlane.xlu0 %1443
        %1445 = vmax.xlane.f32.xlu0 %v1399
        %v1446 = vpop.xlane.xlu0 %1445
        %1447 = vmax.xlane.f32.xlu0 %v1402
        %v1448 = vpop.xlane.xlu0 %1447
        %1449 = vmax.xlane.f32.xlu0 %v1407
        %v1450 = vpop.xlane.xlu0 %1449
        %1451 = vmax.xlane.f32.xlu0 %v1410
        %v1452 = vpop.xlane.xlu0 %1451
        %1453 = vmax.xlane.f32.xlu0 %v1415
        %v1454 = vpop.xlane.xlu0 %1453
        %1455 = vmax.xlane.f32.xlu0 %v1418
        %v1456 = vpop.xlane.xlu0 %1455
        %1457 = vmax.xlane.f32.xlu0 %v1423
        %v1458 = vpop.xlane.xlu0 %1457
        %1459 = vmax.xlane.f32.xlu0 %v1426
        %v1460 = vpop.xlane.xlu0 %1459
        %v1461 = vsub.f32 %v1367, %v1430
        %v1462 = vsub.f32 %v1370, %v1432
        %v1463 = vsub.f32 %v1375, %v1434
        %v1464 = vsub.f32 %v1378, %v1436
        %v1465 = vsub.f32 %v1383, %v1438
        %v1466 = vsub.f32 %v1386, %v1440
        %v1467 = vsub.f32 %v1391, %v1442
        %v1468 = vsub.f32 %v1394, %v1444
        %v1469 = vsub.f32 %v1399, %v1446
        %v1470 = vsub.f32 %v1402, %v1448
        %v1471 = vsub.f32 %v1407, %v1450
        %v1472 = vsub.f32 %v1410, %v1452
        %v1473 = vsub.f32 %v1415, %v1454
        %v1474 = vsub.f32 %v1418, %v1456
        %v1475 = vsub.f32 %v1423, %v1458
        %v1476 = vsub.f32 %v1426, %v1460
        %v1477 = vmul.f32 %v1461, 1.442695
        %v1478 = vpow.pop %v1477
        %v1479 = vmul.f32 %v1462, 1.442695
        %v1480 = vpow.pop %v1479
        %v1481 = vmul.f32 %v1463, 1.442695
        %v1482 = vpow.pop %v1481
        %v1483 = vmul.f32 %v1464, 1.442695
        %v1484 = vpow.pop %v1483
        %v1485 = vmul.f32 %v1465, 1.442695
        %v1486 = vpow.pop %v1485
        %v1487 = vmul.f32 %v1466, 1.442695
        %v1488 = vpow.pop %v1487
        %v1489 = vmul.f32 %v1467, 1.442695
        %v1490 = vpow.pop %v1489
        %v1491 = vmul.f32 %v1468, 1.442695
        %v1492 = vpow.pop %v1491
        %v1493 = vmul.f32 %v1469, 1.442695
        %v1494 = vpow.pop %v1493
        %v1495 = vmul.f32 %v1470, 1.442695
        %v1496 = vpow.pop %v1495
        %v1497 = vmul.f32 %v1471, 1.442695
        %v1498 = vpow.pop %v1497
        %v1499 = vmul.f32 %v1472, 1.442695
        %v1500 = vpow.pop %v1499
        %v1501 = vmul.f32 %v1473, 1.442695
        %v1502 = vpow.pop %v1501
        %v1503 = vmul.f32 %v1474, 1.442695
        %v1504 = vpow.pop %v1503
        %v1505 = vmul.f32 %v1475, 1.442695
        %v1506 = vpow.pop %v1505
        %v1507 = vmul.f32 %v1476, 1.442695
        %v1508 = vpow.pop %v1507
        %1509 = vadd.xlane.f32.xlu0 %v1478
        %v1510 = vpop.xlane.xlu0 %1509
        %1511 = vadd.xlane.f32.xlu0 %v1480
        %v1512 = vpop.xlane.xlu0 %1511
        %1513 = vadd.xlane.f32.xlu0 %v1482
        %v1514 = vpop.xlane.xlu0 %1513
        %1515 = vadd.xlane.f32.xlu0 %v1484
        %v1516 = vpop.xlane.xlu0 %1515
        %1517 = vadd.xlane.f32.xlu0 %v1486
        %v1518 = vpop.xlane.xlu0 %1517
        %1519 = vadd.xlane.f32.xlu0 %v1488
        %v1520 = vpop.xlane.xlu0 %1519
        %1521 = vadd.xlane.f32.xlu0 %v1490
        %v1522 = vpop.xlane.xlu0 %1521
        %1523 = vadd.xlane.f32.xlu0 %v1492
        %v1524 = vpop.xlane.xlu0 %1523
        %1525 = vadd.xlane.f32.xlu0 %v1494
        %v1526 = vpop.xlane.xlu0 %1525
        %1527 = vadd.xlane.f32.xlu0 %v1496
        %v1528 = vpop.xlane.xlu0 %1527
        %1529 = vadd.xlane.f32.xlu0 %v1498
        %v1530 = vpop.xlane.xlu0 %1529
        %1531 = vadd.xlane.f32.xlu0 %v1500
        %v1532 = vpop.xlane.xlu0 %1531
        %1533 = vadd.xlane.f32.xlu0 %v1502
        %v1534 = vpop.xlane.xlu0 %1533
        %1535 = vadd.xlane.f32.xlu0 %v1504
        %v1536 = vpop.xlane.xlu0 %1535
        %1537 = vadd.xlane.f32.xlu0 %v1506
        %v1538 = vpop.xlane.xlu0 %1537
        %1539 = vadd.xlane.f32.xlu0 %v1508
        %v1540 = vpop.xlane.xlu0 %1539
        %v1541 = vrcp.pop %v1510
        %v1542 = vrcp.pop %v1512
        %v1543 = vrcp.pop %v1514
        %v1544 = vrcp.pop %v1516
        %v1545 = vrcp.pop %v1518
        %v1546 = vrcp.pop %v1520
        %v1547 = vrcp.pop %v1522
        %v1548 = vrcp.pop %v1524
        %v1549 = vrcp.pop %v1526
        %v1550 = vrcp.pop %v1528
        %v1551 = vrcp.pop %v1530
        %v1552 = vrcp.pop %v1532
        %v1553 = vrcp.pop %v1534
        %v1554 = vrcp.pop %v1536
        %v1555 = vrcp.pop %v1538
        %v1556 = vrcp.pop %v1540
        %v1557 = vmul.f32 %v1478, %v1541
        %v1558 = vmul.f32 %v1480, %v1542
        %v1559 = vmul.f32 %v1482, %v1543
        %v1560 = vmul.f32 %v1484, %v1544
        %v1561 = vmul.f32 %v1486, %v1545
        %v1562 = vmul.f32 %v1488, %v1546
        %v1563 = vmul.f32 %v1490, %v1547
        %v1564 = vmul.f32 %v1492, %v1548
        %v1565 = vmul.f32 %v1494, %v1549
        %v1566 = vmul.f32 %v1496, %v1550
        %v1567 = vmul.f32 %v1498, %v1551
        %v1568 = vmul.f32 %v1500, %v1552
        %v1569 = vmul.f32 %v1502, %v1553
        %v1570 = vmul.f32 %v1504, %v1554
        %v1571 = vmul.f32 %v1506, %v1555
        %v1572 = vmul.f32 %v1508, %v1556
        %v1573 = vpack.c.bf16 %v1558, %v1557
        %v1574 = vpack.c.bf16 %v1560, %v1559
        %v1575 = vpack.c.bf16 %v1562, %v1561
        %v1576 = vpack.c.bf16 %v1564, %v1563
        %v1577 = vpack.c.bf16 %v1566, %v1565
        %v1578 = vpack.c.bf16 %v1568, %v1567
        %v1579 = vpack.c.bf16 %v1570, %v1569
        %v1580 = vpack.c.bf16 %v1572, %v1571
        %1581 = vmatprep.subr.bf16.mxu0 0
        %1582 = vmatpush1.bf16.msra.mxu0 %v1215
        %1583 = vmatprep.subr.bf16.mxu0 0
        %1584 = vmatpush1.bf16.msra.mxu0 %v1218
        %1585 = vmatprep.subr.bf16.mxu0 0
        %1586 = vmatpush1.bf16.msra.mxu0 %v1250
        %1587 = vmatprep.subr.bf16.mxu0 0
        %1588 = vmatpush1.bf16.msra.mxu0 %v1252
        %1589 = vmatprep.subr.bf16.mxu0 0
        %1590 = vmatpush1.bf16.msra.mxu0 %v1256
        %1591 = vmatprep.subr.bf16.mxu0 0
        %1592 = vmatpush1.bf16.msra.mxu0 %v1258
        %1593 = vmatprep.subr.bf16.mxu0 0
        %1594 = vmatpush1.bf16.msra.mxu0 %v1262
        %1595 = vmatprep.subr.bf16.mxu0 0
        %1596 = vmatpush1.bf16.msra.mxu0 %v1264
        %1597 = vmatprep.subr.bf16.mxu0 0
        %1598 = vmatpush1.bf16.msra.mxu0 0
        %1599 = vmatprep.subr.bf16.mxu0 0
        %1600 = vmatpush1.bf16.msra.mxu0 0
        %1601 = vmatprep.subr.bf16.mxu0 0
        %1602 = vmatpush1.bf16.msra.mxu0 0
        %1603 = vmatprep.subr.bf16.mxu0 0
        %1604 = vmatpush1.bf16.msra.mxu0 0
        %1605 = vmatprep.subr.bf16.mxu0 0
        %1606 = vmatpush1.bf16.msra.mxu0 0
        %1607 = vmatprep.subr.bf16.mxu0 0
        %1608 = vmatpush1.bf16.msra.mxu0 0
        %1609 = vmatprep.subr.bf16.mxu0 0
        %1610 = vmatpush1.bf16.msra.mxu0 0
        %1611 = vmatprep.subr.bf16.mxu0 0
        %1612 = vmatpush1.bf16.msra.mxu0 0
        %1613 = vmatprep.mubr.bf16.mxu0 0
        %1614 = vmatmul.mubr.bf16.gmra.mrb[0].mxu0 %v1573
        %v1615 = vpop.f32.mrb[0].mxu0
        %v1616 = vadd.f32 0.0, %v1615
        %v1617 = vpop.f32.mrb[0].mxu0
        %v1618 = vpop.f32.mrb[0].mxu0
        %v1619 = vadd.f32 0.0, %v1618
        %v1620 = vpop.f32.mrb[0].mxu0
        %1621 = vmatprep.mubr.bf16.mxu0 0
        %1622 = vmatmul.mubr.bf16.gmra.mrb[0].mxu0 %v1574
        %v1623 = vpop.f32.mrb[0].mxu0
        %v1624 = vadd.f32 0.0, %v1623
        %v1625 = vpop.f32.mrb[0].mxu0
        %v1626 = vpop.f32.mrb[0].mxu0
        %v1627 = vadd.f32 0.0, %v1626
        %v1628 = vpop.f32.mrb[0].mxu0
        %1629 = vmatprep.mubr.bf16.mxu0 0
        %1630 = vmatmul.mubr.bf16.gmra.mrb[0].mxu0 %v1575
        %v1631 = vpop.f32.mrb[0].mxu0
        %v1632 = vadd.f32 0.0, %v1631
        %v1633 = vpop.f32.mrb[0].mxu0
        %v1634 = vpop.f32.mrb[0].mxu0
        %v1635 = vadd.f32 0.0, %v1634
        %v1636 = vpop.f32.mrb[0].mxu0
        %1637 = vmatprep.mubr.bf16.mxu0 0
        %1638 = vmatmul.mubr.bf16.gmra.mrb[0].mxu0 %v1576
        %v1639 = vpop.f32.mrb[0].mxu0
        %v1640 = vadd.f32 0.0, %v1639
        %v1641 = vpop.f32.mrb[0].mxu0
        %v1642 = vpop.f32.mrb[0].mxu0
        %v1643 = vadd.f32 0.0, %v1642
        %v1644 = vpop.f32.mrb[0].mxu0
        %1645 = vmatprep.mubr.bf16.mxu0 0
        %1646 = vmatmul.mubr.bf16.gmra.mrb[0].mxu0 %v1577
        %v1647 = vpop.f32.mrb[0].mxu0
        %v1648 = vadd.f32 0.0, %v1647
        %v1649 = vpop.f32.mrb[0].mxu0
        %v1650 = vpop.f32.mrb[0].mxu0
        %v1651 = vadd.f32 0.0, %v1650
        %v1652 = vpop.f32.mrb[0].mxu0
        %1653 = vmatprep.mubr.bf16.mxu0 0
        %1654 = vmatmul.mubr.bf16.gmra.mrb[0].mxu0 %v1578
        %v1655 = vpop.f32.mrb[0].mxu0
        %v1656 = vadd.f32 0.0, %v1655
        %v1657 = vpop.f32.mrb[0].mxu0
        %v1658 = vpop.f32.mrb[0].mxu0
        %v1659 = vadd.f32 0.0, %v1658
        %v1660 = vpop.f32.mrb[0].mxu0
        %1661 = vmatprep.mubr.bf16.mxu0 0
        %1662 = vmatmul.mubr.bf16.gmra.mrb[0].mxu0 %v1579
        %v1663 = vpop.f32.mrb[0].mxu0
        %v1664 = vadd.f32 0.0, %v1663
        %v1665 = vpop.f32.mrb[0].mxu0
        %v1666 = vpop.f32.mrb[0].mxu0
        %v1667 = vadd.f32 0.0, %v1666
        %v1668 = vpop.f32.mrb[0].mxu0
        %1669 = vmatprep.mubr.bf16.mxu0 0
        %1670 = vmatmul.mubr.bf16.gmra.mrb[0].mxu0 %v1580
        %v1671 = vpop.f32.mrb[0].mxu0
        %v1672 = vadd.f32 0.0, %v1671
        %v1673 = vpop.f32.mrb[0].mxu0
        %v1674 = vpop.f32.mrb[0].mxu0
        %v1675 = vadd.f32 0.0, %v1674
        %v1676 = vpop.f32.mrb[0].mxu0
        %1677 = vdwg.mxu0
        %1682 = vrot.lane.b32.xlu0 %v1632, 32
        %v1683 = vpop.permute.xlu0 %1682
        %1684 = vrot.lane.b32.xlu0 %v1635, 32
        %v1685 = vpop.permute.xlu0 %1684
        %1686 = vrot.lane.b32.xlu0 %v1640, 32
        %v1687 = vpop.permute.xlu0 %1686
        %1688 = vrot.lane.b32.xlu0 %v1643, 32
        %v1689 = vpop.permute.xlu0 %1688
        %1698 = vrot.lane.b32.xlu0 %v1648, 64
        %v1699 = vpop.permute.xlu0 %1698
        %1700 = vrot.lane.b32.xlu0 %v1651, 64
        %v1701 = vpop.permute.xlu0 %1700
        %1702 = vrot.lane.b32.xlu0 %v1656, 64
        %v1703 = vpop.permute.xlu0 %1702
        %1704 = vrot.lane.b32.xlu0 %v1659, 64
        %v1705 = vpop.permute.xlu0 %1704
        %1714 = vrot.lane.b32.xlu0 %v1664, 96
        %v1715 = vpop.permute.xlu0 %1714
        %1716 = vrot.lane.b32.xlu0 %v1667, 96
        %v1717 = vpop.permute.xlu0 %1716
        %1718 = vrot.lane.b32.xlu0 %v1672, 96
        %v1719 = vpop.permute.xlu0 %1718
        %1720 = vrot.lane.b32.xlu0 %v1675, 96
        %v1721 = vpop.permute.xlu0 %1720
        %v1726 = vsel %vm1283, %v1616, %v1683
        %v1727 = vsel %vm1283, %v1619, %v1685
        %v1728 = vsel %vm1283, %v1624, %v1687
        %v1729 = vsel %vm1283, %v1627, %v1689
        %vm1730 = vcmask 523264
        %v1731 = vsel %vm1730, %v1726, %v1699
        %v1732 = vsel %vm1730, %v1727, %v1701
        %v1733 = vsel %vm1730, %v1728, %v1703
        %v1734 = vsel %vm1730, %v1729, %v1705
        %vm1735 = vcmask 785408
        %v1736 = vsel %vm1735, %v1731, %v1715
        %v1737 = vsel %vm1735, %v1732, %v1717
        %v1738 = vsel %vm1735, %v1733, %v1719
        %v1739 = vsel %vm1735, %v1734, %v1721
        %v1740 = vpack.c.bf16 %v1737, %v1736
        %v1741 = vpack.c.bf16 %v1739, %v1738
        %v1742 = vld [vmem:[%s815] sm:$0xf]
        %v1743 = vld [vmem:[%s815 + $0x4] sm:$0xf]
        %v1744 = vld [vmem:[%s815 + $0x8] sm:$0xf]
        %v1745 = vld [vmem:[%s815 + $0xc] sm:$0xf]
        %v1746 = vld [vmem:[%s815 + $0x10] sm:$0xf]
        %v1747 = vld [vmem:[%s815 + $0x14] sm:$0xf]
        %v1748 = vld [vmem:[%s815 + $0x18] sm:$0xf]
        %v1749 = vld [vmem:[%s815 + $0x1c] sm:$0xf]
        %v1750 = vld [vmem:[%s815 + $0x20] sm:$0xf]
        %v1751 = vld [vmem:[%s815 + $0x24] sm:$0xf]
        %v1752 = vld [vmem:[%s815 + $0x28] sm:$0xf]
        %v1753 = vld [vmem:[%s815 + $0x2c] sm:$0xf]
        %v1754 = vld [vmem:[%s815 + $0x30] sm:$0xf]
        %v1755 = vld [vmem:[%s815 + $0x34] sm:$0xf]
        %v1756 = vld [vmem:[%s815 + $0x38] sm:$0xf]
        %v1757 = vld [vmem:[%s815 + $0x3c] sm:$0xf]
        %v1758 = vld [vmem:[%s818] sm:$0x1]
        %v1760 = vlaneseq
        %v1761 = vshrl.u32 %v1760, 7
        %v1762 = vsub.s32 0, %v1761
        %v1763 = vrot.slane %v1758, %v1762
        %v1781 = vunpack.c.l.b16 %v1742
        %v1782 = vunpack.c.l.b16 %v1743
        %v1783 = vunpack.c.l.b16 %v1744
        %v1784 = vunpack.c.l.b16 %v1745
        %v1785 = vunpack.c.l.b16 %v1746
        %v1786 = vunpack.c.l.b16 %v1747
        %v1787 = vunpack.c.l.b16 %v1748
        %v1788 = vunpack.c.l.b16 %v1749
        %v1789 = vunpack.c.l.b16 %v1750
        %v1790 = vunpack.c.l.b16 %v1751
        %v1791 = vunpack.c.l.b16 %v1752
        %v1792 = vunpack.c.l.b16 %v1753
        %v1793 = vunpack.c.l.b16 %v1754
        %v1794 = vunpack.c.l.b16 %v1755
        %v1795 = vunpack.c.l.b16 %v1756
        %v1796 = vunpack.c.l.b16 %v1757
        %v1797 = vpack.c.b16 %v1782, %v1781
        %v1798 = vpack.c.b16 %v1784, %v1783
        %v1799 = vpack.c.b16 %v1786, %v1785
        %v1800 = vpack.c.b16 %v1788, %v1787
        %v1801 = vpack.c.b16 %v1790, %v1789
        %v1802 = vpack.c.b16 %v1792, %v1791
        %v1803 = vpack.c.b16 %v1794, %v1793
        %v1804 = vpack.c.b16 %v1796, %v1795
        %1813 = vmatprep.subr.bf16.mxu0 0
        %1814 = vmatpush1.bf16.msra.mxu0 %v1797
        %1815 = vmatprep.subr.bf16.mxu0 0
        %1816 = vmatpush1.bf16.msra.mxu0 %v1798
        %1817 = vmatprep.subr.bf16.mxu0 0
        %1818 = vmatpush1.bf16.msra.mxu0 %v1799
        %1819 = vmatprep.subr.bf16.mxu0 0
        %1820 = vmatpush1.bf16.msra.mxu0 %v1800
        %1821 = vmatprep.subr.bf16.mxu0 0
        %1822 = vmatpush1.bf16.msra.mxu0 %v1801
        %1823 = vmatprep.subr.bf16.mxu0 0
        %1824 = vmatpush1.bf16.msra.mxu0 %v1802
        %1825 = vmatprep.subr.bf16.mxu0 0
        %1826 = vmatpush1.bf16.msra.mxu0 %v1803
        %1827 = vmatprep.subr.bf16.mxu0 0
        %1828 = vmatpush1.bf16.msra.mxu0 %v1804
        %1829 = vmatprep.subr.bf16.mxu0 0
        %1830 = vmatpush1.bf16.msra.mxu0 0
        %1831 = vmatprep.subr.bf16.mxu0 0
        %1832 = vmatpush1.bf16.msra.mxu0 0
        %1833 = vmatprep.subr.bf16.mxu0 0
        %1834 = vmatpush1.bf16.msra.mxu0 0
        %1835 = vmatprep.subr.bf16.mxu0 0
        %1836 = vmatpush1.bf16.msra.mxu0 0
        %1837 = vmatprep.subr.bf16.mxu0 0
        %1838 = vmatpush1.bf16.msra.mxu0 0
        %1839 = vmatprep.subr.bf16.mxu0 0
        %1840 = vmatpush1.bf16.msra.mxu0 0
        %1841 = vmatprep.subr.bf16.mxu0 0
        %1842 = vmatpush1.bf16.msra.mxu0 0
        %1843 = vmatprep.subr.bf16.mxu0 0
        %1844 = vmatpush1.bf16.msra.mxu0 0
        %1845 = vmatprep.mubr.bf16.mxu0 0
        %1846 = vmatmul.mubr.bf16.gmra.mrb[0].mxu0 %v1740
        %v1847 = vpop.f32.mrb[0].mxu0
        %v1848 = vadd.f32 %v1763, %v1847
        %v1849 = vpop.f32.mrb[0].mxu0
        %v1850 = vpop.f32.mrb[0].mxu0
        %v1851 = vadd.f32 %v1763, %v1850
        %v1852 = vpop.f32.mrb[0].mxu0
        %1853 = vmatprep.mubr.bf16.mxu0 0
        %1854 = vmatmul.mubr.bf16.gmra.mrb[0].mxu0 %v1741
        %v1855 = vpop.f32.mrb[0].mxu0
        %v1856 = vadd.f32 %v1763, %v1855
        %v1857 = vpop.f32.mrb[0].mxu0
        %v1858 = vpop.f32.mrb[0].mxu0
        %v1859 = vadd.f32 %v1763, %v1858
        %v1860 = vpop.f32.mrb[0].mxu0
        %1861 = vdwg.mxu0
        %v1862 = vadd.f32 %v928, %v1848
        %v1863 = vadd.f32 %v929, %v1851
        %v1864 = vadd.f32 %v930, %v1856
        %v1865 = vadd.f32 %v931, %v1859
        %v1866 = vld [vmem:[%s821] sm:$0x1]
        %v1867 = vld [vmem:[%s824] sm:$0x1]
        %1868 = vadd.xlane.f32.xlu0 %v1862
        %v1869 = vpop.xlane.xlu0 %1868
        %1870 = vadd.xlane.f32.xlu0 %v1863
        %v1871 = vpop.xlane.xlu0 %1870
        %1872 = vadd.xlane.f32.xlu0 %v1864
        %v1873 = vpop.xlane.xlu0 %1872
        %1874 = vadd.xlane.f32.xlu0 %v1865
        %v1875 = vpop.xlane.xlu0 %1874
        %v1876 = vrcp.pop 128.0
        %v1877 = vmul.f32 %v1869, %v1876
        %v1878 = vmul.f32 %v1871, %v1876
        %v1879 = vmul.f32 %v1873, %v1876
        %v1880 = vmul.f32 %v1875, %v1876
        %v1881 = vsub.f32 %v1862, %v1877
        %v1882 = vsub.f32 %v1863, %v1878
        %v1883 = vsub.f32 %v1864, %v1879
        %v1884 = vsub.f32 %v1865, %v1880
        %v1885 = vmul.f32 %v1881, %v1881
        %v1886 = vmul.f32 %v1882, %v1882
        %v1887 = vmul.f32 %v1883, %v1883
        %v1888 = vmul.f32 %v1884, %v1884
        %1889 = vadd.xlane.f32.xlu0 %v1885
        %v1890 = vpop.xlane.xlu0 %1889
        %1891 = vadd.xlane.f32.xlu0 %v1886
        %v1892 = vpop.xlane.xlu0 %1891
        %1893 = vadd.xlane.f32.xlu0 %v1887
        %v1894 = vpop.xlane.xlu0 %1893
        %1895 = vadd.xlane.f32.xlu0 %v1888
        %v1896 = vpop.xlane.xlu0 %1895
        %v1897 = vmul.f32 %v1890, %v1876
        %v1898 = vmul.f32 %v1892, %v1876
        %v1899 = vmul.f32 %v1894, %v1876
        %v1900 = vmul.f32 %v1896, %v1876
        %v1901 = vadd.f32 %v1897, 1e-12
        %v1902 = vadd.f32 %v1898, 1e-12
        %v1903 = vadd.f32 %v1899, 1e-12
        %v1904 = vadd.f32 %v1900, 1e-12
        %v1905 = vrsqrt.pop %v1901
        %v1906 = vrsqrt.pop %v1902
        %v1907 = vrsqrt.pop %v1903
        %v1908 = vrsqrt.pop %v1904
        %v1909 = vmul.f32 %v1881, %v1905
        %v1910 = vmul.f32 %v1882, %v1906
        %v1911 = vmul.f32 %v1883, %v1907
        %v1912 = vmul.f32 %v1884, %v1908
        %v1914 = vlaneseq
        %v1915 = vshrl.u32 %v1914, 7
        %v1916 = vsub.s32 0, %v1915
        %v1917 = vrot.slane %v1866, %v1916
        %v1919 = vmul.f32 %v1909, %v1917
        %v1920 = vmul.f32 %v1910, %v1917
        %v1921 = vmul.f32 %v1911, %v1917
        %v1922 = vmul.f32 %v1912, %v1917
        %v1924 = vlaneseq
        %v1925 = vshrl.u32 %v1924, 7
        %v1926 = vsub.s32 0, %v1925
        %v1927 = vrot.slane %v1867, %v1926
        %v1929 = vadd.f32 %v1919, %v1927
        %v1930 = vadd.f32 %v1920, %v1927
        %v1931 = vadd.f32 %v1921, %v1927
        %v1932 = vadd.f32 %v1922, %v1927
        %v1933 = vpack.c.bf16 %v1930, %v1929
        %v1934 = vpack.c.bf16 %v1932, %v1931
        %v1935 = vld [vmem:[%s829] sm:$0xff]
        %v1936 = vld [vmem:[%s829 + $0x8] sm:$0xff]
        %v1937 = vld [vmem:[%s829 + $0x10] sm:$0xff]
        %v1938 = vld [vmem:[%s829 + $0x18] sm:$0xff]
        %v1939 = vld [vmem:[%s829 + $0x20] sm:$0xff]
        %v1940 = vld [vmem:[%s829 + $0x28] sm:$0xff]
        %v1941 = vld [vmem:[%s829 + $0x30] sm:$0xff]
        %v1942 = vld [vmem:[%s829 + $0x38] sm:$0xff]
        %v1943 = vld [vmem:[%s829 + $0x40] sm:$0xff]
        %v1944 = vld [vmem:[%s829 + $0x48] sm:$0xff]
        %v1945 = vld [vmem:[%s829 + $0x50] sm:$0xff]
        %v1946 = vld [vmem:[%s829 + $0x58] sm:$0xff]
        %v1947 = vld [vmem:[%s829 + $0x60] sm:$0xff]
        %v1948 = vld [vmem:[%s829 + $0x68] sm:$0xff]
        %v1949 = vld [vmem:[%s829 + $0x70] sm:$0xff]
        %v1950 = vld [vmem:[%s829 + $0x78] sm:$0xff]
        %v1951 = vld [vmem:[%s833] sm:$0x3]
        %v1953 = vlaneseq
        %v1954 = vshrl.u32 %v1953, 7
        %v1955 = vsub.s32 0, %v1954
        %v1956 = vrot.slane %v1951, %v1955
        %v1957 = vlaneseq
        %v1958 = vshrl.u32 %v1957, 7
        %v1959 = vsub.s32 1, %v1958
        %v1960 = vrot.slane %v1951, %v1959
        %v1979 = vunpack.c.l.b16 %v1935
        %v1980 = vunpack.c.h.b16 %v1935
        %v1981 = vunpack.c.l.b16 %v1936
        %v1982 = vunpack.c.h.b16 %v1936
        %v1983 = vunpack.c.l.b16 %v1937
        %v1984 = vunpack.c.h.b16 %v1937
        %v1985 = vunpack.c.l.b16 %v1938
        %v1986 = vunpack.c.h.b16 %v1938
        %v1987 = vunpack.c.l.b16 %v1939
        %v1988 = vunpack.c.h.b16 %v1939
        %v1989 = vunpack.c.l.b16 %v1940
        %v1990 = vunpack.c.h.b16 %v1940
        %v1991 = vunpack.c.l.b16 %v1941
        %v1992 = vunpack.c.h.b16 %v1941
        %v1993 = vunpack.c.l.b16 %v1942
        %v1994 = vunpack.c.h.b16 %v1942
        %v1995 = vunpack.c.l.b16 %v1943
        %v1996 = vunpack.c.h.b16 %v1943
        %v1997 = vunpack.c.l.b16 %v1944
        %v1998 = vunpack.c.h.b16 %v1944
        %v1999 = vunpack.c.l.b16 %v1945
        %v2000 = vunpack.c.h.b16 %v1945
        %v2001 = vunpack.c.l.b16 %v1946
        %v2002 = vunpack.c.h.b16 %v1946
        %v2003 = vunpack.c.l.b16 %v1947
        %v2004 = vunpack.c.h.b16 %v1947
        %v2005 = vunpack.c.l.b16 %v1948
        %v2006 = vunpack.c.h.b16 %v1948
        %v2007 = vunpack.c.l.b16 %v1949
        %v2008 = vunpack.c.h.b16 %v1949
        %v2009 = vunpack.c.l.b16 %v1950
        %v2010 = vunpack.c.h.b16 %v1950
        %v2011 = vpack.c.b16 %v1981, %v1979
        %v2012 = vpack.c.b16 %v1982, %v1980
        %v2013 = vpack.c.b16 %v1985, %v1983
        %v2014 = vpack.c.b16 %v1986, %v1984
        %v2015 = vpack.c.b16 %v1989, %v1987
        %v2016 = vpack.c.b16 %v1990, %v1988
        %v2017 = vpack.c.b16 %v1993, %v1991
        %v2018 = vpack.c.b16 %v1994, %v1992
        %v2019 = vpack.c.b16 %v1997, %v1995
        %v2020 = vpack.c.b16 %v1998, %v1996
        %v2021 = vpack.c.b16 %v2001, %v1999
        %v2022 = vpack.c.b16 %v2002, %v2000
        %v2023 = vpack.c.b16 %v2005, %v2003
        %v2024 = vpack.c.b16 %v2006, %v2004
        %v2025 = vpack.c.b16 %v2009, %v2007
        %v2026 = vpack.c.b16 %v2010, %v2008
        %2043 = vmatprep.subr.bf16.mxu0 %v2012
        %2044 = vmatpush1.bf16.msra.mxu0 %v2011
        %2045 = vmatprep.subr.bf16.mxu0 %v2014
        %2046 = vmatpush1.bf16.msra.mxu0 %v2013
        %2047 = vmatprep.subr.bf16.mxu0 %v2016
        %2048 = vmatpush1.bf16.msra.mxu0 %v2015
        %2049 = vmatprep.subr.bf16.mxu0 %v2018
        %2050 = vmatpush1.bf16.msra.mxu0 %v2017
        %2051 = vmatprep.subr.bf16.mxu0 %v2020
        %2052 = vmatpush1.bf16.msra.mxu0 %v2019
        %2053 = vmatprep.subr.bf16.mxu0 %v2022
        %2054 = vmatpush1.bf16.msra.mxu0 %v2021
        %2055 = vmatprep.subr.bf16.mxu0 %v2024
        %2056 = vmatpush1.bf16.msra.mxu0 %v2023
        %2057 = vmatprep.subr.bf16.mxu0 %v2026
        %2058 = vmatpush1.bf16.msra.mxu0 %v2025
        %2059 = vmatprep.subr.bf16.mxu0 0
        %2060 = vmatpush1.bf16.msra.mxu0 0
        %2061 = vmatprep.subr.bf16.mxu0 0
        %2062 = vmatpush1.bf16.msra.mxu0 0
        %2063 = vmatprep.subr.bf16.mxu0 0
        %2064 = vmatpush1.bf16.msra.mxu0 0
        %2065 = vmatprep.subr.bf16.mxu0 0
        %2066 = vmatpush1.bf16.msra.mxu0 0
        %2067 = vmatprep.subr.bf16.mxu0 0
        %2068 = vmatpush1.bf16.msra.mxu0 0
        %2069 = vmatprep.subr.bf16.mxu0 0
        %2070 = vmatpush1.bf16.msra.mxu0 0
        %2071 = vmatprep.subr.bf16.mxu0 0
        %2072 = vmatpush1.bf16.msra.mxu0 0
        %2073 = vmatprep.subr.bf16.mxu0 0
        %2074 = vmatpush1.bf16.msra.mxu0 0
        %2075 = vmatprep.mubr.bf16.mxu0 0
        %2076 = vmatmul.mubr.bf16.gmra.mrb[0].mxu0 %v1933
        %v2077 = vpop.f32.mrb[0].mxu0
        %v2078 = vadd.f32 %v1956, %v2077
        %v2079 = vpop.f32.mrb[0].mxu0
        %v2080 = vadd.f32 %v1960, %v2079
        %v2081 = vpop.f32.mrb[0].mxu0
        %v2082 = vadd.f32 %v1956, %v2081
        %v2083 = vpop.f32.mrb[0].mxu0
        %v2084 = vadd.f32 %v1960, %v2083
        %2085 = vmatprep.mubr.bf16.mxu0 0
        %2086 = vmatmul.mubr.bf16.gmra.mrb[0].mxu0 %v1934
        %v2087 = vpop.f32.mrb[0].mxu0
        %v2088 = vadd.f32 %v1956, %v2087
        %v2089 = vpop.f32.mrb[0].mxu0
        %v2090 = vadd.f32 %v1960, %v2089
        %v2091 = vpop.f32.mrb[0].mxu0
        %v2092 = vadd.f32 %v1956, %v2091
        %v2093 = vpop.f32.mrb[0].mxu0
        %v2094 = vadd.f32 %v1960, %v2093
        %2095 = vdwg.mxu0
        %v2096 = vmul.f32 %v2078, %v2078
        %v2097 = vmul.f32 %v2080, %v2080
        %v2098 = vmul.f32 %v2082, %v2082
        %v2099 = vmul.f32 %v2084, %v2084
        %v2100 = vmul.f32 %v2088, %v2088
        %v2101 = vmul.f32 %v2090, %v2090
        %v2102 = vmul.f32 %v2092, %v2092
        %v2103 = vmul.f32 %v2094, %v2094
        %v2104 = vmul.f32 %v2078, %v2096
        %v2105 = vmul.f32 %v2080, %v2097
        %v2106 = vmul.f32 %v2082, %v2098
        %v2107 = vmul.f32 %v2084, %v2099
        %v2108 = vmul.f32 %v2088, %v2100
        %v2109 = vmul.f32 %v2090, %v2101
        %v2110 = vmul.f32 %v2092, %v2102
        %v2111 = vmul.f32 %v2094, %v2103
        %v2112 = vmul.f32 %v2104, 0.044715
        %v2113 = vmul.f32 %v2105, 0.044715
        %v2114 = vmul.f32 %v2106, 0.044715
        %v2115 = vmul.f32 %v2107, 0.044715
        %v2116 = vmul.f32 %v2108, 0.044715
        %v2117 = vmul.f32 %v2109, 0.044715
        %v2118 = vmul.f32 %v2110, 0.044715
        %v2119 = vmul.f32 %v2111, 0.044715
        %v2120 = vadd.f32 %v2078, %v2112
        %v2121 = vadd.f32 %v2080, %v2113
        %v2122 = vadd.f32 %v2082, %v2114
        %v2123 = vadd.f32 %v2084, %v2115
        %v2124 = vadd.f32 %v2088, %v2116
        %v2125 = vadd.f32 %v2090, %v2117
        %v2126 = vadd.f32 %v2092, %v2118
        %v2127 = vadd.f32 %v2094, %v2119
        %v2128 = vmul.f32 %v2120, 0.7978846
        %v2129 = vmul.f32 %v2121, 0.7978846
        %v2130 = vmul.f32 %v2122, 0.7978846
        %v2131 = vmul.f32 %v2123, 0.7978846
        %v2132 = vmul.f32 %v2124, 0.7978846
        %v2133 = vmul.f32 %v2125, 0.7978846
        %v2134 = vmul.f32 %v2126, 0.7978846
        %v2135 = vmul.f32 %v2127, 0.7978846
        %v2136 = vtanh.pop %v2128
        %v2137 = vtanh.pop %v2129
        %v2138 = vtanh.pop %v2130
        %v2139 = vtanh.pop %v2131
        %v2140 = vtanh.pop %v2132
        %v2141 = vtanh.pop %v2133
        %v2142 = vtanh.pop %v2134
        %v2143 = vtanh.pop %v2135
        %v2144 = vadd.f32 %v2136, 1.0
        %v2145 = vadd.f32 %v2137, 1.0
        %v2146 = vadd.f32 %v2138, 1.0
        %v2147 = vadd.f32 %v2139, 1.0
        %v2148 = vadd.f32 %v2140, 1.0
        %v2149 = vadd.f32 %v2141, 1.0
        %v2150 = vadd.f32 %v2142, 1.0
        %v2151 = vadd.f32 %v2143, 1.0
        %v2152 = vmul.f32 %v2144, 0.5
        %v2153 = vmul.f32 %v2145, 0.5
        %v2154 = vmul.f32 %v2146, 0.5
        %v2155 = vmul.f32 %v2147, 0.5
        %v2156 = vmul.f32 %v2148, 0.5
        %v2157 = vmul.f32 %v2149, 0.5
        %v2158 = vmul.f32 %v2150, 0.5
        %v2159 = vmul.f32 %v2151, 0.5
        %v2160 = vmul.f32 %v2078, %v2152
        %v2161 = vmul.f32 %v2080, %v2153
        %v2162 = vmul.f32 %v2082, %v2154
        %v2163 = vmul.f32 %v2084, %v2155
        %v2164 = vmul.f32 %v2088, %v2156
        %v2165 = vmul.f32 %v2090, %v2157
        %v2166 = vmul.f32 %v2092, %v2158
        %v2167 = vmul.f32 %v2094, %v2159
        %v2168 = vpack.c.bf16 %v2162, %v2160
        %v2169 = vpack.c.bf16 %v2163, %v2161
        %v2170 = vpack.c.bf16 %v2166, %v2164
        %v2171 = vpack.c.bf16 %v2167, %v2165
        %v2172 = vld [vmem:[%s838] sm:$0xf]
        %v2173 = vld [vmem:[%s838 + $0x4] sm:$0xf]
        %v2174 = vld [vmem:[%s838 + $0x8] sm:$0xf]
        %v2175 = vld [vmem:[%s838 + $0xc] sm:$0xf]
        %v2176 = vld [vmem:[%s838 + $0x10] sm:$0xf]
        %v2177 = vld [vmem:[%s838 + $0x14] sm:$0xf]
        %v2178 = vld [vmem:[%s838 + $0x18] sm:$0xf]
        %v2179 = vld [vmem:[%s838 + $0x1c] sm:$0xf]
        %v2180 = vld [vmem:[%s838 + $0x20] sm:$0xf]
        %v2181 = vld [vmem:[%s838 + $0x24] sm:$0xf]
        %v2182 = vld [vmem:[%s838 + $0x28] sm:$0xf]
        %v2183 = vld [vmem:[%s838 + $0x2c] sm:$0xf]
        %v2184 = vld [vmem:[%s838 + $0x30] sm:$0xf]
        %v2185 = vld [vmem:[%s838 + $0x34] sm:$0xf]
        %v2186 = vld [vmem:[%s838 + $0x38] sm:$0xf]
        %v2187 = vld [vmem:[%s838 + $0x3c] sm:$0xf]
        %v2188 = vld [vmem:[%s838 + $0x40] sm:$0xf]
        %v2189 = vld [vmem:[%s838 + $0x44] sm:$0xf]
        %v2190 = vld [vmem:[%s838 + $0x48] sm:$0xf]
        %v2191 = vld [vmem:[%s838 + $0x4c] sm:$0xf]
        %v2192 = vld [vmem:[%s838 + $0x50] sm:$0xf]
        %v2193 = vld [vmem:[%s838 + $0x54] sm:$0xf]
        %v2194 = vld [vmem:[%s838 + $0x58] sm:$0xf]
        %v2195 = vld [vmem:[%s838 + $0x5c] sm:$0xf]
        %v2196 = vld [vmem:[%s838 + $0x60] sm:$0xf]
        %v2197 = vld [vmem:[%s838 + $0x64] sm:$0xf]
        %v2198 = vld [vmem:[%s838 + $0x68] sm:$0xf]
        %v2199 = vld [vmem:[%s838 + $0x6c] sm:$0xf]
        %v2200 = vld [vmem:[%s838 + $0x70] sm:$0xf]
        %v2201 = vld [vmem:[%s838 + $0x74] sm:$0xf]
        %v2202 = vld [vmem:[%s838 + $0x78] sm:$0xf]
        %v2203 = vld [vmem:[%s838 + $0x7c] sm:$0xf]
        %v2204 = vld [vmem:[%s841] sm:$0x1]
        %v2206 = vlaneseq
        %v2207 = vshrl.u32 %v2206, 7
        %v2208 = vsub.s32 0, %v2207
        %v2209 = vrot.slane %v2204, %v2208
        %v2243 = vunpack.c.l.b16 %v2172
        %v2244 = vunpack.c.l.b16 %v2173
        %v2245 = vunpack.c.l.b16 %v2174
        %v2246 = vunpack.c.l.b16 %v2175
        %v2247 = vunpack.c.l.b16 %v2176
        %v2248 = vunpack.c.l.b16 %v2177
        %v2249 = vunpack.c.l.b16 %v2178
        %v2250 = vunpack.c.l.b16 %v2179
        %v2251 = vunpack.c.l.b16 %v2180
        %v2252 = vunpack.c.l.b16 %v2181
        %v2253 = vunpack.c.l.b16 %v2182
        %v2254 = vunpack.c.l.b16 %v2183
        %v2255 = vunpack.c.l.b16 %v2184
        %v2256 = vunpack.c.l.b16 %v2185
        %v2257 = vunpack.c.l.b16 %v2186
        %v2258 = vunpack.c.l.b16 %v2187
        %v2259 = vunpack.c.l.b16 %v2188
        %v2260 = vunpack.c.l.b16 %v2189
        %v2261 = vunpack.c.l.b16 %v2190
        %v2262 = vunpack.c.l.b16 %v2191
        %v2263 = vunpack.c.l.b16 %v2192
        %v2264 = vunpack.c.l.b16 %v2193
        %v2265 = vunpack.c.l.b16 %v2194
        %v2266 = vunpack.c.l.b16 %v2195
        %v2267 = vunpack.c.l.b16 %v2196
        %v2268 = vunpack.c.l.b16 %v2197
        %v2269 = vunpack.c.l.b16 %v2198
        %v2270 = vunpack.c.l.b16 %v2199
        %v2271 = vunpack.c.l.b16 %v2200
        %v2272 = vunpack.c.l.b16 %v2201
        %v2273 = vunpack.c.l.b16 %v2202
        %v2274 = vunpack.c.l.b16 %v2203
        %v2275 = vpack.c.b16 %v2244, %v2243
        %v2276 = vpack.c.b16 %v2246, %v2245
        %v2277 = vpack.c.b16 %v2248, %v2247
        %v2278 = vpack.c.b16 %v2250, %v2249
        %v2279 = vpack.c.b16 %v2252, %v2251
        %v2280 = vpack.c.b16 %v2254, %v2253
        %v2281 = vpack.c.b16 %v2256, %v2255
        %v2282 = vpack.c.b16 %v2258, %v2257
        %v2283 = vpack.c.b16 %v2260, %v2259
        %v2284 = vpack.c.b16 %v2262, %v2261
        %v2285 = vpack.c.b16 %v2264, %v2263
        %v2286 = vpack.c.b16 %v2266, %v2265
        %v2287 = vpack.c.b16 %v2268, %v2267
        %v2288 = vpack.c.b16 %v2270, %v2269
        %v2289 = vpack.c.b16 %v2272, %v2271
        %v2290 = vpack.c.b16 %v2274, %v2273
        %2307 = vmatprep.subr.bf16.mxu0 0
        %2308 = vmatpush1.bf16.msra.mxu0 %v2275
        %2309 = vmatprep.subr.bf16.mxu0 0
        %2310 = vmatpush1.bf16.msra.mxu0 %v2276
        %2311 = vmatprep.subr.bf16.mxu0 0
        %2312 = vmatpush1.bf16.msra.mxu0 %v2277
        %2313 = vmatprep.subr.bf16.mxu0 0
        %2314 = vmatpush1.bf16.msra.mxu0 %v2278
        %2315 = vmatprep.subr.bf16.mxu0 0
        %2316 = vmatpush1.bf16.msra.mxu0 %v2279
        %2317 = vmatprep.subr.bf16.mxu0 0
        %2318 = vmatpush1.bf16.msra.mxu0 %v2280
        %2319 = vmatprep.subr.bf16.mxu0 0
        %2320 = vmatpush1.bf16.msra.mxu0 %v2281
        %2321 = vmatprep.subr.bf16.mxu0 0
        %2322 = vmatpush1.bf16.msra.mxu0 %v2282
        %2323 = vmatprep.subr.bf16.mxu0 0
        %2324 = vmatpush1.bf16.msra.mxu0 %v2283
        %2325 = vmatprep.subr.bf16.mxu0 0
        %2326 = vmatpush1.bf16.msra.mxu0 %v2284
        %2327 = vmatprep.subr.bf16.mxu0 0
        %2328 = vmatpush1.bf16.msra.mxu0 %v2285
        %2329 = vmatprep.subr.bf16.mxu0 0
        %2330 = vmatpush1.bf16.msra.mxu0 %v2286
        %2331 = vmatprep.subr.bf16.mxu0 0
        %2332 = vmatpush1.bf16.msra.mxu0 %v2287
        %2333 = vmatprep.subr.bf16.mxu0 0
        %2334 = vmatpush1.bf16.msra.mxu0 %v2288
        %2335 = vmatprep.subr.bf16.mxu0 0
        %2336 = vmatpush1.bf16.msra.mxu0 %v2289
        %2337 = vmatprep.subr.bf16.mxu0 0
        %2338 = vmatpush1.bf16.msra.mxu0 %v2290
        %2339 = vmatprep.mubr.bf16.mxu0 %v2169
        %2340 = vmatmul.mubr.bf16.gmra.mrb[0].mxu0 %v2168
        %v2341 = vpop.f32.mrb[0].mxu0
        %v2342 = vadd.f32 %v2209, %v2341
        %v2343 = vpop.f32.mrb[0].mxu0
        %v2344 = vpop.f32.mrb[0].mxu0
        %v2345 = vadd.f32 %v2209, %v2344
        %v2346 = vpop.f32.mrb[0].mxu0
        %2347 = vmatprep.mubr.bf16.mxu0 %v2171
        %2348 = vmatmul.mubr.bf16.gmra.mrb[0].mxu0 %v2170
        %v2349 = vpop.f32.mrb[0].mxu0
        %v2350 = vadd.f32 %v2209, %v2349
        %v2351 = vpop.f32.mrb[0].mxu0
        %v2352 = vpop.f32.mrb[0].mxu0
        %v2353 = vadd.f32 %v2209, %v2352
        %v2354 = vpop.f32.mrb[0].mxu0
        %2355 = vdwg.mxu0
        %v2356 = vadd.f32 %v1929, %v2342
        %v2357 = vadd.f32 %v1930, %v2345
        %v2358 = vadd.f32 %v1931, %v2350
        %v2359 = vadd.f32 %v1932, %v2353
        %v2360 = vld [vmem:[%s844] sm:$0x1]
        %v2361 = vld [vmem:[%s847] sm:$0x1]
        %2362 = vadd.xlane.f32.xlu0 %v2356
        %v2363 = vpop.xlane.xlu0 %2362
        %2364 = vadd.xlane.f32.xlu0 %v2357
        %v2365 = vpop.xlane.xlu0 %2364
        %2366 = vadd.xlane.f32.xlu0 %v2358
        %v2367 = vpop.xlane.xlu0 %2366
        %2368 = vadd.xlane.f32.xlu0 %v2359
        %v2369 = vpop.xlane.xlu0 %2368
        %v2370 = vmul.f32 %v2363, %v1876
        %v2371 = vmul.f32 %v2365, %v1876
        %v2372 = vmul.f32 %v2367, %v1876
        %v2373 = vmul.f32 %v2369, %v1876
        %v2374 = vsub.f32 %v2356, %v2370
        %v2375 = vsub.f32 %v2357, %v2371
        %v2376 = vsub.f32 %v2358, %v2372
        %v2377 = vsub.f32 %v2359, %v2373
        %v2378 = vmul.f32 %v2374, %v2374
        %v2379 = vmul.f32 %v2375, %v2375
        %v2380 = vmul.f32 %v2376, %v2376
        %v2381 = vmul.f32 %v2377, %v2377
        %2382 = vadd.xlane.f32.xlu0 %v2378
        %v2383 = vpop.xlane.xlu0 %2382
        %2384 = vadd.xlane.f32.xlu0 %v2379
        %v2385 = vpop.xlane.xlu0 %2384
        %2386 = vadd.xlane.f32.xlu0 %v2380
        %v2387 = vpop.xlane.xlu0 %2386
        %2388 = vadd.xlane.f32.xlu0 %v2381
        %v2389 = vpop.xlane.xlu0 %2388
        %v2390 = vmul.f32 %v2383, %v1876
        %v2391 = vmul.f32 %v2385, %v1876
        %v2392 = vmul.f32 %v2387, %v1876
        %v2393 = vmul.f32 %v2389, %v1876
        %v2394 = vadd.f32 %v2390, 1e-12
        %v2395 = vadd.f32 %v2391, 1e-12
        %v2396 = vadd.f32 %v2392, 1e-12
        %v2397 = vadd.f32 %v2393, 1e-12
        %v2398 = vrsqrt.pop %v2394
        %v2399 = vrsqrt.pop %v2395
        %v2400 = vrsqrt.pop %v2396
        %v2401 = vrsqrt.pop %v2397
        %v2402 = vmul.f32 %v2374, %v2398
        %v2403 = vmul.f32 %v2375, %v2399
        %v2404 = vmul.f32 %v2376, %v2400
        %v2405 = vmul.f32 %v2377, %v2401
        %v2407 = vlaneseq
        %v2408 = vshrl.u32 %v2407, 7
        %v2409 = vsub.s32 0, %v2408
        %v2410 = vrot.slane %v2360, %v2409
        %v2412 = vmul.f32 %v2402, %v2410
        %v2413 = vmul.f32 %v2403, %v2410
        %v2414 = vmul.f32 %v2404, %v2410
        %v2415 = vmul.f32 %v2405, %v2410
        %v2417 = vlaneseq
        %v2418 = vshrl.u32 %v2417, 7
        %v2419 = vsub.s32 0, %v2418
        %v2420 = vrot.slane %v2361, %v2419
        %v2422 = vadd.f32 %v2412, %v2420
        %v2423 = vadd.f32 %v2413, %v2420
        %v2424 = vadd.f32 %v2414, %v2420
        %v2425 = vadd.f32 %v2415, %v2420
        %2426 = vst [vmem:[#allocation2] sm:$0xff] %v2422
        %2427 = vst [vmem:[#allocation2 + $0x8] sm:$0xff] %v2423
        %2428 = vst [vmem:[#allocation2 + $0x10] sm:$0xff] %v2424
        %2429 = vst [vmem:[#allocation2 + $0x18] sm:$0xff] %v2425
        %p2430 = scmp.eq.s32.totalorder %s34, 1
        // Predicated region
        $region113: #{bert_tag_recommender_forward.1} parent=107 // pred_check
          %p2431 = pneg %p2430
        $region114: #{bert_tag_recommender_forward.1} parent=107 // pred_check_branch
          %2433 = sbr.rel (%p2431) target = $region116
        $region115: #{bert_tag_recommender_forward.1} parent=107 // pred_region
          %v2434 = vlaneseq
          %v2435 = vshrl.u32 %v2434, 7
          %v2436 = vlaneseq
          %v2437 = vand.u32 %v2436, 127
          %v2438 = vmul.u32 %v2435, 16
          %vm2439 = vcmp.eq.s32.totalorder %v2437, %v2438
          %v2440 = vsel %vm2439, 1, 0
          %v2441 = vcvt.s32.f32 %v2440
          %v2442 = vpack.c.bf16 %v2441, %v2441
          %v2443 = vpack.c.bf16 %v2423, %v2422
          %v2444 = vpack.c.bf16 %v2425, %v2424
          %v2446 = vsel %vm1283, %v2442, 0
          %2448 = vmatprep.subr.bf16.mxu0 0
          %2449 = vmatpush1.bf16.msra.mxu0 %v2443
          %2450 = vmatprep.subr.bf16.mxu0 0
          %2451 = vmatpush1.bf16.msra.mxu0 %v2444
          %2452 = vmatprep.subr.bf16.mxu0 0
          %2453 = vmatpush1.bf16.msra.mxu0 0
          %2454 = vmatprep.subr.bf16.mxu0 0
          %2455 = vmatpush1.bf16.msra.mxu0 0
          %2456 = vmatprep.subr.bf16.mxu0 0
          %2457 = vmatpush1.bf16.msra.mxu0 0
          %2458 = vmatprep.subr.bf16.mxu0 0
          %2459 = vmatpush1.bf16.msra.mxu0 0
          %2460 = vmatprep.subr.bf16.mxu0 0
          %2461 = vmatpush1.bf16.msra.mxu0 0
          %2462 = vmatprep.subr.bf16.mxu0 0
          %2463 = vmatpush1.bf16.msra.mxu0 0
          %2464 = vmatprep.subr.bf16.mxu0 0
          %2465 = vmatpush1.bf16.msra.mxu0 0
          %2466 = vmatprep.subr.bf16.mxu0 0
          %2467 = vmatpush1.bf16.msra.mxu0 0
          %2468 = vmatprep.subr.bf16.mxu0 0
          %2469 = vmatpush1.bf16.msra.mxu0 0
          %2470 = vmatprep.subr.bf16.mxu0 0
          %2471 = vmatpush1.bf16.msra.mxu0 0
          %2472 = vmatprep.subr.bf16.mxu0 0
          %2473 = vmatpush1.bf16.msra.mxu0 0
          %2474 = vmatprep.subr.bf16.mxu0 0
          %2475 = vmatpush1.bf16.msra.mxu0 0
          %2476 = vmatprep.subr.bf16.mxu0 0
          %2477 = vmatpush1.bf16.msra.mxu0 0
          %2478 = vmatprep.subr.bf16.mxu0 0
          %2479 = vmatpush1.bf16.msra.mxu0 0
          %2480 = vmatprep.mubr.bf16.mxu0 0
          %2481 = vmatmul.mubr.bf16.gmra.mrb[0].mxu0 %v2446
          %v2482 = vpop.f32.mrb[0].mxu0
          %v2483 = vadd.f32 0.0, %v2482
          %v2484 = vpop.f32.mrb[0].mxu0
          %v2485 = vpop.f32.mrb[0].mxu0
          %v2486 = vpop.f32.mrb[0].mxu0
          %2487 = vdwg.mxu0
          %v2488 = vpack.c.bf16 %v2483, %v2483
          %v2489 = vld [vmem:[%s16] sm:$0xf]
          %v2490 = vld [vmem:[%s16 + $0x4] sm:$0xf]
          %v2491 = vld [vmem:[%s16 + $0x8] sm:$0xf]
          %v2492 = vld [vmem:[%s16 + $0xc] sm:$0xf]
          %v2493 = vld [vmem:[%s16 + $0x10] sm:$0xf]
          %v2494 = vld [vmem:[%s16 + $0x14] sm:$0xf]
          %v2495 = vld [vmem:[%s16 + $0x18] sm:$0xf]
          %v2496 = vld [vmem:[%s16 + $0x1c] sm:$0xf]
          %v2497 = vld [vmem:[%s16 + $0x20] sm:$0xf]
          %v2498 = vld [vmem:[%s16 + $0x24] sm:$0xf]
          %v2499 = vld [vmem:[%s16 + $0x28] sm:$0xf]
          %v2500 = vld [vmem:[%s16 + $0x2c] sm:$0xf]
          %v2501 = vld [vmem:[%s16 + $0x30] sm:$0xf]
          %v2502 = vld [vmem:[%s16 + $0x34] sm:$0xf]
          %v2503 = vld [vmem:[%s16 + $0x38] sm:$0xf]
          %v2504 = vld [vmem:[%s16 + $0x3c] sm:$0xf]
          %v2505 = vld [vmem:[%s17] sm:$0x1]
          %v2507 = vlaneseq
          %v2508 = vshrl.u32 %v2507, 7
          %v2509 = vsub.s32 0, %v2508
          %v2510 = vrot.slane %v2505, %v2509
          %v2528 = vunpack.c.l.b16 %v2489
          %v2529 = vunpack.c.l.b16 %v2490
          %v2530 = vunpack.c.l.b16 %v2491
          %v2531 = vunpack.c.l.b16 %v2492
          %v2532 = vunpack.c.l.b16 %v2493
          %v2533 = vunpack.c.l.b16 %v2494
          %v2534 = vunpack.c.l.b16 %v2495
          %v2535 = vunpack.c.l.b16 %v2496
          %v2536 = vunpack.c.l.b16 %v2497
          %v2537 = vunpack.c.l.b16 %v2498
          %v2538 = vunpack.c.l.b16 %v2499
          %v2539 = vunpack.c.l.b16 %v2500
          %v2540 = vunpack.c.l.b16 %v2501
          %v2541 = vunpack.c.l.b16 %v2502
          %v2542 = vunpack.c.l.b16 %v2503
          %v2543 = vunpack.c.l.b16 %v2504
          %v2544 = vpack.c.b16 %v2529, %v2528
          %v2545 = vpack.c.b16 %v2531, %v2530
          %v2546 = vpack.c.b16 %v2533, %v2532
          %v2547 = vpack.c.b16 %v2535, %v2534
          %v2548 = vpack.c.b16 %v2537, %v2536
          %v2549 = vpack.c.b16 %v2539, %v2538
          %v2550 = vpack.c.b16 %v2541, %v2540
          %v2551 = vpack.c.b16 %v2543, %v2542
          %2560 = vmatprep.subr.bf16.mxu0 0
          %2561 = vmatpush1.bf16.msra.mxu0 %v2544
          %2562 = vmatprep.subr.bf16.mxu0 0
          %2563 = vmatpush1.bf16.msra.mxu0 %v2545
          %2564 = vmatprep.subr.bf16.mxu0 0
          %2565 = vmatpush1.bf16.msra.mxu0 %v2546
          %2566 = vmatprep.subr.bf16.mxu0 0
          %2567 = vmatpush1.bf16.msra.mxu0 %v2547
          %2568 = vmatprep.subr.bf16.mxu0 0
          %2569 = vmatpush1.bf16.msra.mxu0 %v2548
          %2570 = vmatprep.subr.bf16.mxu0 0
          %2571 = vmatpush1.bf16.msra.mxu0 %v2549
          %2572 = vmatprep.subr.bf16.mxu0 0
          %2573 = vmatpush1.bf16.msra.mxu0 %v2550
          %2574 = vmatprep.subr.bf16.mxu0 0
          %2575 = vmatpush1.bf16.msra.mxu0 %v2551
          %2576 = vmatprep.subr.bf16.mxu0 0
          %2577 = vmatpush1.bf16.msra.mxu0 0
          %2578 = vmatprep.subr.bf16.mxu0 0
          %2579 = vmatpush1.bf16.msra.mxu0 0
          %2580 = vmatprep.subr.bf16.mxu0 0
          %2581 = vmatpush1.bf16.msra.mxu0 0
          %2582 = vmatprep.subr.bf16.mxu0 0
          %2583 = vmatpush1.bf16.msra.mxu0 0
          %2584 = vmatprep.subr.bf16.mxu0 0
          %2585 = vmatpush1.bf16.msra.mxu0 0
          %2586 = vmatprep.subr.bf16.mxu0 0
          %2587 = vmatpush1.bf16.msra.mxu0 0
          %2588 = vmatprep.subr.bf16.mxu0 0
          %2589 = vmatpush1.bf16.msra.mxu0 0
          %2590 = vmatprep.subr.bf16.mxu0 0
          %2591 = vmatpush1.bf16.msra.mxu0 0
          %2592 = vmatprep.mubr.bf16.mxu0 0
          %2593 = vmatmul.mubr.bf16.gmra.mrb[0].mxu0 %v2488
          %v2594 = vpop.f32.mrb[0].mxu0
          %v2595 = vadd.f32 %v2510, %v2594
          %v2596 = vpop.f32.mrb[0].mxu0
          %v2597 = vpop.f32.mrb[0].mxu0
          %v2598 = vpop.f32.mrb[0].mxu0
          %2599 = vdwg.mxu0
          %v2600 = vtanh.pop %v2595
          %v2601 = vpack.c.bf16 %v2600, %v2600
          %v2602 = vld [vmem:[%s18] sm:$0xff]
          %v2603 = vld [vmem:[%s18 + $0x8] sm:$0xff]
          %v2604 = vld [vmem:[%s18 + $0x10] sm:$0xff]
          %v2605 = vld [vmem:[%s18 + $0x18] sm:$0xff]
          %v2606 = vld [vmem:[%s18 + $0x20] sm:$0xff]
          %v2607 = vld [vmem:[%s18 + $0x28] sm:$0xff]
          %v2608 = vld [vmem:[%s18 + $0x30] sm:$0xff]
          %v2609 = vld [vmem:[%s18 + $0x38] sm:$0xff]
          %v2610 = vld [vmem:[%s18 + $0x40] sm:$0xff]
          %v2611 = vld [vmem:[%s18 + $0x48] sm:$0xff]
          %v2612 = vld [vmem:[%s18 + $0x50] sm:$0xff]
          %v2613 = vld [vmem:[%s18 + $0x58] sm:$0xff]
          %v2614 = vld [vmem:[%s18 + $0x60] sm:$0xff]
          %v2615 = vld [vmem:[%s18 + $0x68] sm:$0xff]
          %v2616 = vld [vmem:[%s18 + $0x70] sm:$0xff]
          %v2617 = vld [vmem:[%s18 + $0x78] sm:$0xff]
          %v2618 = vld [vmem:[%s18 + $0x80] sm:$0xff]
          %v2619 = vld [vmem:[%s18 + $0x88] sm:$0xff]
          %v2620 = vld [vmem:[%s18 + $0x90] sm:$0xff]
          %v2621 = vld [vmem:[%s18 + $0x98] sm:$0xff]
          %v2622 = vld [vmem:[%s18 + $0xa0] sm:$0xff]
          %v2623 = vld [vmem:[%s18 + $0xa8] sm:$0xff]
          %v2624 = vld [vmem:[%s18 + $0xb0] sm:$0xff]
          %v2625 = vld [vmem:[%s18 + $0xb8] sm:$0xff]
          %v2626 = vld [vmem:[%s18 + $0xc0] sm:$0xff]
          %v2627 = vld [vmem:[%s18 + $0xc8] sm:$0xff]
          %v2628 = vld [vmem:[%s18 + $0xd0] sm:$0xff]
          %v2629 = vld [vmem:[%s18 + $0xd8] sm:$0xff]
          %v2630 = vld [vmem:[%s18 + $0xe0] sm:$0xff]
          %v2631 = vld [vmem:[%s18 + $0xe8] sm:$0xff]
          %v2632 = vld [vmem:[%s18 + $0xf0] sm:$0xff]
          %v2633 = vld [vmem:[%s18 + $0xf8] sm:$0xff]
          %v2634 = vld [vmem:[%s19] sm:$0xf]
          %v2636 = vlaneseq
          %v2637 = vshrl.u32 %v2636, 7
          %v2638 = vsub.s32 0, %v2637
          %v2639 = vrot.slane %v2634, %v2638
          %v2640 = vlaneseq
          %v2641 = vshrl.u32 %v2640, 7
          %v2642 = vsub.s32 1, %v2641
          %v2643 = vrot.slane %v2634, %v2642
          %v2644 = vlaneseq
          %v2645 = vshrl.u32 %v2644, 7
          %v2646 = vsub.s32 2, %v2645
          %v2647 = vrot.slane %v2634, %v2646
          %v2648 = vlaneseq
          %v2649 = vshrl.u32 %v2648, 7
          %v2650 = vsub.s32 3, %v2649
          %v2651 = vrot.slane %v2634, %v2650
          %v2688 = vunpack.c.l.b16 %v2602
          %v2689 = vunpack.c.h.b16 %v2602
          %v2690 = vunpack.c.l.b16 %v2603
          %v2691 = vunpack.c.h.b16 %v2603
          %v2692 = vunpack.c.l.b16 %v2604
          %v2693 = vunpack.c.h.b16 %v2604
          %v2694 = vunpack.c.l.b16 %v2605
          %v2695 = vunpack.c.h.b16 %v2605
          %v2696 = vunpack.c.l.b16 %v2606
          %v2697 = vunpack.c.h.b16 %v2606
          %v2698 = vunpack.c.l.b16 %v2607
          %v2699 = vunpack.c.h.b16 %v2607
          %v2700 = vunpack.c.l.b16 %v2608
          %v2701 = vunpack.c.h.b16 %v2608
          %v2702 = vunpack.c.l.b16 %v2609
          %v2703 = vunpack.c.h.b16 %v2609
          %v2704 = vunpack.c.l.b16 %v2610
          %v2705 = vunpack.c.h.b16 %v2610
          %v2706 = vunpack.c.l.b16 %v2611
          %v2707 = vunpack.c.h.b16 %v2611
          %v2708 = vunpack.c.l.b16 %v2612
          %v2709 = vunpack.c.h.b16 %v2612
          %v2710 = vunpack.c.l.b16 %v2613
          %v2711 = vunpack.c.h.b16 %v2613
          %v2712 = vunpack.c.l.b16 %v2614
          %v2713 = vunpack.c.h.b16 %v2614
          %v2714 = vunpack.c.l.b16 %v2615
          %v2715 = vunpack.c.h.b16 %v2615
          %v2716 = vunpack.c.l.b16 %v2616
          %v2717 = vunpack.c.h.b16 %v2616
          %v2718 = vunpack.c.l.b16 %v2617
          %v2719 = vunpack.c.h.b16 %v2617
          %v2720 = vunpack.c.l.b16 %v2618
          %v2721 = vunpack.c.h.b16 %v2618
          %v2722 = vunpack.c.l.b16 %v2619
          %v2723 = vunpack.c.h.b16 %v2619
          %v2724 = vunpack.c.l.b16 %v2620
          %v2725 = vunpack.c.h.b16 %v2620
          %v2726 = vunpack.c.l.b16 %v2621
          %v2727 = vunpack.c.h.b16 %v2621
          %v2728 = vunpack.c.l.b16 %v2622
          %v2729 = vunpack.c.h.b16 %v2622
          %v2730 = vunpack.c.l.b16 %v2623
          %v2731 = vunpack.c.h.b16 %v2623
          %v2732 = vunpack.c.l.b16 %v2624
          %v2733 = vunpack.c.h.b16 %v2624
          %v2734 = vunpack.c.l.b16 %v2625
          %v2735 = vunpack.c.h.b16 %v2625
          %v2736 = vunpack.c.l.b16 %v2626
          %v2737 = vunpack.c.h.b16 %v2626
          %v2738 = vunpack.c.l.b16 %v2627
          %v2739 = vunpack.c.h.b16 %v2627
          %v2740 = vunpack.c.l.b16 %v2628
          %v2741 = vunpack.c.h.b16 %v2628
          %v2742 = vunpack.c.l.b16 %v2629
          %v2743 = vunpack.c.h.b16 %v2629
          %v2744 = vunpack.c.l.b16 %v2630
          %v2745 = vunpack.c.h.b16 %v2630
          %v2746 = vunpack.c.l.b16 %v2631
          %v2747 = vunpack.c.h.b16 %v2631
          %v2748 = vunpack.c.l.b16 %v2632
          %v2749 = vunpack.c.h.b16 %v2632
          %v2750 = vunpack.c.l.b16 %v2633
          %v2751 = vunpack.c.h.b16 %v2633
          %v2752 = vpack.c.b16 %v2692, %v2688
          %v2753 = vpack.c.b16 %v2693, %v2689
          %v2754 = vpack.c.b16 %v2694, %v2690
          %v2755 = vpack.c.b16 %v2695, %v2691
          %v2756 = vpack.c.b16 %v2700, %v2696
          %v2757 = vpack.c.b16 %v2701, %v2697
          %v2758 = vpack.c.b16 %v2702, %v2698
          %v2759 = vpack.c.b16 %v2703, %v2699
          %v2760 = vpack.c.b16 %v2708, %v2704
          %v2761 = vpack.c.b16 %v2709, %v2705
          %v2762 = vpack.c.b16 %v2710, %v2706
          %v2763 = vpack.c.b16 %v2711, %v2707
          %v2764 = vpack.c.b16 %v2716, %v2712
          %v2765 = vpack.c.b16 %v2717, %v2713
          %v2766 = vpack.c.b16 %v2718, %v2714
          %v2767 = vpack.c.b16 %v2719, %v2715
          %v2768 = vpack.c.b16 %v2724, %v2720
          %v2769 = vpack.c.b16 %v2725, %v2721
          %v2770 = vpack.c.b16 %v2726, %v2722
          %v2771 = vpack.c.b16 %v2727, %v2723
          %v2772 = vpack.c.b16 %v2732, %v2728
          %v2773 = vpack.c.b16 %v2733, %v2729
          %v2774 = vpack.c.b16 %v2734, %v2730
          %v2775 = vpack.c.b16 %v2735, %v2731
          %v2776 = vpack.c.b16 %v2740, %v2736
          %v2777 = vpack.c.b16 %v2741, %v2737
          %v2778 = vpack.c.b16 %v2742, %v2738
          %v2779 = vpack.c.b16 %v2743, %v2739
          %v2780 = vpack.c.b16 %v2748, %v2744
          %v2781 = vpack.c.b16 %v2749, %v2745
          %v2782 = vpack.c.b16 %v2750, %v2746
          %v2783 = vpack.c.b16 %v2751, %v2747
          %2816 = vmatprep.subr.bf16.mxu0 %v2753
          %2817 = vmatpush1.bf16.msra.mxu0 %v2752
          %2818 = vmatprep.subr.bf16.mxu0 %v2757
          %2819 = vmatpush1.bf16.msra.mxu0 %v2756
          %2820 = vmatprep.subr.bf16.mxu0 %v2761
          %2821 = vmatpush1.bf16.msra.mxu0 %v2760
          %2822 = vmatprep.subr.bf16.mxu0 %v2765
          %2823 = vmatpush1.bf16.msra.mxu0 %v2764
          %2824 = vmatprep.subr.bf16.mxu0 %v2769
          %2825 = vmatpush1.bf16.msra.mxu0 %v2768
          %2826 = vmatprep.subr.bf16.mxu0 %v2773
          %2827 = vmatpush1.bf16.msra.mxu0 %v2772
          %2828 = vmatprep.subr.bf16.mxu0 %v2777
          %2829 = vmatpush1.bf16.msra.mxu0 %v2776
          %2830 = vmatprep.subr.bf16.mxu0 %v2781
          %2831 = vmatpush1.bf16.msra.mxu0 %v2780
          %2832 = vmatprep.subr.bf16.mxu0 0
          %2833 = vmatpush1.bf16.msra.mxu0 0
          %2834 = vmatprep.subr.bf16.mxu0 0
          %2835 = vmatpush1.bf16.msra.mxu0 0
          %2836 = vmatprep.subr.bf16.mxu0 0
          %2837 = vmatpush1.bf16.msra.mxu0 0
          %2838 = vmatprep.subr.bf16.mxu0 0
          %2839 = vmatpush1.bf16.msra.mxu0 0
          %2840 = vmatprep.subr.bf16.mxu0 0
          %2841 = vmatpush1.bf16.msra.mxu0 0
          %2842 = vmatprep.subr.bf16.mxu0 0
          %2843 = vmatpush1.bf16.msra.mxu0 0
          %2844 = vmatprep.subr.bf16.mxu0 0
          %2845 = vmatpush1.bf16.msra.mxu0 0
          %2846 = vmatprep.subr.bf16.mxu0 0
          %2847 = vmatpush1.bf16.msra.mxu0 0
          %2848 = vmatprep.mubr.bf16.mxu0 0
          %2849 = vmatmul.mubr.bf16.gmra.mrb[0].mxu0 %v2601
          %v2850 = vpop.f32.mrb[0].mxu0
          %v2851 = vadd.f32 %v2639, %v2850
          %v2852 = vpop.f32.mrb[0].mxu0
          %v2853 = vadd.f32 %v2643, %v2852
          %v2854 = vpop.f32.mrb[0].mxu0
          %v2855 = vpop.f32.mrb[0].mxu0
          %2856 = vdwg.mxu0
          %2857 = vmatprep.subr.bf16.mxu0 %v2755
          %2858 = vmatpush1.bf16.msra.mxu0 %v2754
          %2859 = vmatprep.subr.bf16.mxu0 %v2759
          %2860 = vmatpush1.bf16.msra.mxu0 %v2758
          %2861 = vmatprep.subr.bf16.mxu0 %v2763
          %2862 = vmatpush1.bf16.msra.mxu0 %v2762
          %2863 = vmatprep.subr.bf16.mxu0 %v2767
          %2864 = vmatpush1.bf16.msra.mxu0 %v2766
          %2865 = vmatprep.subr.bf16.mxu0 %v2771
          %2866 = vmatpush1.bf16.msra.mxu0 %v2770
          %2867 = vmatprep.subr.bf16.mxu0 %v2775
          %2868 = vmatpush1.bf16.msra.mxu0 %v2774
          %2869 = vmatprep.subr.bf16.mxu0 %v2779
          %2870 = vmatpush1.bf16.msra.mxu0 %v2778
          %2871 = vmatprep.subr.bf16.mxu0 %v2783
          %2872 = vmatpush1.bf16.msra.mxu0 %v2782
          %2873 = vmatprep.subr.bf16.mxu0 0
          %2874 = vmatpush1.bf16.msra.mxu0 0
          %2875 = vmatprep.subr.bf16.mxu0 0
          %2876 = vmatpush1.bf16.msra.mxu0 0
          %2877 = vmatprep.subr.bf16.mxu0 0
          %2878 = vmatpush1.bf16.msra.mxu0 0
          %2879 = vmatprep.subr.bf16.mxu0 0
          %2880 = vmatpush1.bf16.msra.mxu0 0
          %2881 = vmatprep.subr.bf16.mxu0 0
          %2882 = vmatpush1.bf16.msra.mxu0 0
          %2883 = vmatprep.subr.bf16.mxu0 0
          %2884 = vmatpush1.bf16.msra.mxu0 0
          %2885 = vmatprep.subr.bf16.mxu0 0
          %2886 = vmatpush1.bf16.msra.mxu0 0
          %2887 = vmatprep.subr.bf16.mxu0 0
          %2888 = vmatpush1.bf16.msra.mxu0 0
          %2889 = vmatprep.mubr.bf16.mxu0 0
          %2890 = vmatmul.mubr.bf16.gmra.mrb[0].mxu0 %v2601
          %v2891 = vpop.f32.mrb[0].mxu0
          %v2892 = vadd.f32 %v2647, %v2891
          %v2893 = vpop.f32.mrb[0].mxu0
          %v2894 = vadd.f32 %v2651, %v2893
          %v2895 = vpop.f32.mrb[0].mxu0
          %v2896 = vpop.f32.mrb[0].mxu0
          %2897 = vdwg.mxu0
          %v2898 = vmax.f32 %v2851, 0.0
          %v2899 = vmax.f32 %v2853, 0.0
          %v2900 = vmax.f32 %v2892, 0.0
          %v2901 = vmax.f32 %v2894, 0.0
          %v2902 = vpack.c.bf16 %v2898, %v2898
          %v2903 = vpack.c.bf16 %v2899, %v2899
          %v2904 = vpack.c.bf16 %v2900, %v2900
          %v2905 = vpack.c.bf16 %v2901, %v2901
          %v2906 = vld [vmem:[%s20] sm:$0xf]
          %v2907 = vld [vmem:[%s20 + $0x4] sm:$0xf]
          %v2908 = vld [vmem:[%s20 + $0x8] sm:$0xf]
          %v2909 = vld [vmem:[%s20 + $0xc] sm:$0xf]
          %v2910 = vld [vmem:[%s20 + $0x10] sm:$0xf]
          %v2911 = vld [vmem:[%s20 + $0x14] sm:$0xf]
          %v2912 = vld [vmem:[%s20 + $0x18] sm:$0xf]
          %v2913 = vld [vmem:[%s20 + $0x1c] sm:$0xf]
          %v2914 = vld [vmem:[%s20 + $0x20] sm:$0xf]
          %v2915 = vld [vmem:[%s20 + $0x24] sm:$0xf]
          %v2916 = vld [vmem:[%s20 + $0x28] sm:$0xf]
          %v2917 = vld [vmem:[%s20 + $0x2c] sm:$0xf]
          %v2918 = vld [vmem:[%s20 + $0x30] sm:$0xf]
          %v2919 = vld [vmem:[%s20 + $0x34] sm:$0xf]
          %v2920 = vld [vmem:[%s20 + $0x38] sm:$0xf]
          %v2921 = vld [vmem:[%s20 + $0x3c] sm:$0xf]
          %v2922 = vld [vmem:[%s20 + $0x40] sm:$0xf]
          %v2923 = vld [vmem:[%s20 + $0x44] sm:$0xf]
          %v2924 = vld [vmem:[%s20 + $0x48] sm:$0xf]
          %v2925 = vld [vmem:[%s20 + $0x4c] sm:$0xf]
          %v2926 = vld [vmem:[%s20 + $0x50] sm:$0xf]
          %v2927 = vld [vmem:[%s20 + $0x54] sm:$0xf]
          %v2928 = vld [vmem:[%s20 + $0x58] sm:$0xf]
          %v2929 = vld [vmem:[%s20 + $0x5c] sm:$0xf]
          %v2930 = vld [vmem:[%s20 + $0x60] sm:$0xf]
          %v2931 = vld [vmem:[%s20 + $0x64] sm:$0xf]
          %v2932 = vld [vmem:[%s20 + $0x68] sm:$0xf]
          %v2933 = vld [vmem:[%s20 + $0x6c] sm:$0xf]
          %v2934 = vld [vmem:[%s20 + $0x70] sm:$0xf]
          %v2935 = vld [vmem:[%s20 + $0x74] sm:$0xf]
          %v2936 = vld [vmem:[%s20 + $0x78] sm:$0xf]
          %v2937 = vld [vmem:[%s20 + $0x7c] sm:$0xf]
          %v2938 = vld [vmem:[%s20 + $0x80] sm:$0xf]
          %v2939 = vld [vmem:[%s20 + $0x84] sm:$0xf]
          %v2940 = vld [vmem:[%s20 + $0x88] sm:$0xf]
          %v2941 = vld [vmem:[%s20 + $0x8c] sm:$0xf]
          %v2942 = vld [vmem:[%s20 + $0x90] sm:$0xf]
          %v2943 = vld [vmem:[%s20 + $0x94] sm:$0xf]
          %v2944 = vld [vmem:[%s20 + $0x98] sm:$0xf]
          %v2945 = vld [vmem:[%s20 + $0x9c] sm:$0xf]
          %v2946 = vld [vmem:[%s20 + $0xa0] sm:$0xf]
          %v2947 = vld [vmem:[%s20 + $0xa4] sm:$0xf]
          %v2948 = vld [vmem:[%s20 + $0xa8] sm:$0xf]
          %v2949 = vld [vmem:[%s20 + $0xac] sm:$0xf]
          %v2950 = vld [vmem:[%s20 + $0xb0] sm:$0xf]
          %v2951 = vld [vmem:[%s20 + $0xb4] sm:$0xf]
          %v2952 = vld [vmem:[%s20 + $0xb8] sm:$0xf]
          %v2953 = vld [vmem:[%s20 + $0xbc] sm:$0xf]
          %v2954 = vld [vmem:[%s20 + $0xc0] sm:$0xf]
          %v2955 = vld [vmem:[%s20 + $0xc4] sm:$0xf]
          %v2956 = vld [vmem:[%s20 + $0xc8] sm:$0xf]
          %v2957 = vld [vmem:[%s20 + $0xcc] sm:$0xf]
          %v2958 = vld [vmem:[%s20 + $0xd0] sm:$0xf]
          %v2959 = vld [vmem:[%s20 + $0xd4] sm:$0xf]
          %v2960 = vld [vmem:[%s20 + $0xd8] sm:$0xf]
          %v2961 = vld [vmem:[%s20 + $0xdc] sm:$0xf]
          %v2962 = vld [vmem:[%s20 + $0xe0] sm:$0xf]
          %v2963 = vld [vmem:[%s20 + $0xe4] sm:$0xf]
          %v2964 = vld [vmem:[%s20 + $0xe8] sm:$0xf]
          %v2965 = vld [vmem:[%s20 + $0xec] sm:$0xf]
          %v2966 = vld [vmem:[%s20 + $0xf0] sm:$0xf]
          %v2967 = vld [vmem:[%s20 + $0xf4] sm:$0xf]
          %v2968 = vld [vmem:[%s20 + $0xf8] sm:$0xf]
          %v2969 = vld [vmem:[%s20 + $0xfc] sm:$0xf]
          %v2970 = vld [vmem:[%s21] sm:$0x1]
          %v2972 = vlaneseq
          %v2973 = vshrl.u32 %v2972, 7
          %v2974 = vsub.s32 0, %v2973
          %v2975 = vrot.slane %v2970, %v2974
          %v3041 = vunpack.c.l.b16 %v2906
          %v3042 = vunpack.c.l.b16 %v2907
          %v3043 = vunpack.c.l.b16 %v2908
          %v3044 = vunpack.c.l.b16 %v2909
          %v3045 = vunpack.c.l.b16 %v2910
          %v3046 = vunpack.c.l.b16 %v2911
          %v3047 = vunpack.c.l.b16 %v2912
          %v3048 = vunpack.c.l.b16 %v2913
          %v3049 = vunpack.c.l.b16 %v2914
          %v3050 = vunpack.c.l.b16 %v2915
          %v3051 = vunpack.c.l.b16 %v2916
          %v3052 = vunpack.c.l.b16 %v2917
          %v3053 = vunpack.c.l.b16 %v2918
          %v3054 = vunpack.c.l.b16 %v2919
          %v3055 = vunpack.c.l.b16 %v2920
          %v3056 = vunpack.c.l.b16 %v2921
          %v3057 = vunpack.c.l.b16 %v2922
          %v3058 = vunpack.c.l.b16 %v2923
          %v3059 = vunpack.c.l.b16 %v2924
          %v3060 = vunpack.c.l.b16 %v2925
          %v3061 = vunpack.c.l.b16 %v2926
          %v3062 = vunpack.c.l.b16 %v2927
          %v3063 = vunpack.c.l.b16 %v2928
          %v3064 = vunpack.c.l.b16 %v2929
          %v3065 = vunpack.c.l.b16 %v2930
          %v3066 = vunpack.c.l.b16 %v2931
          %v3067 = vunpack.c.l.b16 %v2932
          %v3068 = vunpack.c.l.b16 %v2933
          %v3069 = vunpack.c.l.b16 %v2934
          %v3070 = vunpack.c.l.b16 %v2935
          %v3071 = vunpack.c.l.b16 %v2936
          %v3072 = vunpack.c.l.b16 %v2937
          %v3073 = vunpack.c.l.b16 %v2938
          %v3074 = vunpack.c.l.b16 %v2939
          %v3075 = vunpack.c.l.b16 %v2940
          %v3076 = vunpack.c.l.b16 %v2941
          %v3077 = vunpack.c.l.b16 %v2942
          %v3078 = vunpack.c.l.b16 %v2943
          %v3079 = vunpack.c.l.b16 %v2944
          %v3080 = vunpack.c.l.b16 %v2945
          %v3081 = vunpack.c.l.b16 %v2946
          %v3082 = vunpack.c.l.b16 %v2947
          %v3083 = vunpack.c.l.b16 %v2948
          %v3084 = vunpack.c.l.b16 %v2949
          %v3085 = vunpack.c.l.b16 %v2950
          %v3086 = vunpack.c.l.b16 %v2951
          %v3087 = vunpack.c.l.b16 %v2952
          %v3088 = vunpack.c.l.b16 %v2953
          %v3089 = vunpack.c.l.b16 %v2954
          %v3090 = vunpack.c.l.b16 %v2955
          %v3091 = vunpack.c.l.b16 %v2956
          %v3092 = vunpack.c.l.b16 %v2957
          %v3093 = vunpack.c.l.b16 %v2958
          %v3094 = vunpack.c.l.b16 %v2959
          %v3095 = vunpack.c.l.b16 %v2960
          %v3096 = vunpack.c.l.b16 %v2961
          %v3097 = vunpack.c.l.b16 %v2962
          %v3098 = vunpack.c.l.b16 %v2963
          %v3099 = vunpack.c.l.b16 %v2964
          %v3100 = vunpack.c.l.b16 %v2965
          %v3101 = vunpack.c.l.b16 %v2966
          %v3102 = vunpack.c.l.b16 %v2967
          %v3103 = vunpack.c.l.b16 %v2968
          %v3104 = vunpack.c.l.b16 %v2969
          %v3105 = vpack.c.b16 %v3042, %v3041
          %v3106 = vpack.c.b16 %v3044, %v3043
          %v3107 = vpack.c.b16 %v3046, %v3045
          %v3108 = vpack.c.b16 %v3048, %v3047
          %v3109 = vpack.c.b16 %v3050, %v3049
          %v3110 = vpack.c.b16 %v3052, %v3051
          %v3111 = vpack.c.b16 %v3054, %v3053
          %v3112 = vpack.c.b16 %v3056, %v3055
          %v3113 = vpack.c.b16 %v3058, %v3057
          %v3114 = vpack.c.b16 %v3060, %v3059
          %v3115 = vpack.c.b16 %v3062, %v3061
          %v3116 = vpack.c.b16 %v3064, %v3063
          %v3117 = vpack.c.b16 %v3066, %v3065
          %v3118 = vpack.c.b16 %v3068, %v3067
          %v3119 = vpack.c.b16 %v3070, %v3069
          %v3120 = vpack.c.b16 %v3072, %v3071
          %v3121 = vpack.c.b16 %v3074, %v3073
          %v3122 = vpack.c.b16 %v3076, %v3075
          %v3123 = vpack.c.b16 %v3078, %v3077
          %v3124 = vpack.c.b16 %v3080, %v3079
          %v3125 = vpack.c.b16 %v3082, %v3081
          %v3126 = vpack.c.b16 %v3084, %v3083
          %v3127 = vpack.c.b16 %v3086, %v3085
          %v3128 = vpack.c.b16 %v3088, %v3087
          %v3129 = vpack.c.b16 %v3090, %v3089
          %v3130 = vpack.c.b16 %v3092, %v3091
          %v3131 = vpack.c.b16 %v3094, %v3093
          %v3132 = vpack.c.b16 %v3096, %v3095
          %v3133 = vpack.c.b16 %v3098, %v3097
          %v3134 = vpack.c.b16 %v3100, %v3099
          %v3135 = vpack.c.b16 %v3102, %v3101
          %v3136 = vpack.c.b16 %v3104, %v3103
          %3169 = vmatprep.subr.bf16.mxu0 0
          %3170 = vmatpush1.bf16.msra.mxu0 %v3105
          %3171 = vmatprep.subr.bf16.mxu0 0
          %3172 = vmatpush1.bf16.msra.mxu0 %v3106
          %3173 = vmatprep.subr.bf16.mxu0 0
          %3174 = vmatpush1.bf16.msra.mxu0 %v3107
          %3175 = vmatprep.subr.bf16.mxu0 0
          %3176 = vmatpush1.bf16.msra.mxu0 %v3108
          %3177 = vmatprep.subr.bf16.mxu0 0
          %3178 = vmatpush1.bf16.msra.mxu0 %v3109
          %3179 = vmatprep.subr.bf16.mxu0 0
          %3180 = vmatpush1.bf16.msra.mxu0 %v3110
          %3181 = vmatprep.subr.bf16.mxu0 0
          %3182 = vmatpush1.bf16.msra.mxu0 %v3111
          %3183 = vmatprep.subr.bf16.mxu0 0
          %3184 = vmatpush1.bf16.msra.mxu0 %v3112
          %3185 = vmatprep.subr.bf16.mxu0 0
          %3186 = vmatpush1.bf16.msra.mxu0 %v3113
          %3187 = vmatprep.subr.bf16.mxu0 0
          %3188 = vmatpush1.bf16.msra.mxu0 %v3114
          %3189 = vmatprep.subr.bf16.mxu0 0
          %3190 = vmatpush1.bf16.msra.mxu0 %v3115
          %3191 = vmatprep.subr.bf16.mxu0 0
          %3192 = vmatpush1.bf16.msra.mxu0 %v3116
          %3193 = vmatprep.subr.bf16.mxu0 0
          %3194 = vmatpush1.bf16.msra.mxu0 %v3117
          %3195 = vmatprep.subr.bf16.mxu0 0
          %3196 = vmatpush1.bf16.msra.mxu0 %v3118
          %3197 = vmatprep.subr.bf16.mxu0 0
          %3198 = vmatpush1.bf16.msra.mxu0 %v3119
          %3199 = vmatprep.subr.bf16.mxu0 0
          %3200 = vmatpush1.bf16.msra.mxu0 %v3120
          %3201 = vmatprep.mubr.bf16.mxu0 %v2903
          %3202 = vmatmul.mubr.bf16.gmra.mrb[0].mxu0 %v2902
          %v3203 = vpop.f32.mrb[0].mxu0
          %v3204 = vadd.f32 %v2975, %v3203
          %v3205 = vpop.f32.mrb[0].mxu0
          %v3206 = vpop.f32.mrb[0].mxu0
          %v3207 = vpop.f32.mrb[0].mxu0
          %3208 = vdwg.mxu0
          %3209 = vmatprep.subr.bf16.mxu0 0
          %3210 = vmatpush1.bf16.msra.mxu0 %v3121
          %3211 = vmatprep.subr.bf16.mxu0 0
          %3212 = vmatpush1.bf16.msra.mxu0 %v3122
          %3213 = vmatprep.subr.bf16.mxu0 0
          %3214 = vmatpush1.bf16.msra.mxu0 %v3123
          %3215 = vmatprep.subr.bf16.mxu0 0
          %3216 = vmatpush1.bf16.msra.mxu0 %v3124
          %3217 = vmatprep.subr.bf16.mxu0 0
          %3218 = vmatpush1.bf16.msra.mxu0 %v3125
          %3219 = vmatprep.subr.bf16.mxu0 0
          %3220 = vmatpush1.bf16.msra.mxu0 %v3126
          %3221 = vmatprep.subr.bf16.mxu0 0
          %3222 = vmatpush1.bf16.msra.mxu0 %v3127
          %3223 = vmatprep.subr.bf16.mxu0 0
          %3224 = vmatpush1.bf16.msra.mxu0 %v3128
          %3225 = vmatprep.subr.bf16.mxu0 0
          %3226 = vmatpush1.bf16.msra.mxu0 %v3129
          %3227 = vmatprep.subr.bf16.mxu0 0
          %3228 = vmatpush1.bf16.msra.mxu0 %v3130
          %3229 = vmatprep.subr.bf16.mxu0 0
          %3230 = vmatpush1.bf16.msra.mxu0 %v3131
          %3231 = vmatprep.subr.bf16.mxu0 0
          %3232 = vmatpush1.bf16.msra.mxu0 %v3132
          %3233 = vmatprep.subr.bf16.mxu0 0
          %3234 = vmatpush1.bf16.msra.mxu0 %v3133
          %3235 = vmatprep.subr.bf16.mxu0 0
          %3236 = vmatpush1.bf16.msra.mxu0 %v3134
          %3237 = vmatprep.subr.bf16.mxu0 0
          %3238 = vmatpush1.bf16.msra.mxu0 %v3135
          %3239 = vmatprep.subr.bf16.mxu0 0
          %3240 = vmatpush1.bf16.msra.mxu0 %v3136
          %3241 = vmatprep.mubr.bf16.mxu0 %v2905
          %3242 = vmatmul.mubr.bf16.gmra.mrb[0].mxu0 %v2904
          %v3243 = vpop.f32.mrb[0].mxu0
          %v3244 = vadd.f32 %v3204, %v3243
          %v3245 = vpop.f32.mrb[0].mxu0
          %v3246 = vpop.f32.mrb[0].mxu0
          %v3247 = vpop.f32.mrb[0].mxu0
          %3248 = vdwg.mxu0
          %vm3249 = vcmask 123904
          %3250 = vst.msk [vmem:[#allocation3] sm:$0x3] %vm3249, %v3244
        $region116: #{bert_tag_recommender_forward.1} parent=107 // pred_fallthru
          _
        // Predicated region
        $region117: #{bert_tag_recommender_forward.1} parent=107 // pred_check
          %p3251 = pneg %p569
        $region118: #{bert_tag_recommender_forward.1} parent=107 // pred_check_branch
          %3253 = sbr.rel (%p3251) target = $region120
        $region119: #{bert_tag_recommender_forward.1} parent=107 // pred_region
          %s3255 = ssub.s32 32, 32
          %3256 = vsyncadd [#allocation4], %s3255
          %s3258 = sshll.u32 [#allocation3], 4
          %s3259 = int_to_ptr.vmem [resolvable:$true] %s3258
          %3261 = dma.vmem_to_hbm [thread:$0]  %s3259, 32, %s22, [#allocation4]
        $region120: #{bert_tag_recommender_forward.1} parent=107 // pred_fallthru
          _
        // Predicated region
        $region121: #{bert_tag_recommender_forward.1} parent=107 // pred_check
          %p3262 = pneg %p569
        $region122: #{bert_tag_recommender_forward.1} parent=107 // pred_check_branch
          %3264 = sbr.rel (%p3262) target = $region124
        $region123: #{bert_tag_recommender_forward.1} parent=107 // pred_region
          %3265 = dma.done [#allocation4], 32
        $region124: #{bert_tag_recommender_forward.1} parent=107 // pred_fallthru
          _
      $region108: #{bert_tag_recommender_forward.1} parent=5 // pred_fallthru
        _
      %p3266 = scmp.le.s32.totalorder 2, %s29
      // Predicated region
      $region125: #{bert_tag_recommender_forward.1} parent=5 // pred_check
        %p3267 = pneg %p3266
      $region126: #{bert_tag_recommender_forward.1} parent=5 // pred_check_branch
        %3269 = sbr.rel (%p3267) target = $region128
      $region127: #{bert_tag_recommender_forward.1} parent=5 // pred_region
        %s3270 = ssub.s32 %s29, 2
      $region128: #{bert_tag_recommender_forward.1} parent=5 // pred_fallthru
        _
    $region6: #{bert_tag_recommender_forward.1} parent=1 // loop_footer
      %s33 = sadd.s32 1, %s29
    $region7: #{bert_tag_recommender_forward.1} parent=1 // loop_footer_branch
      %28 = sbr.rel target = $region3
    $region8: #{bert_tag_recommender_forward.1} parent=1 // loop_exit
      _
    %3271 = vsyncpa [#allocation4], 1
    %s3272 = scalar_lea.sflag [#allocation4], 1
    %3273 = vsyncpa %s3272, 1

</llo_original>
